<compile_context>
chip_gen: v5e
topology: v5e:2x2
jax: 0.10.0
libtpu: 0.0.40
codegen_flags: <defaults>
</compile_context>

<pallas_src>
import functools

import jax
import jax.numpy as jnp
from jax.experimental import pallas as pl
from jax.experimental.pallas import tpu as pltpu


LN_EPS = 1e-6
BLOCK_M = 512                     # row tile for row-tiled linear/MLP/head kernels
VMEM_LIMIT = 64 * 1024 * 1024     # explicit scoped-VMEM budget (<= v7x physical)


# --------------------------- capability probes -------------------------------

def _try_run(fn):
    """Compile+run a tiny Pallas kernel; True iff it lowers and runs cleanly."""
    try:
        jax.block_until_ready(fn())
        return True
    except Exception:
        return False


def _probe_buffered():
    def k(x_ref, o_ref):
        o_ref[...] = x_ref[...] + 1.0
    return pl.pallas_call(
        k, grid=(2,),
        in_specs=[pl.BlockSpec((8, 128), lambda i: (0, 0),
                               pipeline_mode=pl.Buffered(1))],
        out_specs=pl.BlockSpec((8, 128), lambda i: (i, 0)),
        out_shape=jax.ShapeDtypeStruct((16, 128), jnp.float32),
    )(jnp.zeros((8, 128), jnp.float32))


def _probe_exact_gelu():
    def k(x_ref, o_ref):
        o_ref[...] = jax.nn.gelu(x_ref[...], approximate=False)
    return pl.pallas_call(
        k, out_shape=jax.ShapeDtypeStruct((8, 128), jnp.float32),
    )(jnp.zeros((8, 128), jnp.float32))


_USE_BUFFERED = _try_run(_probe_buffered)   # single-buffer invariant operands?
_EXACT_GELU = _try_run(_probe_exact_gelu)   # erf lowering available?


def _const_spec(shape):
    """BlockSpec for a grid-invariant operand; single-buffered when supported."""
    idx = lambda *_: (0,) * len(shape)
    if _USE_BUFFERED:
        return pl.BlockSpec(shape, idx, pipeline_mode=pl.Buffered(1))
    return pl.BlockSpec(shape, idx)


def _gelu(x):
    # PyTorch nn.GELU default is the exact erf form; fall back to the tanh
    # approximation only if the erf lowering is unavailable on this backend.
    return jax.nn.gelu(x, approximate=not _EXACT_GELU)


def _cparams():
    return pltpu.CompilerParams(dimension_semantics=("parallel",),
                                vmem_limit_bytes=VMEM_LIMIT)


def _pick_bm(M, block_m=BLOCK_M):
    """Row tile: multiple of 8 and (when tiled) an even grid-step count so the
    'parallel' axis shards evenly across v7x's two TensorCores."""
    if M <= block_m:
        return M
    bm = max(8, (block_m // 8) * 8)
    steps = pl.cdiv(M, bm)
    if steps % 2 == 1:
        bm = ((pl.cdiv(M, steps + 1) + 7) // 8) * 8
    return max(8, min(bm, M))


# ----------------------------- Pallas kernels --------------------------------

def _resize_kernel(ah_ref, awt_ref, x_ref, o_ref):
    """Fused bilinear resize of one (H_in, W_in) image: A_h @ x @ A_w^T.
    Matmuls in bf16 (f32 accumulation); bf16 interpolation-weight error is
    negligible for this model."""
    ah = ah_ref[...].astype(jnp.bfloat16)
    awt = awt_ref[...].astype(jnp.bfloat16)
    x = x_ref[0].astype(jnp.bfloat16)
    t = jnp.dot(ah, x, preferred_element_type=jnp.float32)          # (img, W_in)
    y = jnp.dot(t.astype(jnp.bfloat16), awt,
                preferred_element_type=jnp.float32)                 # (img, img)
    o_ref[0] = y.astype(o_ref.dtype)


def _linear_kernel(x_ref, w_ref, bias_ref, o_ref):
    y = jnp.dot(x_ref[...], w_ref[...],
                preferred_element_type=jnp.float32) + bias_ref[...]
    o_ref[...] = y.astype(o_ref.dtype)


def _ln_linear_kernel(act, x_ref, g_ref, b_ref, w_ref, bias_ref, o_ref):
    """LayerNorm (f32 stats) fused with the following linear (+ activation)."""
    x = x_ref[...].astype(jnp.float32)
    mu = jnp.mean(x, axis=-1, keepdims=True)
    var = jnp.mean(jnp.square(x - mu), axis=-1, keepdims=True)
    h = (x - mu) * jax.lax.rsqrt(var + LN_EPS) * g_ref[...] + b_ref[...]
    y = jnp.dot(h.astype(w_ref.dtype), w_ref[...],
                preferred_element_type=jnp.float32) + bias_ref[...]
    if act == "sigmoid6000":
        y = jax.nn.sigmoid(y) * 6000.0
    o_ref[...] = y.astype(o_ref.dtype)


def _mlp_block_kernel(x_ref, g_ref, b_ref, w1_ref, b1_ref, w2_ref, b2_ref,
                      o_ref):
    """Fused MLP half-block: LN2 + fc1 + GELU + fc2 + residual add.
    The (rows, mlp_hidden) intermediate never leaves VMEM."""
    x = x_ref[...].astype(jnp.float32)
    mu = jnp.mean(x, axis=-1, keepdims=True)
    var = jnp.mean(jnp.square(x - mu), axis=-1, keepdims=True)
    h = (x - mu) * jax.lax.rsqrt(var + LN_EPS) * g_ref[...] + b_ref[...]
    u = jnp.dot(h.astype(w1_ref.dtype), w1_ref[...],
                preferred_element_type=jnp.float32) + b1_ref[...]
    u = _gelu(u)
    y = jnp.dot(u.astype(w2_ref.dtype), w2_ref[...],
                preferred_element_type=jnp.float32) + b2_ref[...]
    o_ref[...] = (x + y).astype(o_ref.dtype)


def _attn_block_kernel(nh, dh, scale, l_valid, need_mask,
                       x_ref, g_ref, b_ref, qkvw_ref, qkvb_ref,
                       projw_ref, projb_ref, o_ref):
    """Fused attention half-block for one batch element:
    LN1 + QKV + per-head softmax attention + output projection + residual.
    Softmax scale is folded into q; the projection is accumulated per head
    (acc += o_h @ proj_w[h*dh:(h+1)*dh, :]) so no (H, Lp, dh) -> (Lp, D)
    transpose is ever materialized."""
    D = nh * dh
    lp = x_ref.shape[0]

    x = x_ref[...].astype(jnp.float32)                               # (Lp, D)
    mu = jnp.mean(x, axis=-1, keepdims=True)
    var = jnp.mean(jnp.square(x - mu), axis=-1, keepdims=True)
    h = (x - mu) * jax.lax.rsqrt(var + LN_EPS) * g_ref[...] + b_ref[...]

    qkv = jnp.dot(h.astype(qkvw_ref.dtype), qkvw_ref[...],
                  preferred_element_type=jnp.float32) + qkvb_ref[...]  # (Lp, 3D)

    if need_mask:
        kidx = jax.lax.broadcasted_iota(jnp.int32, (1, lp), 1)
        kbias = jnp.where(kidx < l_valid, 0.0, -1e30).astype(jnp.float32)

    acc = x + projb_ref[...]                       # residual + projection bias
    for hd in range(nh):
        q = (qkv[:, hd * dh:(hd + 1) * dh] * scale).astype(jnp.bfloat16)
        k = qkv[:, D + hd * dh:D + (hd + 1) * dh].astype(jnp.bfloat16)
        v = qkv[:, 2 * D + hd * dh:2 * D + (hd + 1) * dh].astype(jnp.bfloat16)
        s = jax.lax.dot_general(q, k, (((1,), (1,)), ((), ())),
                                preferred_element_type=jnp.float32)   # (Lp, Lp)
        if need_mask:
            s = s + kbias
        m = jnp.max(s, axis=-1, keepdims=True)
        p = jnp.exp(s - m)
        den = jnp.sum(p, axis=-1, keepdims=True)
        inv = pl.reciprocal(den, approx=True)
        inv = inv * (2.0 - den * inv)          # one Newton step -> ~exact divide
        p = (p * inv).astype(jnp.bfloat16)
        o = jnp.dot(p, v, preferred_element_type=jnp.float32)         # (Lp, dh)
        acc = acc + jnp.dot(o.astype(jnp.bfloat16),
                            projw_ref[hd * dh:(hd + 1) * dh, :],
                            preferred_element_type=jnp.float32)
    o_ref[...] = acc.astype(o_ref.dtype)


# ----------------------------- Pallas wrappers -------------------------------

def pallas_resize(x, A_h, A_wT):
    """x: (B, H_in, W_in) f32 -> (B, img, img) bf16, one image per grid step."""
    B, H_in, W_in = x.shape
    img = A_h.shape[0]
    return pl.pallas_call(
        _resize_kernel,
        grid=(B,),
        in_specs=[_const_spec((img, H_in)),
                  _const_spec((W_in, img)),
                  pl.BlockSpec((1, H_in, W_in), lambda i: (i, 0, 0))],
        out_specs=pl.BlockSpec((1, img, img), lambda i: (i, 0, 0)),
        out_shape=jax.ShapeDtypeStruct((B, img, img), jnp.bfloat16),
        compiler_params=_cparams(),
    )(A_h, A_wT, x)


def pallas_linear(x, w, bias, block_m=BLOCK_M):
    M, K = x.shape
    N = w.shape[1]
    bm = _pick_bm(M, block_m)
    return pl.pallas_call(
        _linear_kernel,
        grid=(pl.cdiv(M, bm),),
        in_specs=[pl.BlockSpec((bm, K), lambda i: (i, 0)),
                  _const_spec((K, N)),
                  _const_spec((1, N))],
        out_specs=pl.BlockSpec((bm, N), lambda i: (i, 0)),
        out_shape=jax.ShapeDtypeStruct((M, N), x.dtype),
        compiler_params=_cparams(),
    )(x, w, bias.reshape(1, N))


def pallas_ln_linear(x, g, b, w, bias, act=None, out_dtype=None,
                     block_m=BLOCK_M):
    M, K = x.shape
    N = w.shape[1]
    bm = _pick_bm(M, block_m)
    out_dtype = out_dtype or x.dtype
    return pl.pallas_call(
        functools.partial(_ln_linear_kernel, act),
        grid=(pl.cdiv(M, bm),),
        in_specs=[pl.BlockSpec((bm, K), lambda i: (i, 0)),
                  _const_spec((1, K)),
                  _const_spec((1, K)),
                  _const_spec((K, N)),
                  _const_spec((1, N))],
        out_specs=pl.BlockSpec((bm, N), lambda i: (i, 0)),
        out_shape=jax.ShapeDtypeStruct((M, N), out_dtype),
        compiler_params=_cparams(),
    )(x, g.reshape(1, K), b.reshape(1, K), w, bias.reshape(1, N))


def pallas_mlp_block(x, g, b, w1, b1, w2, b2, block_m=BLOCK_M):
    """Fused LN + fc1 + GELU + fc2 + residual; x: (M, D) bf16."""
    M, D = x.shape
    Hm = w1.shape[1]
    bm = _pick_bm(M, block_m)
    return pl.pallas_call(
        _mlp_block_kernel,
        grid=(pl.cdiv(M, bm),),
        in_specs=[pl.BlockSpec((bm, D), lambda i: (i, 0)),
                  _const_spec((1, D)),
                  _const_spec((1, D)),
                  _const_spec((D, Hm)),
                  _const_spec((1, Hm)),
                  _const_spec((Hm, D)),
                  _const_spec((1, D))],
        out_specs=pl.BlockSpec((bm, D), lambda i: (i, 0)),
        out_shape=jax.ShapeDtypeStruct((M, D), x.dtype),
        compiler_params=_cparams(),
    )(x, g.reshape(1, D), b.reshape(1, D),
      w1, b1.reshape(1, Hm), w2, b2.reshape(1, D))


def pallas_attn_block(x, g, b, qkv_w, qkv_b, proj_w, proj_b,
                      N, L_pad, l_valid, num_heads):
    """Fused attention half-block; x: (N*L_pad, D) bf16, gridded over batch."""
    D = x.shape[1]
    dh = D // num_heads
    scale = float(dh) ** -0.5
    need_mask = l_valid < L_pad
    kern = functools.partial(_attn_block_kernel, num_heads, dh, scale,
                             l_valid, need_mask)
    return pl.pallas_call(
        kern,
        grid=(N,),
        in_specs=[pl.BlockSpec((L_pad, D), lambda i: (i, 0)),
                  _const_spec((1, D)),
                  _const_spec((1, D)),
                  _const_spec((D, 3 * D)),
                  _const_spec((1, 3 * D)),
                  _const_spec((D, D)),
                  _const_spec((1, D))],
        out_specs=pl.BlockSpec((L_pad, D), lambda i: (i, 0)),
        out_shape=jax.ShapeDtypeStruct(x.shape, x.dtype),
        compiler_params=_cparams(),
    )(x, g.reshape(1, D), b.reshape(1, D),
      qkv_w, qkv_b.reshape(1, 3 * D), proj_w, proj_b.reshape(1, D))


# ----------------------------- Model pieces ----------------------------------

def bilinear_matrix(out_size, in_size):
    """Row-stochastic matrix reproducing F.interpolate(mode='bilinear',
    align_corners=False) along one axis."""
    scale = in_size / out_size
    i = jnp.arange(out_size, dtype=jnp.float32)
    src = (i + 0.5) * scale - 0.5
    src = jnp.clip(src, 0.0, in_size - 1)        # PyTorch clamps at the edges
    i0 = jnp.floor(src).astype(jnp.int32)
    i1 = jnp.minimum(i0 + 1, in_size - 1)
    lam = jnp.clip(src - i0.astype(jnp.float32), 0.0, 1.0)
    A = (jax.nn.one_hot(i0, in_size, dtype=jnp.float32) * (1.0 - lam)[:, None]
         + jax.nn.one_hot(i1, in_size, dtype=jnp.float32) * lam[:, None])
    return A


def process_input(x, cfg):
    """x: (N, 5, T*S, R) -> (N, 5, img, img) via reshape/permute + bilinear."""
    N = x.shape[0]
    C, T, S, R = cfg["in_chans"], cfg["t_raw"], cfg["s_raw"], cfg["r_raw"]
    img = cfg["img_size"]
    x = x.reshape(N, C, T, S, R)
    x = jnp.transpose(x, (0, 1, 2, 4, 3))         # (N, C, T, R, S)
    x = x.reshape(N * C, T, R * S)                # per-image (H_in, W_in)
    A_h = bilinear_matrix(img, T)                 # (img, H_in)
    A_w = bilinear_matrix(img, R * S)             # (img, W_in)
    y = pallas_resize(x, A_h, A_w.T)              # fused A_h @ x @ A_w^T, bf16 out
    return y.reshape(N, C, img, img)


def patch_embed(x, params, cfg):
    """Non-overlapping conv (kernel=stride=P) as an im2col matmul (bf16)."""
    N, C, H, W = x.shape
    P = cfg["patch_size"]
    gh, gw = H // P, W // P
    x = x.reshape(N, C, gh, P, gw, P)
    x = jnp.transpose(x, (0, 2, 4, 1, 3, 5))      # (N, gh, gw, C, P, P)
    x = x.reshape(N * gh * gw, C * P * P)         # already bf16 from the resize
    tok = pallas_linear(x, params["patch_w"], params["patch_b"])
    return tok.reshape(N, gh * gw, cfg["embed_dim"])


def transformer_block(x2, p, cfg, N, L_pad, l_valid):
    """x2: (N*L_pad, D) bf16; each half-block is a single fused kernel."""
    x2 = pallas_attn_block(x2, p["ln1_g"], p["ln1_b"],
                           p["qkv_w"], p["qkv_b"], p["proj_w"], p["proj_b"],
                           N, L_pad, l_valid, cfg["num_heads"])
    x2 = pallas_mlp_block(x2, p["ln2_g"], p["ln2_b"],
                          p["fc1_w"], p["fc1_b"], p["fc2_w"], p["fc2_b"])
    return x2


def pixel_shuffle(x, r):
    """PyTorch nn.PixelShuffle(r): (N, C*r*r, H, W) -> (N, C, H*r, W*r)."""
    N, Cr2, H, W = x.shape
    C = Cr2 // (r * r)
    x = x.reshape(N, C, r, r, H, W)
    x = jnp.transpose(x, (0, 1, 4, 2, 5, 3))      # (N, C, H, r, W, r)
    return x.reshape(N, C, H * r, W * r)


def fwi_forward(params, x, cfg):
    N = x.shape[0]
    D = cfg["embed_dim"]
    gh = gw = cfg["img_size"] // cfg["patch_size"]

    x = process_input(x, cfg)                                 # (N, 5, img, img) bf16
    tok = patch_embed(x, params, cfg)                         # (N, gh*gw, D) bf16

    cls = jnp.broadcast_to(params["cls_token"], (N, 1, D))
    tok = jnp.concatenate([cls, tok], axis=1) + params["pos_embed"]
    L = tok.shape[1]
    # pad token count to a multiple of 8 (masked in attention, dropped at end)
    L_pad = ((L + 7) // 8) * 8
    if L_pad != L:
        tok = jnp.pad(tok, ((0, 0), (0, L_pad - L), (0, 0)))

    x2 = tok.reshape(N * L_pad, D)
    for blk in params["blocks"]:
        x2 = transformer_block(x2, blk, cfg, N, L_pad, L)

    # fused final norm + head linear + sigmoid*6000; the 16-wide head is
    # zero-padded to 128 output columns for lane-dense stores and sliced back.
    head_w = jnp.pad(params["head_w"], ((0, 0), (0, 128 - 16)))
    head_b = jnp.pad(params["head_b"], ((0, 128 - 16),))
    h = pallas_ln_linear(x2, params["norm_g"], params["norm_b"],
                         head_w, head_b, act="sigmoid6000",
                         out_dtype=jnp.float32)               # (N*Lp, 128)
    h = h.reshape(N, L_pad, 128)[:, 1:L, :16]                 # drop cls/pad rows + pad cols
    h = jnp.transpose(h, (0, 2, 1)).reshape(N, 16, gh, gw)
    h = pixel_shuffle(h, 4)                                   # (N, 1, gh*4, gw*4)
    return h[:, :, 1:-1, 1:-1]


# ----------------------------- Parameter init --------------------------------

def init_params(key, cfg):
    D = cfg["embed_dim"]
    C = cfg["in_chans"]
    P = cfg["patch_size"]
    Hm = cfg["mlp_hidden"]
    gh = gw = cfg["img_size"] // cfg["patch_size"]
    L = gh * gw + 1

    def nrm(k, shape, std=0.02):
        return (std * jax.random.normal(k, shape)).astype(jnp.bfloat16)

    keys = jax.random.split(key, 8 + 8 * cfg["depth"])
    ki = iter(keys)

    params = {
        "patch_w": nrm(next(ki), (C * P * P, D)),
        "patch_b": jnp.zeros((D,), jnp.float32),
        "cls_token": nrm(next(ki), (1, 1, D)),
        "pos_embed": nrm(next(ki), (1, L, D)),
        "norm_g": jnp.ones((D,), jnp.float32),
        "norm_b": jnp.zeros((D,), jnp.float32),
        "head_w": nrm(next(ki), (D, 16)),
        "head_b": jnp.zeros((16,), jnp.float32),
        "blocks": [],
    }
    for _ in range(cfg["depth"]):
        params["blocks"].append({
            "ln1_g": jnp.ones((D,), jnp.float32),
            "ln1_b": jnp.zeros((D,), jnp.float32),
            "qkv_w": nrm(next(ki), (D, 3 * D)),
            "qkv_b": jnp.zeros((3 * D,), jnp.float32),
            "proj_w": nrm(next(ki), (D, D)),
            "proj_b": jnp.zeros((D,), jnp.float32),
            "ln2_g": jnp.ones((D,), jnp.float32),
            "ln2_b": jnp.zeros((D,), jnp.float32),
            "fc1_w": nrm(next(ki), (D, Hm)),
            "fc1_b": jnp.zeros((Hm,), jnp.float32),
            "fc2_w": nrm(next(ki), (Hm, D)),
            "fc2_b": jnp.zeros((D,), jnp.float32),
        })
    return params


# --------------------------------- main ---------------------------------------

if __name__ == "__main__":
    # Small config consistent with the module's structure:
    # full model: raw (N,5,250*4,70) -> 288x288 -> 18x18 patches -> 72x72 -> 70x70
    # small     : raw (N,5, 25*4,14) ->  64x64  ->  4x4  patches -> 16x16 -> 14x14
    cfg = dict(
        in_chans=5, t_raw=25, s_raw=4, r_raw=14,
        img_size=64, patch_size=16,
        embed_dim=64, num_heads=4, depth=2, mlp_hidden=128,
    )

    key = jax.random.PRNGKey(0)
    kx, kp = jax.random.split(key)
    x = jax.random.normal(
        kx, (2, cfg["in_chans"], cfg["t_raw"] * cfg["s_raw"], cfg["r_raw"]),
        dtype=jnp.float32)
    params = init_params(kp, cfg)

    fwd = jax.jit(functools.partial(fwi_forward, cfg=cfg))
    out = fwd(params, x)
    out = jax.block_until_ready(out)

    expected_hw = (cfg["img_size"] // cfg["patch_size"]) * 4 - 2
    assert out.shape == (2, 1, expected_hw, expected_hw), out.shape
    assert bool(jnp.all(jnp.isfinite(out)))
    assert bool(jnp.all((out >= 0.0) & (out <= 6000.0)))
    print("KERNEL_OK")
</pallas_src>

<mosaic_0001>
module attributes {stable_mosaic.version = 11 : i64} {
  func.func @k(%arg0: i32, %arg1: memref<8x128xf32, #tpu.memory_space<vmem>>, %arg2: memref<8x128xf32, #tpu.memory_space<vmem>>) attributes {dimension_semantics = [#tpu.dimension_semantics<arbitrary>], iteration_bounds = array<i64: 2>, scalar_prefetch = 0 : i64, scratch_operands = 0 : i64, tpu.core_type = #tpu.core_type<tc>, window_params = [{pipeline_mode = #tpu.pipeline_mode<synchronous>, transform_indices = @transform_0, window_bounds = array<i64: 8, 128>}, {transform_indices = @transform_1, window_bounds = array<i64: 8, 128>}]} {
    %c0 = arith.constant 0 : index
    %c0_0 = arith.constant 0 : index
    %0 = vector.load %arg1[%c0, %c0_0] : memref<8x128xf32, #tpu.memory_space<vmem>>, vector<8x128xf32>
    %cst = arith.constant 1.000000e+00 : f32
    %1 = vector.broadcast %cst : f32 to vector<8x128xf32>
    %2 = arith.addf %0, %1 : vector<8x128xf32>
    %c0_1 = arith.constant 0 : index
    %c0_2 = arith.constant 0 : index
    %3 = vector.load %arg2[%c0_1, %c0_2] : memref<8x128xf32, #tpu.memory_space<vmem>>, vector<8x128xf32>
    tpu.vector_store %arg2[%c0_1, %c0_2], %2 {strides = array<i32>} : memref<8x128xf32, #tpu.memory_space<vmem>>, vector<8x128xf32>,
    return
  }
  func.func @transform_0(%arg0: i32) -> (i32, i32) {
    %c0_i32 = arith.constant 0 : i32
    %c0_i32_0 = arith.constant 0 : i32
    %c0_i32_1 = arith.constant 0 : i32
    return %c0_i32, %c0_i32_0 : i32, i32
  }
  func.func @transform_1(%arg0: i32) -> (i32, i32) {
    %c0_i32 = arith.constant 0 : i32
    %c0_i32_0 = arith.constant 0 : i32
    return %arg0, %c0_i32 : i32, i32
  }
}

module attributes {stable_mosaic.version = 11 : i64} {
  func.func @_resize_kernel(%arg0: i32, %arg1: memref<64x25xf32, #tpu.memory_space<vmem>>, %arg2: memref<56x64xf32, #tpu.memory_space<vmem>>, %arg3: memref<1x25x56xf32, #tpu.memory_space<vmem>>, %arg4: memref<1x64x64xbf16, #tpu.memory_space<vmem>>) attributes {dimension_semantics = [#tpu.dimension_semantics<parallel>], iteration_bounds = array<i64: 10>, scalar_prefetch = 0 : i64, scratch_operands = 0 : i64, tpu.core_type = #tpu.core_type<tc>, window_params = [{pipeline_mode = #tpu.pipeline_mode<synchronous>, transform_indices = @transform_0, window_bounds = array<i64: 64, 25>}, {pipeline_mode = #tpu.pipeline_mode<synchronous>, transform_indices = @transform_1, window_bounds = array<i64: 56, 64>}, {transform_indices = @transform_2, window_bounds = array<i64: 1, 25, 56>}, {transform_indices = @transform_3, window_bounds = array<i64: 1, 64, 64>}]} {
    %c0 = arith.constant 0 : index
    %c0_0 = arith.constant 0 : index
    %0 = vector.load %arg1[%c0, %c0_0] : memref<64x25xf32, #tpu.memory_space<vmem>>, vector<64x25xf32>
    %1 = arith.truncf %0 : vector<64x25xf32> to vector<64x25xbf16>
    %c0_1 = arith.constant 0 : index
    %c0_2 = arith.constant 0 : index
    %2 = vector.load %arg2[%c0_1, %c0_2] : memref<56x64xf32, #tpu.memory_space<vmem>>, vector<56x64xf32>
    %3 = arith.truncf %2 : vector<56x64xf32> to vector<56x64xbf16>
    %c0_3 = arith.constant 0 : index
    %c0_4 = arith.constant 0 : index
    %c0_5 = arith.constant 0 : index
    %4 = vector.load %arg3[%c0_3, %c0_4, %c0_5] : memref<1x25x56xf32, #tpu.memory_space<vmem>>, vector<1x25x56xf32>
    %5 = vector.shape_cast %4 : vector<1x25x56xf32> to vector<25x56xf32>
    %6 = arith.truncf %5 : vector<25x56xf32> to vector<25x56xbf16>
    %cst = arith.constant dense<0.000000e+00> : vector<64x56xf32>
    %7 = tpu.matmul %1, %6, %cst {dimension_numbers = #tpu.dot_dimension_numbers<[1], [0], [0], [1], [0, 0, 1, 1], [], []>} : vector<64x25xbf16>, vector<25x56xbf16>, vector<64x56xf32> -> vector<64x56xf32>
    %8 = arith.truncf %7 : vector<64x56xf32> to vector<64x56xbf16>
    %cst_6 = arith.constant dense<0.000000e+00> : vector<64x64xf32>
    %9 = tpu.matmul %8, %3, %cst_6 {dimension_numbers = #tpu.dot_dimension_numbers<[1], [0], [0], [1], [0, 0, 1, 1], [], []>} : vector<64x56xbf16>, vector<56x64xbf16>, vector<64x64xf32> -> vector<64x64xf32>
    %10 = arith.truncf %9 : vector<64x64xf32> to vector<64x64xbf16>
    %c0_7 = arith.constant 0 : index
    %c0_8 = arith.constant 0 : index
    %c0_9 = arith.constant 0 : index
    %11 = vector.load %arg4[%c0_7, %c0_8, %c0_9] : memref<1x64x64xbf16, #tpu.memory_space<vmem>>, vector<1x64x64xbf16>
    %12 = vector.shape_cast %11 : vector<1x64x64xbf16> to vector<64x64xbf16>
    %13 = vector.shape_cast %10 : vector<64x64xbf16> to vector<1x64x64xbf16>
    tpu.vector_store %arg4[%c0_7, %c0_8, %c0_9], %13 {strides = array<i32>} : memref<1x64x64xbf16, #tpu.memory_space<vmem>>, vector<1x64x64xbf16>,
    return
  }
  func.func @transform_0(%arg0: i32) -> (i32, i32) {
    %c0_i32 = arith.constant 0 : i32
    %c0_i32_0 = arith.constant 0 : i32
    %c0_i32_1 = arith.constant 0 : i32
    return %c0_i32, %c0_i32_0 : i32, i32
  }
  func.func @transform_1(%arg0: i32) -> (i32, i32) {
    %c0_i32 = arith.constant 0 : i32
    %c0_i32_0 = arith.constant 0 : i32
    %c0_i32_1 = arith.constant 0 : i32
    return %c0_i32, %c0_i32_0 : i32, i32
  }
  func.func @transform_2(%arg0: i32) -> (i32, i32, i32) {
    %c0_i32 = arith.constant 0 : i32
    %c0_i32_0 = arith.constant 0 : i32
    %c0_i32_1 = arith.constant 0 : i32
    return %arg0, %c0_i32, %c0_i32_0 : i32, i32, i32
  }
  func.func @transform_3(%arg0: i32) -> (i32, i32, i32) {
    %c0_i32 = arith.constant 0 : i32
    %c0_i32_0 = arith.constant 0 : i32
    %c0_i32_1 = arith.constant 0 : i32
    return %arg0, %c0_i32, %c0_i32_0 : i32, i32, i32
  }
}

module attributes {stable_mosaic.version = 11 : i64} {
  func.func @_linear_kernel(%arg0: i32, %arg1: memref<32x1280xbf16, #tpu.memory_space<vmem>>, %arg2: memref<1280x64xbf16, #tpu.memory_space<vmem>>, %arg3: memref<1x64xf32, #tpu.memory_space<vmem>>, %arg4: memref<32x64xbf16, #tpu.memory_space<vmem>>) attributes {dimension_semantics = [#tpu.dimension_semantics<parallel>], iteration_bounds = array<i64: 1>, scalar_prefetch = 0 : i64, scratch_operands = 0 : i64, tpu.core_type = #tpu.core_type<tc>, window_params = [{transform_indices = @transform_0, window_bounds = array<i64: 32, 1280>}, {pipeline_mode = #tpu.pipeline_mode<synchronous>, transform_indices = @transform_1, window_bounds = array<i64: 1280, 64>}, {pipeline_mode = #tpu.pipeline_mode<synchronous>, transform_indices = @transform_2, window_bounds = array<i64: 1, 64>}, {transform_indices = @transform_3, window_bounds = array<i64: 32, 64>}]} {
    %c0 = arith.constant 0 : index
    %c0_0 = arith.constant 0 : index
    %0 = vector.load %arg1[%c0, %c0_0] : memref<32x1280xbf16, #tpu.memory_space<vmem>>, vector<32x1280xbf16>
    %c0_1 = arith.constant 0 : index
    %c0_2 = arith.constant 0 : index
    %1 = vector.load %arg2[%c0_1, %c0_2] : memref<1280x64xbf16, #tpu.memory_space<vmem>>, vector<1280x64xbf16>
    %cst = arith.constant dense<0.000000e+00> : vector<32x64xf32>
    %2 = tpu.matmul %0, %1, %cst {dimension_numbers = #tpu.dot_dimension_numbers<[1], [0], [0], [1], [0, 0, 1, 1], [], []>} : vector<32x1280xbf16>, vector<1280x64xbf16>, vector<32x64xf32> -> vector<32x64xf32>
    %c0_3 = arith.constant 0 : index
    %c0_4 = arith.constant 0 : index
    %3 = vector.load %arg3[%c0_3, %c0_4] : memref<1x64xf32, #tpu.memory_space<vmem>>, vector<1x64xf32>
    %4 = vector.broadcast %3 : vector<1x64xf32> to vector<32x64xf32>
    %5 = arith.addf %2, %4 : vector<32x64xf32>
    %6 = arith.truncf %5 : vector<32x64xf32> to vector<32x64xbf16>
    %c0_5 = arith.constant 0 : index
    %c0_6 = arith.constant 0 : index
    %7 = vector.load %arg4[%c0_5, %c0_6] : memref<32x64xbf16, #tpu.memory_space<vmem>>, vector<32x64xbf16>
    tpu.vector_store %arg4[%c0_5, %c0_6], %6 {strides = array<i32>} : memref<32x64xbf16, #tpu.memory_space<vmem>>, vector<32x64xbf16>,
    return
  }
  func.func @transform_0(%arg0: i32) -> (i32, i32) {
    %c0_i32 = arith.constant 0 : i32
    %c0_i32_0 = arith.constant 0 : i32
    return %arg0, %c0_i32 : i32, i32
  }
  func.func @transform_1(%arg0: i32) -> (i32, i32) {
    %c0_i32 = arith.constant 0 : i32
    %c0_i32_0 = arith.constant 0 : i32
    %c0_i32_1 = arith.constant 0 : i32
    return %c0_i32, %c0_i32_0 : i32, i32
  }
  func.func @transform_2(%arg0: i32) -> (i32, i32) {
    %c0_i32 = arith.constant 0 : i32
    %c0_i32_0 = arith.constant 0 : i32
    %c0_i32_1 = arith.constant 0 : i32
    return %c0_i32, %c0_i32_0 : i32, i32
  }
  func.func @transform_3(%arg0: i32) -> (i32, i32) {
    %c0_i32 = arith.constant 0 : i32
    %c0_i32_0 = arith.constant 0 : i32
    return %arg0, %c0_i32 : i32, i32
  }
}

module attributes {stable_mosaic.version = 11 : i64} {
  func.func @_attn_block_kernel(%arg0: i32, %arg1: memref<24x64xbf16, #tpu.memory_space<vmem>>, %arg2: memref<1x64xf32, #tpu.memory_space<vmem>>, %arg3: memref<1x64xf32, #tpu.memory_space<vmem>>, %arg4: memref<64x192xbf16, #tpu.memory_space<vmem>>, %arg5: memref<1x192xf32, #tpu.memory_space<vmem>>, %arg6: memref<64x64xbf16, #tpu.memory_space<vmem>>, %arg7: memref<1x64xf32, #tpu.memory_space<vmem>>, %arg8: memref<24x64xbf16, #tpu.memory_space<vmem>>) attributes {dimension_semantics = [#tpu.dimension_semantics<parallel>], iteration_bounds = array<i64: 2>, scalar_prefetch = 0 : i64, scratch_operands = 0 : i64, tpu.core_type = #tpu.core_type<tc>, window_params = [{transform_indices = @transform_0, window_bounds = array<i64: 24, 64>}, {pipeline_mode = #tpu.pipeline_mode<synchronous>, transform_indices = @transform_1, window_bounds = array<i64: 1, 64>}, {pipeline_mode = #tpu.pipeline_mode<synchronous>, transform_indices = @transform_2, window_bounds = array<i64: 1, 64>}, {pipeline_mode = #tpu.pipeline_mode<synchronous>, transform_indices = @transform_3, window_bounds = array<i64: 64, 192>}, {pipeline_mode = #tpu.pipeline_mode<synchronous>, transform_indices = @transform_4, window_bounds = array<i64: 1, 192>}, {pipeline_mode = #tpu.pipeline_mode<synchronous>, transform_indices = @transform_5, window_bounds = array<i64: 64, 64>}, {pipeline_mode = #tpu.pipeline_mode<synchronous>, transform_indices = @transform_6, window_bounds = array<i64: 1, 64>}, {transform_indices = @transform_7, window_bounds = array<i64: 24, 64>}]} {
    %c0 = arith.constant 0 : index
    %c0_0 = arith.constant 0 : index
    %0 = vector.load %arg1[%c0, %c0_0] : memref<24x64xbf16, #tpu.memory_space<vmem>>, vector<24x64xbf16>
    %1 = arith.extf %0 : vector<24x64xbf16> to vector<24x64xf32>
    %cst = arith.constant dense<0.000000e+00> : vector<24xf32>
    %2 = vector.multi_reduction <add>, %1, %cst [1] : vector<24x64xf32> to vector<24xf32>
    %3 = vector.shape_cast %2 : vector<24xf32> to vector<24x1xf32>
    %cst_1 = arith.constant 6.400000e+01 : f32
    %4 = vector.broadcast %cst_1 : f32 to vector<24x1xf32>
    %5 = arith.divf %3, %4 : vector<24x1xf32>
    %6 = vector.broadcast %5 : vector<24x1xf32> to vector<24x64xf32>
    %7 = arith.subf %1, %6 : vector<24x64xf32>
    %8 = arith.mulf %7, %7 : vector<24x64xf32>
    %cst_2 = arith.constant dense<0.000000e+00> : vector<24xf32>
    %9 = vector.multi_reduction <add>, %8, %cst_2 [1] : vector<24x64xf32> to vector<24xf32>
    %10 = vector.shape_cast %9 : vector<24xf32> to vector<24x1xf32>
    %cst_3 = arith.constant 6.400000e+01 : f32
    %11 = vector.broadcast %cst_3 : f32 to vector<24x1xf32>
    %12 = arith.divf %10, %11 : vector<24x1xf32>
    %13 = vector.broadcast %5 : vector<24x1xf32> to vector<24x64xf32>
    %14 = arith.subf %1, %13 : vector<24x64xf32>
    %cst_4 = arith.constant 9.99999997E-7 : f32
    %15 = vector.broadcast %cst_4 : f32 to vector<24x1xf32>
    %16 = arith.addf %12, %15 : vector<24x1xf32>
    %17 = math.rsqrt %16 : vector<24x1xf32>
    %18 = vector.broadcast %17 : vector<24x1xf32> to vector<24x64xf32>
    %19 = arith.mulf %14, %18 : vector<24x64xf32>
    %c0_5 = arith.constant 0 : index
    %c0_6 = arith.constant 0 : index
    %20 = vector.load %arg2[%c0_5, %c0_6] : memref<1x64xf32, #tpu.memory_space<vmem>>, vector<1x64xf32>
    %21 = vector.broadcast %20 : vector<1x64xf32> to vector<24x64xf32>
    %22 = arith.mulf %19, %21 : vector<24x64xf32>
    %c0_7 = arith.constant 0 : index
    %c0_8 = arith.constant 0 : index
    %23 = vector.load %arg3[%c0_7, %c0_8] : memref<1x64xf32, #tpu.memory_space<vmem>>, vector<1x64xf32>
    %24 = vector.broadcast %23 : vector<1x64xf32> to vector<24x64xf32>
    %25 = arith.addf %22, %24 : vector<24x64xf32>
    %26 = arith.truncf %25 : vector<24x64xf32> to vector<24x64xbf16>
    %c0_9 = arith.constant 0 : index
    %c0_10 = arith.constant 0 : index
    %27 = vector.load %arg4[%c0_9, %c0_10] : memref<64x192xbf16, #tpu.memory_space<vmem>>, vector<64x192xbf16>
    %cst_11 = arith.constant dense<0.000000e+00> : vector<24x192xf32>
    %28 = tpu.matmul %26, %27, %cst_11 {dimension_numbers = #tpu.dot_dimension_numbers<[1], [0], [0], [1], [0, 0, 1, 1], [], []>} : vector<24x64xbf16>, vector<64x192xbf16>, vector<24x192xf32> -> vector<24x192xf32>
    %c0_12 = arith.constant 0 : index
    %c0_13 = arith.constant 0 : index
    %29 = vector.load %arg5[%c0_12, %c0_13] : memref<1x192xf32, #tpu.memory_space<vmem>>, vector<1x192xf32>
    %30 = vector.broadcast %29 : vector<1x192xf32> to vector<24x192xf32>
    %31 = arith.addf %28, %30 : vector<24x192xf32>
    %32 = tpu.iota {dimensions = array<i32: 1>} : vector<1x24xi32>
    %c17_i32 = arith.constant 17 : i32
    %33 = vector.broadcast %c17_i32 : i32 to vector<1x24xi32>
    %34 = arith.cmpi slt, %32, %33 : vector<1x24xi32>
    %cst_14 = arith.constant 0.000000e+00 : f32
    %cst_15 = arith.constant -1.000000e+30 : f32
    %35 = vector.broadcast %cst_14 : f32 to vector<1x24xf32>
    %36 = vector.broadcast %cst_15 : f32 to vector<1x24xf32>
    %37 = arith.select %34, %35, %36 : vector<1x24xi1>, vector<1x24xf32>
    %c0_16 = arith.constant 0 : index
    %c0_17 = arith.constant 0 : index
    %38 = vector.load %arg7[%c0_16, %c0_17] : memref<1x64xf32, #tpu.memory_space<vmem>>, vector<1x64xf32>
    %39 = vector.broadcast %38 : vector<1x64xf32> to vector<24x64xf32>
    %40 = arith.addf %1, %39 : vector<24x64xf32>
    %41 = vector.extract_strided_slice %31 {offsets = [0, 0], sizes = [24, 16], strides = [1, 1]} : vector<24x192xf32> to vector<24x16xf32>
    %cst_18 = arith.constant 2.500000e-01 : f32
    %42 = vector.broadcast %cst_18 : f32 to vector<24x16xf32>
    %43 = arith.mulf %41, %42 : vector<24x16xf32>
    %44 = arith.truncf %43 : vector<24x16xf32> to vector<24x16xbf16>
    %45 = vector.extract_strided_slice %31 {offsets = [0, 64], sizes = [24, 16], strides = [1, 1]} : vector<24x192xf32> to vector<24x16xf32>
    %46 = arith.truncf %45 : vector<24x16xf32> to vector<24x16xbf16>
    %47 = vector.extract_strided_slice %31 {offsets = [0, 128], sizes = [24, 16], strides = [1, 1]} : vector<24x192xf32> to vector<24x16xf32>
    %48 = arith.truncf %47 : vector<24x16xf32> to vector<24x16xbf16>
    %cst_19 = arith.constant dense<0.000000e+00> : vector<24x24xf32>
    %49 = tpu.matmul %44, %46, %cst_19 {dimension_numbers = #tpu.dot_dimension_numbers<[1], [1], [0], [0], [0, 0, 1, 0], [], []>} : vector<24x16xbf16>, vector<24x16xbf16>, vector<24x24xf32> -> vector<24x24xf32>
    %50 = vector.broadcast %37 : vector<1x24xf32> to vector<24x24xf32>
    %51 = arith.addf %49, %50 : vector<24x24xf32>
    %cst_20 = arith.constant dense<0xFF800000> : vector<24xf32>
    %52 = vector.multi_reduction <maximumf>, %51, %cst_20 [1] : vector<24x24xf32> to vector<24xf32>
    %53 = vector.shape_cast %52 : vector<24xf32> to vector<24x1xf32>
    %54 = vector.broadcast %53 : vector<24x1xf32> to vector<24x24xf32>
    %55 = arith.subf %51, %54 : vector<24x24xf32>
    %56 = math.exp %55 : vector<24x24xf32>
    %cst_21 = arith.constant dense<0.000000e+00> : vector<24xf32>
    %57 = vector.multi_reduction <add>, %56, %cst_21 [1] : vector<24x24xf32> to vector<24xf32>
    %58 = vector.shape_cast %57 : vector<24xf32> to vector<24x1xf32>
    %59 = tpu.reciprocal %58 {approx = true} : vector<24x1xf32> -> vector<24x1xf32>
    %60 = arith.mulf %58, %59 : vector<24x1xf32>
    %cst_22 = arith.constant 2.000000e+00 : f32
    %61 = vector.broadcast %cst_22 : f32 to vector<24x1xf32>
    %62 = arith.subf %61, %60 : vector<24x1xf32>
    %63 = arith.mulf %59, %62 : vector<24x1xf32>
    %64 = vector.broadcast %63 : vector<24x1xf32> to vector<24x24xf32>
    %65 = arith.mulf %56, %64 : vector<24x24xf32>
    %66 = arith.truncf %65 : vector<24x24xf32> to vector<24x24xbf16>
    %cst_23 = arith.constant dense<0.000000e+00> : vector<24x16xf32>
    %67 = tpu.matmul %66, %48, %cst_23 {dimension_numbers = #tpu.dot_dimension_numbers<[1], [0], [0], [1], [0, 0, 1, 1], [], []>} : vector<24x24xbf16>, vector<24x16xbf16>, vector<24x16xf32> -> vector<24x16xf32>
    %68 = arith.truncf %67 : vector<24x16xf32> to vector<24x16xbf16>
    %c0_24 = arith.constant 0 : index
    %c0_25 = arith.constant 0 : index
    %69 = vector.load %arg6[%c0_24, %c0_25] : memref<64x64xbf16, #tpu.memory_space<vmem>>, vector<16x64xbf16>
    %cst_26 = arith.constant dense<0.000000e+00> : vector<24x64xf32>
    %70 = tpu.matmul %68, %69, %cst_26 {dimension_numbers = #tpu.dot_dimension_numbers<[1], [0], [0], [1], [0, 0, 1, 1], [], []>} : vector<24x16xbf16>, vector<16x64xbf16>, vector<24x64xf32> -> vector<24x64xf32>
    %71 = arith.addf %40, %70 : vector<24x64xf32>
    %72 = vector.extract_strided_slice %31 {offsets = [0, 16], sizes = [24, 16], strides = [1, 1]} : vector<24x192xf32> to vector<24x16xf32>
    %cst_27 = arith.constant 2.500000e-01 : f32
    %73 = vector.broadcast %cst_27 : f32 to vector<24x16xf32>
    %74 = arith.mulf %72, %73 : vector<24x16xf32>
    %75 = arith.truncf %74 : vector<24x16xf32> to vector<24x16xbf16>
    %76 = vector.extract_strided_slice %31 {offsets = [0, 80], sizes = [24, 16], strides = [1, 1]} : vector<24x192xf32> to vector<24x16xf32>
    %77 = arith.truncf %76 : vector<24x16xf32> to vector<24x16xbf16>
    %78 = vector.extract_strided_slice %31 {offsets = [0, 144], sizes = [24, 16], strides = [1, 1]} : vector<24x192xf32> to vector<24x16xf32>
    %79 = arith.truncf %78 : vector<24x16xf32> to vector<24x16xbf16>
    %cst_28 = arith.constant dense<0.000000e+00> : vector<24x24xf32>
    %80 = tpu.matmul %75, %77, %cst_28 {dimension_numbers = #tpu.dot_dimension_numbers<[1], [1], [0], [0], [0, 0, 1, 0], [], []>} : vector<24x16xbf16>, vector<24x16xbf16>, vector<24x24xf32> -> vector<24x24xf32>
    %81 = vector.broadcast %37 : vector<1x24xf32> to vector<24x24xf32>
    %82 = arith.addf %80, %81 : vector<24x24xf32>
    %cst_29 = arith.constant dense<0xFF800000> : vector<24xf32>
    %83 = vector.multi_reduction <maximumf>, %82, %cst_29 [1] : vector<24x24xf32> to vector<24xf32>
    %84 = vector.shape_cast %83 : vector<24xf32> to vector<24x1xf32>
    %85 = vector.broadcast %84 : vector<24x1xf32> to vector<24x24xf32>
    %86 = arith.subf %82, %85 : vector<24x24xf32>
    %87 = math.exp %86 : vector<24x24xf32>
    %cst_30 = arith.constant dense<0.000000e+00> : vector<24xf32>
    %88 = vector.multi_reduction <add>, %87, %cst_30 [1] : vector<24x24xf32> to vector<24xf32>
    %89 = vector.shape_cast %88 : vector<24xf32> to vector<24x1xf32>
    %90 = tpu.reciprocal %89 {approx = true} : vector<24x1xf32> -> vector<24x1xf32>
    %91 = arith.mulf %89, %90 : vector<24x1xf32>
    %cst_31 = arith.constant 2.000000e+00 : f32
    %92 = vector.broadcast %cst_31 : f32 to vector<24x1xf32>
    %93 = arith.subf %92, %91 : vector<24x1xf32>
    %94 = arith.mulf %90, %93 : vector<24x1xf32>
    %95 = vector.broadcast %94 : vector<24x1xf32> to vector<24x24xf32>
    %96 = arith.mulf %87, %95 : vector<24x24xf32>
    %97 = arith.truncf %96 : vector<24x24xf32> to vector<24x24xbf16>
    %cst_32 = arith.constant dense<0.000000e+00> : vector<24x16xf32>
    %98 = tpu.matmul %97, %79, %cst_32 {dimension_numbers = #tpu.dot_dimension_numbers<[1], [0], [0], [1], [0, 0, 1, 1], [], []>} : vector<24x24xbf16>, vector<24x16xbf16>, vector<24x16xf32> -> vector<24x16xf32>
    %99 = arith.truncf %98 : vector<24x16xf32> to vector<24x16xbf16>
    %c16 = arith.constant 16 : index
    %c0_33 = arith.constant 0 : index
    %100 = vector.load %arg6[%c16, %c0_33] : memref<64x64xbf16, #tpu.memory_space<vmem>>, vector<16x64xbf16>
    %cst_34 = arith.constant dense<0.000000e+00> : vector<24x64xf32>
    %101 = tpu.matmul %99, %100, %cst_34 {dimension_numbers = #tpu.dot_dimension_numbers<[1], [0], [0], [1], [0, 0, 1, 1], [], []>} : vector<24x16xbf16>, vector<16x64xbf16>, vector<24x64xf32> -> vector<24x64xf32>
    %102 = arith.addf %71, %101 : vector<24x64xf32>
    %103 = vector.extract_strided_slice %31 {offsets = [0, 32], sizes = [24, 16], strides = [1, 1]} : vector<24x192xf32> to vector<24x16xf32>
    %cst_35 = arith.constant 2.500000e-01 : f32
    %104 = vector.broadcast %cst_35 : f32 to vector<24x16xf32>
    %105 = arith.mulf %103, %104 : vector<24x16xf32>
    %106 = arith.truncf %105 : vector<24x16xf32> to vector<24x16xbf16>
    %107 = vector.extract_strided_slice %31 {offsets = [0, 96], sizes = [24, 16], strides = [1, 1]} : vector<24x192xf32> to vector<24x16xf32>
    %108 = arith.truncf %107 : vector<24x16xf32> to vector<24x16xbf16>
    %109 = vector.extract_strided_slice %31 {offsets = [0, 160], sizes = [24, 16], strides = [1, 1]} : vector<24x192xf32> to vector<24x16xf32>
    %110 = arith.truncf %109 : vector<24x16xf32> to vector<24x16xbf16>
    %cst_36 = arith.constant dense<0.000000e+00> : vector<24x24xf32>
    %111 = tpu.matmul %106, %108, %cst_36 {dimension_numbers = #tpu.dot_dimension_numbers<[1], [1], [0], [0], [0, 0, 1, 0], [], []>} : vector<24x16xbf16>, vector<24x16xbf16>, vector<24x24xf32> -> vector<24x24xf32>
    %112 = vector.broadcast %37 : vector<1x24xf32> to vector<24x24xf32>
    %113 = arith.addf %111, %112 : vector<24x24xf32>
    %cst_37 = arith.constant dense<0xFF800000> : vector<24xf32>
    %114 = vector.multi_reduction <maximumf>, %113, %cst_37 [1] : vector<24x24xf32> to vector<24xf32>
    %115 = vector.shape_cast %114 : vector<24xf32> to vector<24x1xf32>
    %116 = vector.broadcast %115 : vector<24x1xf32> to vector<24x24xf32>
    %117 = arith.subf %113, %116 : vector<24x24xf32>
    %118 = math.exp %117 : vector<24x24xf32>
    %cst_38 = arith.constant dense<0.000000e+00> : vector<24xf32>
    %119 = vector.multi_reduction <add>, %118, %cst_38 [1] : vector<24x24xf32> to vector<24xf32>
    %120 = vector.shape_cast %119 : vector<24xf32> to vector<24x1xf32>
    %121 = tpu.reciprocal %120 {approx = true} : vector<24x1xf32> -> vector<24x1xf32>
    %122 = arith.mulf %120, %121 : vector<24x1xf32>
    %cst_39 = arith.constant 2.000000e+00 : f32
    %123 = vector.broadcast %cst_39 : f32 to vector<24x1xf32>
    %124 = arith.subf %123, %122 : vector<24x1xf32>
    %125 = arith.mulf %121, %124 : vector<24x1xf32>
    %126 = vector.broadcast %125 : vector<24x1xf32> to vector<24x24xf32>
    %127 = arith.mulf %118, %126 : vector<24x24xf32>
    %128 = arith.truncf %127 : vector<24x24xf32> to vector<24x24xbf16>
    %cst_40 = arith.constant dense<0.000000e+00> : vector<24x16xf32>
    %129 = tpu.matmul %128, %110, %cst_40 {dimension_numbers = #tpu.dot_dimension_numbers<[1], [0], [0], [1], [0, 0, 1, 1], [], []>} : vector<24x24xbf16>, vector<24x16xbf16>, vector<24x16xf32> -> vector<24x16xf32>
    %130 = arith.truncf %129 : vector<24x16xf32> to vector<24x16xbf16>
    %c32 = arith.constant 32 : index
    %c0_41 = arith.constant 0 : index
    %131 = vector.load %arg6[%c32, %c0_41] : memref<64x64xbf16, #tpu.memory_space<vmem>>, vector<16x64xbf16>
    %cst_42 = arith.constant dense<0.000000e+00> : vector<24x64xf32>
    %132 = tpu.matmul %130, %131, %cst_42 {dimension_numbers = #tpu.dot_dimension_numbers<[1], [0], [0], [1], [0, 0, 1, 1], [], []>} : vector<24x16xbf16>, vector<16x64xbf16>, vector<24x64xf32> -> vector<24x64xf32>
    %133 = arith.addf %102, %132 : vector<24x64xf32>
    %134 = vector.extract_strided_slice %31 {offsets = [0, 48], sizes = [24, 16], strides = [1, 1]} : vector<24x192xf32> to vector<24x16xf32>
    %cst_43 = arith.constant 2.500000e-01 : f32
    %135 = vector.broadcast %cst_43 : f32 to vector<24x16xf32>
    %136 = arith.mulf %134, %135 : vector<24x16xf32>
    %137 = arith.truncf %136 : vector<24x16xf32> to vector<24x16xbf16>
    %138 = vector.extract_strided_slice %31 {offsets = [0, 112], sizes = [24, 16], strides = [1, 1]} : vector<24x192xf32> to vector<24x16xf32>
    %139 = arith.truncf %138 : vector<24x16xf32> to vector<24x16xbf16>
    %140 = vector.extract_strided_slice %31 {offsets = [0, 176], sizes = [24, 16], strides = [1, 1]} : vector<24x192xf32> to vector<24x16xf32>
    %141 = arith.truncf %140 : vector<24x16xf32> to vector<24x16xbf16>
    %cst_44 = arith.constant dense<0.000000e+00> : vector<24x24xf32>
    %142 = tpu.matmul %137, %139, %cst_44 {dimension_numbers = #tpu.dot_dimension_numbers<[1], [1], [0], [0], [0, 0, 1, 0], [], []>} : vector<24x16xbf16>, vector<24x16xbf16>, vector<24x24xf32> -> vector<24x24xf32>
    %143 = vector.broadcast %37 : vector<1x24xf32> to vector<24x24xf32>
    %144 = arith.addf %142, %143 : vector<24x24xf32>
    %cst_45 = arith.constant dense<0xFF800000> : vector<24xf32>
    %145 = vector.multi_reduction <maximumf>, %144, %cst_45 [1] : vector<24x24xf32> to vector<24xf32>
    %146 = vector.shape_cast %145 : vector<24xf32> to vector<24x1xf32>
    %147 = vector.broadcast %146 : vector<24x1xf32> to vector<24x24xf32>
    %148 = arith.subf %144, %147 : vector<24x24xf32>
    %149 = math.exp %148 : vector<24x24xf32>
    %cst_46 = arith.constant dense<0.000000e+00> : vector<24xf32>
    %150 = vector.multi_reduction <add>, %149, %cst_46 [1] : vector<24x24xf32> to vector<24xf32>
    %151 = vector.shape_cast %150 : vector<24xf32> to vector<24x1xf32>
    %152 = tpu.reciprocal %151 {approx = true} : vector<24x1xf32> -> vector<24x1xf32>
    %153 = arith.mulf %151, %152 : vector<24x1xf32>
    %cst_47 = arith.constant 2.000000e+00 : f32
    %154 = vector.broadcast %cst_47 : f32 to vector<24x1xf32>
    %155 = arith.subf %154, %153 : vector<24x1xf32>
    %156 = arith.mulf %152, %155 : vector<24x1xf32>
    %157 = vector.broadcast %156 : vector<24x1xf32> to vector<24x24xf32>
    %158 = arith.mulf %149, %157 : vector<24x24xf32>
    %159 = arith.truncf %158 : vector<24x24xf32> to vector<24x24xbf16>
    %cst_48 = arith.constant dense<0.000000e+00> : vector<24x16xf32>
    %160 = tpu.matmul %159, %141, %cst_48 {dimension_numbers = #tpu.dot_dimension_numbers<[1], [0], [0], [1], [0, 0, 1, 1], [], []>} : vector<24x24xbf16>, vector<24x16xbf16>, vector<24x16xf32> -> vector<24x16xf32>
    %161 = arith.truncf %160 : vector<24x16xf32> to vector<24x16xbf16>
    %c48 = arith.constant 48 : index
    %c0_49 = arith.constant 0 : index
    %162 = vector.load %arg6[%c48, %c0_49] : memref<64x64xbf16, #tpu.memory_space<vmem>>, vector<16x64xbf16>
    %cst_50 = arith.constant dense<0.000000e+00> : vector<24x64xf32>
    %163 = tpu.matmul %161, %162, %cst_50 {dimension_numbers = #tpu.dot_dimension_numbers<[1], [0], [0], [1], [0, 0, 1, 1], [], []>} : vector<24x16xbf16>, vector<16x64xbf16>, vector<24x64xf32> -> vector<24x64xf32>
    %164 = arith.addf %133, %163 : vector<24x64xf32>
    %165 = arith.truncf %164 : vector<24x64xf32> to vector<24x64xbf16>
    %c0_51 = arith.constant 0 : index
    %c0_52 = arith.constant 0 : index
    %166 = vector.load %arg8[%c0_51, %c0_52] : memref<24x64xbf16, #tpu.memory_space<vmem>>, vector<24x64xbf16>
    tpu.vector_store %arg8[%c0_51, %c0_52], %165 {strides = array<i32>} : memref<24x64xbf16, #tpu.memory_space<vmem>>, vector<24x64xbf16>,
    return
  }
  func.func @transform_0(%arg0: i32) -> (i32, i32) {
    %c0_i32 = arith.constant 0 : i32
    %c0_i32_0 = arith.constant 0 : i32
    return %arg0, %c0_i32 : i32, i32
  }
  func.func @transform_1(%arg0: i32) -> (i32, i32) {
    %c0_i32 = arith.constant 0 : i32
    %c0_i32_0 = arith.constant 0 : i32
    %c0_i32_1 = arith.constant 0 : i32
    return %c0_i32, %c0_i32_0 : i32, i32
  }
  func.func @transform_2(%arg0: i32) -> (i32, i32) {
    %c0_i32 = arith.constant 0 : i32
    %c0_i32_0 = arith.constant 0 : i32
    %c0_i32_1 = arith.constant 0 : i32
    return %c0_i32, %c0_i32_0 : i32, i32
  }
  func.func @transform_3(%arg0: i32) -> (i32, i32) {
    %c0_i32 = arith.constant 0 : i32
    %c0_i32_0 = arith.constant 0 : i32
    %c0_i32_1 = arith.constant 0 : i32
    return %c0_i32, %c0_i32_0 : i32, i32
  }
  func.func @transform_4(%arg0: i32) -> (i32, i32) {
    %c0_i32 = arith.constant 0 : i32
    %c0_i32_0 = arith.constant 0 : i32
    %c0_i32_1 = arith.constant 0 : i32
    return %c0_i32, %c0_i32_0 : i32, i32
  }
  func.func @transform_5(%arg0: i32) -> (i32, i32) {
    %c0_i32 = arith.constant 0 : i32
    %c0_i32_0 = arith.constant 0 : i32
    %c0_i32_1 = arith.constant 0 : i32
    return %c0_i32, %c0_i32_0 : i32, i32
  }
  func.func @transform_6(%arg0: i32) -> (i32, i32) {
    %c0_i32 = arith.constant 0 : i32
    %c0_i32_0 = arith.constant 0 : i32
    %c0_i32_1 = arith.constant 0 : i32
    return %c0_i32, %c0_i32_0 : i32, i32
  }
  func.func @transform_7(%arg0: i32) -> (i32, i32) {
    %c0_i32 = arith.constant 0 : i32
    %c0_i32_0 = arith.constant 0 : i32
    return %arg0, %c0_i32 : i32, i32
  }
}

module attributes {stable_mosaic.version = 11 : i64} {
  func.func @_mlp_block_kernel(%arg0: i32, %arg1: memref<48x64xbf16, #tpu.memory_space<vmem>>, %arg2: memref<1x64xf32, #tpu.memory_space<vmem>>, %arg3: memref<1x64xf32, #tpu.memory_space<vmem>>, %arg4: memref<64x128xbf16, #tpu.memory_space<vmem>>, %arg5: memref<1x128xf32, #tpu.memory_space<vmem>>, %arg6: memref<128x64xbf16, #tpu.memory_space<vmem>>, %arg7: memref<1x64xf32, #tpu.memory_space<vmem>>, %arg8: memref<48x64xbf16, #tpu.memory_space<vmem>>) attributes {dimension_semantics = [#tpu.dimension_semantics<parallel>], iteration_bounds = array<i64: 1>, scalar_prefetch = 0 : i64, scratch_operands = 0 : i64, tpu.core_type = #tpu.core_type<tc>, window_params = [{transform_indices = @transform_0, window_bounds = array<i64: 48, 64>}, {pipeline_mode = #tpu.pipeline_mode<synchronous>, transform_indices = @transform_1, window_bounds = array<i64: 1, 64>}, {pipeline_mode = #tpu.pipeline_mode<synchronous>, transform_indices = @transform_2, window_bounds = array<i64: 1, 64>}, {pipeline_mode = #tpu.pipeline_mode<synchronous>, transform_indices = @transform_3, window_bounds = array<i64: 64, 128>}, {pipeline_mode = #tpu.pipeline_mode<synchronous>, transform_indices = @transform_4, window_bounds = array<i64: 1, 128>}, {pipeline_mode = #tpu.pipeline_mode<synchronous>, transform_indices = @transform_5, window_bounds = array<i64: 128, 64>}, {pipeline_mode = #tpu.pipeline_mode<synchronous>, transform_indices = @transform_6, window_bounds = array<i64: 1, 64>}, {transform_indices = @transform_7, window_bounds = array<i64: 48, 64>}]} {
    %c0 = arith.constant 0 : index
    %c0_0 = arith.constant 0 : index
    %0 = vector.load %arg1[%c0, %c0_0] : memref<48x64xbf16, #tpu.memory_space<vmem>>, vector<48x64xbf16>
    %1 = arith.extf %0 : vector<48x64xbf16> to vector<48x64xf32>
    %cst = arith.constant dense<0.000000e+00> : vector<48xf32>
    %2 = vector.multi_reduction <add>, %1, %cst [1] : vector<48x64xf32> to vector<48xf32>
    %3 = vector.shape_cast %2 : vector<48xf32> to vector<48x1xf32>
    %cst_1 = arith.constant 6.400000e+01 : f32
    %4 = vector.broadcast %cst_1 : f32 to vector<48x1xf32>
    %5 = arith.divf %3, %4 : vector<48x1xf32>
    %6 = vector.broadcast %5 : vector<48x1xf32> to vector<48x64xf32>
    %7 = arith.subf %1, %6 : vector<48x64xf32>
    %8 = arith.mulf %7, %7 : vector<48x64xf32>
    %cst_2 = arith.constant dense<0.000000e+00> : vector<48xf32>
    %9 = vector.multi_reduction <add>, %8, %cst_2 [1] : vector<48x64xf32> to vector<48xf32>
    %10 = vector.shape_cast %9 : vector<48xf32> to vector<48x1xf32>
    %cst_3 = arith.constant 6.400000e+01 : f32
    %11 = vector.broadcast %cst_3 : f32 to vector<48x1xf32>
    %12 = arith.divf %10, %11 : vector<48x1xf32>
    %13 = vector.broadcast %5 : vector<48x1xf32> to vector<48x64xf32>
    %14 = arith.subf %1, %13 : vector<48x64xf32>
    %cst_4 = arith.constant 9.99999997E-7 : f32
    %15 = vector.broadcast %cst_4 : f32 to vector<48x1xf32>
    %16 = arith.addf %12, %15 : vector<48x1xf32>
    %17 = math.rsqrt %16 : vector<48x1xf32>
    %18 = vector.broadcast %17 : vector<48x1xf32> to vector<48x64xf32>
    %19 = arith.mulf %14, %18 : vector<48x64xf32>
    %c0_5 = arith.constant 0 : index
    %c0_6 = arith.constant 0 : index
    %20 = vector.load %arg2[%c0_5, %c0_6] : memref<1x64xf32, #tpu.memory_space<vmem>>, vector<1x64xf32>
    %21 = vector.broadcast %20 : vector<1x64xf32> to vector<48x64xf32>
    %22 = arith.mulf %19, %21 : vector<48x64xf32>
    %c0_7 = arith.constant 0 : index
    %c0_8 = arith.constant 0 : index
    %23 = vector.load %arg3[%c0_7, %c0_8] : memref<1x64xf32, #tpu.memory_space<vmem>>, vector<1x64xf32>
    %24 = vector.broadcast %23 : vector<1x64xf32> to vector<48x64xf32>
    %25 = arith.addf %22, %24 : vector<48x64xf32>
    %26 = arith.truncf %25 : vector<48x64xf32> to vector<48x64xbf16>
    %c0_9 = arith.constant 0 : index
    %c0_10 = arith.constant 0 : index
    %27 = vector.load %arg4[%c0_9, %c0_10] : memref<64x128xbf16, #tpu.memory_space<vmem>>, vector<64x128xbf16>
    %cst_11 = arith.constant dense<0.000000e+00> : vector<48x128xf32>
    %28 = tpu.matmul %26, %27, %cst_11 {dimension_numbers = #tpu.dot_dimension_numbers<[1], [0], [0], [1], [0, 0, 1, 1], [], []>} : vector<48x64xbf16>, vector<64x128xbf16>, vector<48x128xf32> -> vector<48x128xf32>
    %c0_12 = arith.constant 0 : index
    %c0_13 = arith.constant 0 : index
    %29 = vector.load %arg5[%c0_12, %c0_13] : memref<1x128xf32, #tpu.memory_space<vmem>>, vector<1x128xf32>
    %30 = vector.broadcast %29 : vector<1x128xf32> to vector<48x128xf32>
    %31 = arith.addf %28, %30 : vector<48x128xf32>
    %32 = arith.mulf %31, %31 : vector<48x128xf32>
    %33 = arith.mulf %31, %32 : vector<48x128xf32>
    %cst_14 = arith.constant 4.471500e-02 : f32
    %34 = vector.broadcast %cst_14 : f32 to vector<48x128xf32>
    %35 = arith.mulf %34, %33 : vector<48x128xf32>
    %36 = arith.addf %31, %35 : vector<48x128xf32>
    %cst_15 = arith.constant 0.797884583 : f32
    %37 = vector.broadcast %cst_15 : f32 to vector<48x128xf32>
    %38 = arith.mulf %37, %36 : vector<48x128xf32>
    %39 = math.tanh %38 : vector<48x128xf32>
    %cst_16 = arith.constant 1.000000e+00 : f32
    %40 = vector.broadcast %cst_16 : f32 to vector<48x128xf32>
    %41 = arith.addf %40, %39 : vector<48x128xf32>
    %cst_17 = arith.constant 5.000000e-01 : f32
    %42 = vector.broadcast %cst_17 : f32 to vector<48x128xf32>
    %43 = arith.mulf %42, %41 : vector<48x128xf32>
    %44 = arith.mulf %31, %43 : vector<48x128xf32>
    %45 = arith.truncf %44 : vector<48x128xf32> to vector<48x128xbf16>
    %c0_18 = arith.constant 0 : index
    %c0_19 = arith.constant 0 : index
    %46 = vector.load %arg6[%c0_18, %c0_19] : memref<128x64xbf16, #tpu.memory_space<vmem>>, vector<128x64xbf16>
    %cst_20 = arith.constant dense<0.000000e+00> : vector<48x64xf32>
    %47 = tpu.matmul %45, %46, %cst_20 {dimension_numbers = #tpu.dot_dimension_numbers<[1], [0], [0], [1], [0, 0, 1, 1], [], []>} : vector<48x128xbf16>, vector<128x64xbf16>, vector<48x64xf32> -> vector<48x64xf32>
    %c0_21 = arith.constant 0 : index
    %c0_22 = arith.constant 0 : index
    %48 = vector.load %arg7[%c0_21, %c0_22] : memref<1x64xf32, #tpu.memory_space<vmem>>, vector<1x64xf32>
    %49 = vector.broadcast %48 : vector<1x64xf32> to vector<48x64xf32>
    %50 = arith.addf %47, %49 : vector<48x64xf32>
    %51 = arith.addf %1, %50 : vector<48x64xf32>
    %52 = arith.truncf %51 : vector<48x64xf32> to vector<48x64xbf16>
    %c0_23 = arith.constant 0 : index
    %c0_24 = arith.constant 0 : index
    %53 = vector.load %arg8[%c0_23, %c0_24] : memref<48x64xbf16, #tpu.memory_space<vmem>>, vector<48x64xbf16>
    tpu.vector_store %arg8[%c0_23, %c0_24], %52 {strides = array<i32>} : memref<48x64xbf16, #tpu.memory_space<vmem>>, vector<48x64xbf16>,
    return
  }
  func.func @transform_0(%arg0: i32) -> (i32, i32) {
    %c0_i32 = arith.constant 0 : i32
    %c0_i32_0 = arith.constant 0 : i32
    return %arg0, %c0_i32 : i32, i32
  }
  func.func @transform_1(%arg0: i32) -> (i32, i32) {
    %c0_i32 = arith.constant 0 : i32
    %c0_i32_0 = arith.constant 0 : i32
    %c0_i32_1 = arith.constant 0 : i32
    return %c0_i32, %c0_i32_0 : i32, i32
  }
  func.func @transform_2(%arg0: i32) -> (i32, i32) {
    %c0_i32 = arith.constant 0 : i32
    %c0_i32_0 = arith.constant 0 : i32
    %c0_i32_1 = arith.constant 0 : i32
    return %c0_i32, %c0_i32_0 : i32, i32
  }
  func.func @transform_3(%arg0: i32) -> (i32, i32) {
    %c0_i32 = arith.constant 0 : i32
    %c0_i32_0 = arith.constant 0 : i32
    %c0_i32_1 = arith.constant 0 : i32
    return %c0_i32, %c0_i32_0 : i32, i32
  }
  func.func @transform_4(%arg0: i32) -> (i32, i32) {
    %c0_i32 = arith.constant 0 : i32
    %c0_i32_0 = arith.constant 0 : i32
    %c0_i32_1 = arith.constant 0 : i32
    return %c0_i32, %c0_i32_0 : i32, i32
  }
  func.func @transform_5(%arg0: i32) -> (i32, i32) {
    %c0_i32 = arith.constant 0 : i32
    %c0_i32_0 = arith.constant 0 : i32
    %c0_i32_1 = arith.constant 0 : i32
    return %c0_i32, %c0_i32_0 : i32, i32
  }
  func.func @transform_6(%arg0: i32) -> (i32, i32) {
    %c0_i32 = arith.constant 0 : i32
    %c0_i32_0 = arith.constant 0 : i32
    %c0_i32_1 = arith.constant 0 : i32
    return %c0_i32, %c0_i32_0 : i32, i32
  }
  func.func @transform_7(%arg0: i32) -> (i32, i32) {
    %c0_i32 = arith.constant 0 : i32
    %c0_i32_0 = arith.constant 0 : i32
    return %arg0, %c0_i32 : i32, i32
  }
}

module attributes {stable_mosaic.version = 11 : i64} {
  func.func @_ln_linear_kernel(%arg0: i32, %arg1: memref<48x64xbf16, #tpu.memory_space<vmem>>, %arg2: memref<1x64xf32, #tpu.memory_space<vmem>>, %arg3: memref<1x64xf32, #tpu.memory_space<vmem>>, %arg4: memref<64x128xbf16, #tpu.memory_space<vmem>>, %arg5: memref<1x128xf32, #tpu.memory_space<vmem>>, %arg6: memref<48x128xf32, #tpu.memory_space<vmem>>) attributes {dimension_semantics = [#tpu.dimension_semantics<parallel>], iteration_bounds = array<i64: 1>, scalar_prefetch = 0 : i64, scratch_operands = 0 : i64, tpu.core_type = #tpu.core_type<tc>, window_params = [{transform_indices = @transform_0, window_bounds = array<i64: 48, 64>}, {pipeline_mode = #tpu.pipeline_mode<synchronous>, transform_indices = @transform_1, window_bounds = array<i64: 1, 64>}, {pipeline_mode = #tpu.pipeline_mode<synchronous>, transform_indices = @transform_2, window_bounds = array<i64: 1, 64>}, {pipeline_mode = #tpu.pipeline_mode<synchronous>, transform_indices = @transform_3, window_bounds = array<i64: 64, 128>}, {pipeline_mode = #tpu.pipeline_mode<synchronous>, transform_indices = @transform_4, window_bounds = array<i64: 1, 128>}, {transform_indices = @transform_5, window_bounds = array<i64: 48, 128>}]} {
    %c0 = arith.constant 0 : index
    %c0_0 = arith.constant 0 : index
    %0 = vector.load %arg1[%c0, %c0_0] : memref<48x64xbf16, #tpu.memory_space<vmem>>, vector<48x64xbf16>
    %1 = arith.extf %0 : vector<48x64xbf16> to vector<48x64xf32>
    %cst = arith.constant dense<0.000000e+00> : vector<48xf32>
    %2 = vector.multi_reduction <add>, %1, %cst [1] : vector<48x64xf32> to vector<48xf32>
    %3 = vector.shape_cast %2 : vector<48xf32> to vector<48x1xf32>
    %cst_1 = arith.constant 6.400000e+01 : f32
    %4 = vector.broadcast %cst_1 : f32 to vector<48x1xf32>
    %5 = arith.divf %3, %4 : vector<48x1xf32>
    %6 = vector.broadcast %5 : vector<48x1xf32> to vector<48x64xf32>
    %7 = arith.subf %1, %6 : vector<48x64xf32>
    %8 = arith.mulf %7, %7 : vector<48x64xf32>
    %cst_2 = arith.constant dense<0.000000e+00> : vector<48xf32>
    %9 = vector.multi_reduction <add>, %8, %cst_2 [1] : vector<48x64xf32> to vector<48xf32>
    %10 = vector.shape_cast %9 : vector<48xf32> to vector<48x1xf32>
    %cst_3 = arith.constant 6.400000e+01 : f32
    %11 = vector.broadcast %cst_3 : f32 to vector<48x1xf32>
    %12 = arith.divf %10, %11 : vector<48x1xf32>
    %13 = vector.broadcast %5 : vector<48x1xf32> to vector<48x64xf32>
    %14 = arith.subf %1, %13 : vector<48x64xf32>
    %cst_4 = arith.constant 9.99999997E-7 : f32
    %15 = vector.broadcast %cst_4 : f32 to vector<48x1xf32>
    %16 = arith.addf %12, %15 : vector<48x1xf32>
    %17 = math.rsqrt %16 : vector<48x1xf32>
    %18 = vector.broadcast %17 : vector<48x1xf32> to vector<48x64xf32>
    %19 = arith.mulf %14, %18 : vector<48x64xf32>
    %c0_5 = arith.constant 0 : index
    %c0_6 = arith.constant 0 : index
    %20 = vector.load %arg2[%c0_5, %c0_6] : memref<1x64xf32, #tpu.memory_space<vmem>>, vector<1x64xf32>
    %21 = vector.broadcast %20 : vector<1x64xf32> to vector<48x64xf32>
    %22 = arith.mulf %19, %21 : vector<48x64xf32>
    %c0_7 = arith.constant 0 : index
    %c0_8 = arith.constant 0 : index
    %23 = vector.load %arg3[%c0_7, %c0_8] : memref<1x64xf32, #tpu.memory_space<vmem>>, vector<1x64xf32>
    %24 = vector.broadcast %23 : vector<1x64xf32> to vector<48x64xf32>
    %25 = arith.addf %22, %24 : vector<48x64xf32>
    %26 = arith.truncf %25 : vector<48x64xf32> to vector<48x64xbf16>
    %c0_9 = arith.constant 0 : index
    %c0_10 = arith.constant 0 : index
    %27 = vector.load %arg4[%c0_9, %c0_10] : memref<64x128xbf16, #tpu.memory_space<vmem>>, vector<64x128xbf16>
    %cst_11 = arith.constant dense<0.000000e+00> : vector<48x128xf32>
    %28 = tpu.matmul %26, %27, %cst_11 {dimension_numbers = #tpu.dot_dimension_numbers<[1], [0], [0], [1], [0, 0, 1, 1], [], []>} : vector<48x64xbf16>, vector<64x128xbf16>, vector<48x128xf32> -> vector<48x128xf32>
    %c0_12 = arith.constant 0 : index
    %c0_13 = arith.constant 0 : index
    %29 = vector.load %arg5[%c0_12, %c0_13] : memref<1x128xf32, #tpu.memory_space<vmem>>, vector<1x128xf32>
    %30 = vector.broadcast %29 : vector<1x128xf32> to vector<48x128xf32>
    %31 = arith.addf %28, %30 : vector<48x128xf32>
    %32 = arith.negf %31 : vector<48x128xf32>
    %33 = math.exp %32 : vector<48x128xf32>
    %cst_14 = arith.constant 1.000000e+00 : f32
    %34 = vector.broadcast %cst_14 : f32 to vector<48x128xf32>
    %35 = arith.addf %34, %33 : vector<48x128xf32>
    %36 = arith.divf %34, %35 : vector<48x128xf32>
    %cst_15 = arith.constant 6.000000e+03 : f32
    %37 = vector.broadcast %cst_15 : f32 to vector<48x128xf32>
    %38 = arith.mulf %36, %37 : vector<48x128xf32>
    %c0_16 = arith.constant 0 : index
    %c0_17 = arith.constant 0 : index
    %39 = vector.load %arg6[%c0_16, %c0_17] : memref<48x128xf32, #tpu.memory_space<vmem>>, vector<48x128xf32>
    tpu.vector_store %arg6[%c0_16, %c0_17], %38 {strides = array<i32>} : memref<48x128xf32, #tpu.memory_space<vmem>>, vector<48x128xf32>,
    return
  }
  func.func @transform_0(%arg0: i32) -> (i32, i32) {
    %c0_i32 = arith.constant 0 : i32
    %c0_i32_0 = arith.constant 0 : i32
    return %arg0, %c0_i32 : i32, i32
  }
  func.func @transform_1(%arg0: i32) -> (i32, i32) {
    %c0_i32 = arith.constant 0 : i32
    %c0_i32_0 = arith.constant 0 : i32
    %c0_i32_1 = arith.constant 0 : i32
    return %c0_i32, %c0_i32_0 : i32, i32
  }
  func.func @transform_2(%arg0: i32) -> (i32, i32) {
    %c0_i32 = arith.constant 0 : i32
    %c0_i32_0 = arith.constant 0 : i32
    %c0_i32_1 = arith.constant 0 : i32
    return %c0_i32, %c0_i32_0 : i32, i32
  }
  func.func @transform_3(%arg0: i32) -> (i32, i32) {
    %c0_i32 = arith.constant 0 : i32
    %c0_i32_0 = arith.constant 0 : i32
    %c0_i32_1 = arith.constant 0 : i32
    return %c0_i32, %c0_i32_0 : i32, i32
  }
  func.func @transform_4(%arg0: i32) -> (i32, i32) {
    %c0_i32 = arith.constant 0 : i32
    %c0_i32_0 = arith.constant 0 : i32
    %c0_i32_1 = arith.constant 0 : i32
    return %c0_i32, %c0_i32_0 : i32, i32
  }
  func.func @transform_5(%arg0: i32) -> (i32, i32) {
    %c0_i32 = arith.constant 0 : i32
    %c0_i32_0 = arith.constant 0 : i32
    return %arg0, %c0_i32 : i32, i32
  }
}

</mosaic_0001>

<llo_original>
// kernel: tpu_custom_call.1
$region0: #{tpu_custom_call.1}
  #allocation0 [shape = 'u32[]', space=smem, size = 0x4, offset = 0x4, fixed_abs, tag = 'smem constant byte address 0x4 - core index']
  #allocation1 [shape = 'u32[72,128]{1,0:T(1,128)}', space=vmem, size = 0x9000, scoped, tag = 'internal scratch']
  %s0 = inlined_call_operand.hbm [shape: f32[8,128], index: 0, kind: input, shape index: {}]
  %s1 = inlined_call_operand.hbm [shape: f32[16,128], index: 1, kind: output, shape index: {}]
  %s2 = sld [smem:[#allocation0]]
  $region41: #{tpu_custom_call.1} parent=0
    _
  %s4 = ssub.s32 1, %s2
  %s5 = scalar_select 0, %s4, %s2
  $region1: #{tpu_custom_call.1} parent=0
    #allocation2 [shape = 'u8[4096]{0}', space=vmem, size = 0x1000, scoped, tag = 'input window, operand 0, single buffered']
    #allocation3 [shape = 's32[2]{0}', space=sflag, size = 0x8, scoped, tag = 'scoped memory for tpu_custom_call.1']
    #allocation4 [shape = 's32[2]{0}', space=sflag, size = 0x8, scoped, tag = 'scoped memory for tpu_custom_call.1']
    #allocation5 [shape = 'u8[8192]{0}', space=vmem, size = 0x2000, scoped, tag = 'output window, operand 0']
    %6 = vsyncpa [#allocation3], 0
    %7 = vsyncpa [#allocation4], 0
    %s8 = scalar_lea.sflag [#allocation4], 1
    %9 = vsyncpa %s8, 0
    loop: start=0, step=1, limit=4
    $region2: #{tpu_custom_call.1} parent=1 // loop_pre_header
      _
    $region3: #{tpu_custom_call.1} parent=1 // loop_header
      %s11 = sphi 0, %s15
      %p12 = scmp.ge.s32.totalorder %s11, 4
      %s19 = sphi 0, %s19
      %s21 = sphi 0, %s19
      %s22 = sphi 0, %s21
      %s36 = sphi 0, %s22
      %s42 = sphi 0, %s44
      %s45 = sphi 0, %s42
      %s46 = sphi 0, %s45
      %s62 = sphi 0, %s46
    $region4: #{tpu_custom_call.1} parent=1 // loop_header_branch
      %14 = sbr.rel (%p12) target = $region8
    $region5: #{tpu_custom_call.1} parent=1 // loop_body
      %s16 = ssub.s32 %s11, 1
      %s17 = ssub.s32 %s11, 2
      %s18 = sadd.s32 %s11, 1
      %s20 = sadd.s32 %s19, 1
      %p23 = scmp.eq.s32.totalorder %s11, 1
      %p24 = scmp.ne.s32.totalorder %s19, %s21
      %p25 = scmp.eq.s32.totalorder %s11, 0
      %p26 = por %p24, %p25
      %p27 = scmp.ne.s32.totalorder %s19, %s21
      %p28 = scmp.eq.s32.totalorder %s16, 1
      %p29 = por %p27, %p28
      %p30 = scmp.ne.s32.totalorder %s21, %s22
      %p31 = scmp.eq.s32.totalorder %s16, 0
      %p32 = por %p30, %p31
      %p33 = scmp.ne.s32.totalorder %s21, %s22
      %p34 = scmp.eq.s32.totalorder %s17, 1
      %p35 = por %p33, %p34
      %p37 = scmp.ne.s32.totalorder %s22, %s36
      %p38 = scmp.eq.s32.totalorder %s17, 0
      %p39 = por %p37, %p38
      %s40 = ssub.s32 %s11, %s18
      %p41 = scmp.eq.s32.totalorder %s40, 0
      %s43 = sadd.s32 %s42, 1
      %s44 = scalar_select %p41, %s42, %s43
      %p47 = pneg %p41
      %p48 = scmp.eq.s32.totalorder %s11, 1
      %p49 = por %p47, %p48
      %p50 = scmp.ne.s32.totalorder %s42, %s45
      %p51 = scmp.eq.s32.totalorder %s11, 0
      %p52 = por %p50, %p51
      %p53 = scmp.ne.s32.totalorder %s42, %s45
      %p54 = scmp.eq.s32.totalorder %s16, 1
      %p55 = por %p53, %p54
      %p56 = scmp.ne.s32.totalorder %s45, %s46
      %p57 = scmp.eq.s32.totalorder %s16, 0
      %p58 = por %p56, %p57
      %p59 = scmp.ne.s32.totalorder %s45, %s46
      %p60 = scmp.eq.s32.totalorder %s17, 1
      %p61 = por %p59, %p60
      %p63 = scmp.ne.s32.totalorder %s46, %s62
      %p64 = scmp.eq.s32.totalorder %s17, 0
      %p65 = por %p63, %p64
      %p66 = scmp.le.s32.totalorder 1, %s11
      %p67 = scmp.lt.s32.totalorder %s11, 3
      %p68 = pnand %p66, %p67
      %p69 = pneg %p68
      // Predicated region
      $region9: #{tpu_custom_call.1} parent=5 // pred_check
        _
      $region10: #{tpu_custom_call.1} parent=5 // pred_check_branch
        %71 = sbr.rel (%p68) target = $region12
      $region11: #{tpu_custom_call.1} parent=5 // pred_region
        %s72 = ssub.s32 %s11, 1
        // Predicated region
        $region13: #{tpu_custom_call.1} parent=11 // pred_check
          %p73 = pneg %p32
        $region14: #{tpu_custom_call.1} parent=11 // pred_check_branch
          %75 = sbr.rel (%p73) target = $region16
        $region15: #{tpu_custom_call.1} parent=11 // pred_region
          %77 = vsyncadd [#allocation3], 0
          %s79 = sshll.u32 %s0, 4
          %s80 = int_to_ptr.hbm [resolvable:$true] %s79
          %s81 = sshll.u32 [#allocation2], 4
          %s82 = int_to_ptr.vmem [resolvable:$true] %s81
          %84 = dma.hbm_to_vmem [thread:$0]  %s80, 128, %s82, [#allocation3]
        $region16: #{tpu_custom_call.1} parent=11 // pred_fallthru
          _
      $region12: #{tpu_custom_call.1} parent=5 // pred_fallthru
        _
      %p85 = scmp.lt.s32.totalorder %s11, 2
      // Predicated region
      $region17: #{tpu_custom_call.1} parent=5 // pred_check
        %p86 = pneg %p85
      $region18: #{tpu_custom_call.1} parent=5 // pred_check_branch
        %88 = sbr.rel (%p86) target = $region20
      $region19: #{tpu_custom_call.1} parent=5 // pred_region
        _
      $region20: #{tpu_custom_call.1} parent=5 // pred_fallthru
        _
      %p89 = scmp.le.s32.totalorder 1, %s11
      %p90 = scmp.lt.s32.totalorder %s11, 3
      %p91 = pnand %p89, %p90
      %p92 = pneg %p91
      // Predicated region
      $region21: #{tpu_custom_call.1} parent=5 // pred_check
        _
      $region22: #{tpu_custom_call.1} parent=5 // pred_check_branch
        %94 = sbr.rel (%p91) target = $region24
      $region23: #{tpu_custom_call.1} parent=5 // pred_region
        %s95 = ssub.s32 %s11, 1
        // Predicated region
        $region25: #{tpu_custom_call.1} parent=23 // pred_check
          %p96 = pneg %p32
        $region26: #{tpu_custom_call.1} parent=23 // pred_check_branch
          %98 = sbr.rel (%p96) target = $region28
        $region27: #{tpu_custom_call.1} parent=23 // pred_region
          %100 = dma.done [#allocation3], 128
        $region28: #{tpu_custom_call.1} parent=23 // pred_fallthru
          _
        %p101 = pneg %p32
        %p102 = pneg %p29
        %p103 = pneg %p58
        %p104 = pneg %p55
        %s105 = sand.u32 %s45, 1
        %s106 = scalar_lea.sflag [#allocation4], %s105
        %s107 = sand.u32 %s45, 1
        %s108 = smul.addr %s107, 8
        %s109 = scalar_lea.vmem [#allocation5], %s108
        %v110 = vld [vmem:[#allocation2] sm:$0xff]
        %v111 = vadd.f32 %v110, 1.0
        %112 = vst [vmem:[%s109] sm:$0xff] %v111
        %s113 = sand.u32 %s45, 1
        %s114 = scalar_lea.sflag [#allocation4], %s113
        %s115 = sand.u32 %s45, 1
        %s116 = smul.addr %s115, 8
        %s117 = scalar_lea.vmem [#allocation5], %s116
        // Predicated region
        $region29: #{tpu_custom_call.1} parent=23 // pred_check
          %p118 = pneg %p55
        $region30: #{tpu_custom_call.1} parent=23 // pred_check_branch
          %120 = sbr.rel (%p118) target = $region32
        $region31: #{tpu_custom_call.1} parent=23 // pred_region
          %122 = vsyncadd %s114, 0
          %s123 = smul.addr %s16, 8
          %s124 = scalar_lea.hbm %s1, %s123
          %s126 = sshll.u32 %s117, 4
          %s127 = int_to_ptr.vmem [resolvable:$true] %s126
          %s128 = sshll.u32 %s124, 4
          %s129 = int_to_ptr.hbm [resolvable:$true] %s128
          %131 = dma.vmem_to_hbm [thread:$0]  %s127, 128, %s129, %s114
        $region32: #{tpu_custom_call.1} parent=23 // pred_fallthru
          _
      $region24: #{tpu_custom_call.1} parent=5 // pred_fallthru
        _
      %p132 = scmp.le.s32.totalorder 2, %s11
      // Predicated region
      $region33: #{tpu_custom_call.1} parent=5 // pred_check
        %p133 = pneg %p132
      $region34: #{tpu_custom_call.1} parent=5 // pred_check_branch
        %135 = sbr.rel (%p133) target = $region36
      $region35: #{tpu_custom_call.1} parent=5 // pred_region
        %s136 = ssub.s32 %s11, 2
        // Predicated region
        $region37: #{tpu_custom_call.1} parent=35 // pred_check
          %p137 = pneg %p61
        $region38: #{tpu_custom_call.1} parent=35 // pred_check_branch
          %139 = sbr.rel (%p137) target = $region40
        $region39: #{tpu_custom_call.1} parent=35 // pred_region
          %s140 = sand.u32 %s46, 1
          %s141 = scalar_lea.sflag [#allocation4], %s140
          %s142 = sand.u32 %s46, 1
          %s143 = smul.addr %s142, 8
          %s144 = scalar_lea.vmem [#allocation5], %s143
          %146 = dma.done %s141, 128
        $region40: #{tpu_custom_call.1} parent=35 // pred_fallthru
          _
      $region36: #{tpu_custom_call.1} parent=5 // pred_fallthru
        _
    $region6: #{tpu_custom_call.1} parent=1 // loop_footer
      %s15 = sadd.s32 1, %s11
    $region7: #{tpu_custom_call.1} parent=1 // loop_footer_branch
      %10 = sbr.rel target = $region3
    $region8: #{tpu_custom_call.1} parent=1 // loop_exit
      _
    %147 = vsyncpa [#allocation3], 1
    %s148 = scalar_lea.sflag [#allocation3], 1
    %149 = vsyncpa %s148, 1
    %150 = vsyncpa [#allocation4], 1
    %s151 = scalar_lea.sflag [#allocation4], 1
    %152 = vsyncpa %s151, 1

// kernel: fwi_forward.7
$region0: #{fwi_forward.7}
  #allocation0 [shape = 'u32[]', space=smem, size = 0x4, offset = 0x4, fixed_abs, tag = 'smem constant byte address 0x4 - core index']
  #allocation1 [shape = 'u32[72,128]{1,0:T(1,128)}', space=vmem, size = 0x9000, scoped, tag = 'internal scratch']
  %s0 = inlined_call_operand.vmem [shape: f32[64,25], index: 0, kind: input, shape index: {}]
  %s1 = inlined_call_operand.vmem [shape: f32[56,64], index: 1, kind: input, shape index: {}]
  %s2 = inlined_call_operand.vmem [shape: f32[10,25,56], index: 2, kind: input, shape index: {}]
  %s3 = inlined_call_operand.vmem [shape: bf16[10,64,64], index: 3, kind: output, shape index: {}]
  %s4 = sld [smem:[#allocation0]]
  $region45: #{fwi_forward.7} parent=0
    _
  %s6 = ssub.s32 1, %s4
  %s7 = scalar_select 0, %s6, %s4
  loop: start=0, step=1, limit=12
  $region2: #{fwi_forward.7} parent=0 // loop_pre_header
    _
  $region3: #{fwi_forward.7} parent=0 // loop_header
    %s9 = sphi 0, %s13
    %p10 = scmp.ge.s32.totalorder %s9, 12
    %s17 = sphi 0, %s17
    %s19 = sphi 0, %s17
    %s20 = sphi 0, %s19
    %s34 = sphi 0, %s20
    %s38 = sphi 0, %s38
    %s40 = sphi 0, %s38
    %s41 = sphi 0, %s40
    %s55 = sphi 0, %s41
    %s61 = sphi 0, %s63
    %s64 = sphi 0, %s61
    %s65 = sphi 0, %s64
    %s81 = sphi 0, %s65
    %s87 = sphi 0, %s89
    %s90 = sphi 0, %s87
    %s91 = sphi 0, %s90
    %s107 = sphi 0, %s91
  $region4: #{fwi_forward.7} parent=0 // loop_header_branch
    %12 = sbr.rel (%p10) target = $region8
  $region5: #{fwi_forward.7} parent=0 // loop_body
    %s14 = ssub.s32 %s9, 1
    %s15 = ssub.s32 %s9, 2
    %s16 = sadd.s32 %s9, 1
    %s18 = sadd.s32 %s17, 1
    %p21 = scmp.eq.s32.totalorder %s9, 9
    %p22 = scmp.ne.s32.totalorder %s17, %s19
    %p23 = scmp.eq.s32.totalorder %s9, 0
    %p24 = por %p22, %p23
    %p25 = scmp.ne.s32.totalorder %s17, %s19
    %p26 = scmp.eq.s32.totalorder %s14, 9
    %p27 = por %p25, %p26
    %p28 = scmp.ne.s32.totalorder %s19, %s20
    %p29 = scmp.eq.s32.totalorder %s14, 0
    %p30 = por %p28, %p29
    %p31 = scmp.ne.s32.totalorder %s19, %s20
    %p32 = scmp.eq.s32.totalorder %s15, 9
    %p33 = por %p31, %p32
    %p35 = scmp.ne.s32.totalorder %s20, %s34
    %p36 = scmp.eq.s32.totalorder %s15, 0
    %p37 = por %p35, %p36
    %s39 = sadd.s32 %s38, 1
    %p42 = scmp.eq.s32.totalorder %s9, 9
    %p43 = scmp.ne.s32.totalorder %s38, %s40
    %p44 = scmp.eq.s32.totalorder %s9, 0
    %p45 = por %p43, %p44
    %p46 = scmp.ne.s32.totalorder %s38, %s40
    %p47 = scmp.eq.s32.totalorder %s14, 9
    %p48 = por %p46, %p47
    %p49 = scmp.ne.s32.totalorder %s40, %s41
    %p50 = scmp.eq.s32.totalorder %s14, 0
    %p51 = por %p49, %p50
    %p52 = scmp.ne.s32.totalorder %s40, %s41
    %p53 = scmp.eq.s32.totalorder %s15, 9
    %p54 = por %p52, %p53
    %p56 = scmp.ne.s32.totalorder %s41, %s55
    %p57 = scmp.eq.s32.totalorder %s15, 0
    %p58 = por %p56, %p57
    %s59 = ssub.s32 %s9, %s16
    %p60 = scmp.eq.s32.totalorder %s59, 0
    %s62 = sadd.s32 %s61, 1
    %s63 = scalar_select %p60, %s61, %s62
    %p66 = pneg %p60
    %p67 = scmp.eq.s32.totalorder %s9, 9
    %p68 = por %p66, %p67
    %p69 = scmp.ne.s32.totalorder %s61, %s64
    %p70 = scmp.eq.s32.totalorder %s9, 0
    %p71 = por %p69, %p70
    %p72 = scmp.ne.s32.totalorder %s61, %s64
    %p73 = scmp.eq.s32.totalorder %s14, 9
    %p74 = por %p72, %p73
    %p75 = scmp.ne.s32.totalorder %s64, %s65
    %p76 = scmp.eq.s32.totalorder %s14, 0
    %p77 = por %p75, %p76
    %p78 = scmp.ne.s32.totalorder %s64, %s65
    %p79 = scmp.eq.s32.totalorder %s15, 9
    %p80 = por %p78, %p79
    %p82 = scmp.ne.s32.totalorder %s65, %s81
    %p83 = scmp.eq.s32.totalorder %s15, 0
    %p84 = por %p82, %p83
    %s85 = ssub.s32 %s9, %s16
    %p86 = scmp.eq.s32.totalorder %s85, 0
    %s88 = sadd.s32 %s87, 1
    %s89 = scalar_select %p86, %s87, %s88
    %p92 = pneg %p86
    %p93 = scmp.eq.s32.totalorder %s9, 9
    %p94 = por %p92, %p93
    %p95 = scmp.ne.s32.totalorder %s87, %s90
    %p96 = scmp.eq.s32.totalorder %s9, 0
    %p97 = por %p95, %p96
    %p98 = scmp.ne.s32.totalorder %s87, %s90
    %p99 = scmp.eq.s32.totalorder %s14, 9
    %p100 = por %p98, %p99
    %p101 = scmp.ne.s32.totalorder %s90, %s91
    %p102 = scmp.eq.s32.totalorder %s14, 0
    %p103 = por %p101, %p102
    %p104 = scmp.ne.s32.totalorder %s90, %s91
    %p105 = scmp.eq.s32.totalorder %s15, 9
    %p106 = por %p104, %p105
    %p108 = scmp.ne.s32.totalorder %s91, %s107
    %p109 = scmp.eq.s32.totalorder %s15, 0
    %p110 = por %p108, %p109
    %p111 = scmp.le.s32.totalorder 1, %s9
    %p112 = scmp.lt.s32.totalorder %s9, 11
    %p113 = pnand %p111, %p112
    %p114 = pneg %p113
    // Predicated region
    $region9: #{fwi_forward.7} parent=5 // pred_check
      _
    $region10: #{fwi_forward.7} parent=5 // pred_check_branch
      %116 = sbr.rel (%p113) target = $region12
    $region11: #{fwi_forward.7} parent=5 // pred_region
      %s117 = ssub.s32 %s9, 1
      // Predicated region
      $region13: #{fwi_forward.7} parent=11 // pred_check
        %p118 = pneg %p30
      $region14: #{fwi_forward.7} parent=11 // pred_check_branch
        %120 = sbr.rel (%p118) target = $region16
      $region15: #{fwi_forward.7} parent=11 // pred_region
        _
      $region16: #{fwi_forward.7} parent=11 // pred_fallthru
        _
      // Predicated region
      $region17: #{fwi_forward.7} parent=11 // pred_check
        %p121 = pneg %p51
      $region18: #{fwi_forward.7} parent=11 // pred_check_branch
        %123 = sbr.rel (%p121) target = $region20
      $region19: #{fwi_forward.7} parent=11 // pred_region
        _
      $region20: #{fwi_forward.7} parent=11 // pred_fallthru
        _
    $region12: #{fwi_forward.7} parent=5 // pred_fallthru
      _
    %p124 = scmp.lt.s32.totalorder %s9, 10
    // Predicated region
    $region21: #{fwi_forward.7} parent=5 // pred_check
      %p125 = pneg %p124
    $region22: #{fwi_forward.7} parent=5 // pred_check_branch
      %127 = sbr.rel (%p125) target = $region24
    $region23: #{fwi_forward.7} parent=5 // pred_region
      // Predicated region
      $region25: #{fwi_forward.7} parent=23 // pred_check
        %p128 = pneg %p71
      $region26: #{fwi_forward.7} parent=23 // pred_check_branch
        %130 = sbr.rel (%p128) target = $region28
      $region27: #{fwi_forward.7} parent=23 // pred_region
        %p131 = scmp.lt.s32.totalorder %s9, 9
        %s132 = scalar_select %p131, %s9, 9
        %s133 = smul.addr %s132, 4
        %s134 = smul.addr %s133, 8
        %s135 = scalar_lea.vmem %s2, %s134
      $region28: #{fwi_forward.7} parent=23 // pred_fallthru
        _
    $region24: #{fwi_forward.7} parent=5 // pred_fallthru
      _
    %p136 = scmp.le.s32.totalorder 1, %s9
    %p137 = scmp.lt.s32.totalorder %s9, 11
    %p138 = pnand %p136, %p137
    %p139 = pneg %p138
    // Predicated region
    $region29: #{fwi_forward.7} parent=5 // pred_check
      _
    $region30: #{fwi_forward.7} parent=5 // pred_check_branch
      %141 = sbr.rel (%p138) target = $region32
    $region31: #{fwi_forward.7} parent=5 // pred_region
      %s142 = ssub.s32 %s9, 1
      %p143 = pneg %p30
      %p144 = pneg %p27
      %p145 = pneg %p51
      %p146 = pneg %p48
      %p147 = scmp.lt.s32.totalorder %s14, 9
      %s148 = scalar_select %p147, %s14, 9
      %s149 = smul.addr %s148, 4
      %s150 = smul.addr %s149, 8
      %s151 = scalar_lea.vmem %s2, %s150
      %p152 = pneg %p77
      %p153 = pneg %p74
      %p154 = pneg %p103
      %p155 = pneg %p100
      %p156 = scmp.lt.s32.totalorder %s14, 9
      %s157 = scalar_select %p156, %s14, 9
      %s158 = smul.addr %s157, 8
      %s159 = smul.addr %s158, 4
      %s160 = scalar_lea.vmem %s3, %s159
      %p161 = scmp.lt.s32.totalorder %s14, 9
      %s162 = scalar_select %p161, %s14, 9
      %s163 = smul.addr %s162, 4
      %s164 = smul.addr %s163, 8
      %s165 = scalar_lea.vmem %s2, %s164
      %p166 = scmp.lt.s32.totalorder %s14, 9
      %s167 = scalar_select %p166, %s14, 9
      %s168 = smul.addr %s167, 8
      %s169 = smul.addr %s168, 4
      %s170 = scalar_lea.vmem %s3, %s169
      %v172 = vld [vmem:[%s0] sm:$0xff]
      %v173 = vld [vmem:[%s0 + $0x8] sm:$0xff]
      %v174 = vld [vmem:[%s0 + $0x10] sm:$0xff]
      %v175 = vld [vmem:[%s0 + $0x18] sm:$0xff]
      %v176 = vld [vmem:[%s0 + $0x20] sm:$0xff]
      %v177 = vld [vmem:[%s0 + $0x28] sm:$0xff]
      %v178 = vld [vmem:[%s0 + $0x30] sm:$0xff]
      %v179 = vld [vmem:[%s0 + $0x38] sm:$0xff]
      %v180 = vpack.c.bf16 %v173, %v172
      %v181 = vpack.c.bf16 %v175, %v174
      %v182 = vpack.c.bf16 %v177, %v176
      %v183 = vpack.c.bf16 %v179, %v178
      %v184 = vld [vmem:[%s1] sm:$0xff]
      %v185 = vld [vmem:[%s1 + $0x8] sm:$0xff]
      %v186 = vld [vmem:[%s1 + $0x10] sm:$0xff]
      %v187 = vld [vmem:[%s1 + $0x18] sm:$0xff]
      %v188 = vld [vmem:[%s1 + $0x20] sm:$0xff]
      %v189 = vld [vmem:[%s1 + $0x28] sm:$0xff]
      %v190 = vld [vmem:[%s1 + $0x30] sm:$0xff]
      %v191 = vpack.c.bf16 %v185, %v184
      %v192 = vpack.c.bf16 %v187, %v186
      %v193 = vpack.c.bf16 %v189, %v188
      %v194 = vpack.c.bf16 %v190, %v190
      %v195 = vld [vmem:[%s165] sm:$0xff]
      %v196 = vld [vmem:[%s165 + $0x8] sm:$0xff]
      %v197 = vld [vmem:[%s165 + $0x10] sm:$0xff]
      %v198 = vld [vmem:[%s165 + $0x18] sm:$0x1]
      %v199 = vpack.c.bf16 %v196, %v195
      %v200 = vpack.c.bf16 %v198, %v197
      %vm201 = vcmask 203776
      %v203 = vsel %vm201, %v180, 0
      %v206 = vsel %vm201, %v181, 0
      %v209 = vsel %vm201, %v182, 0
      %v212 = vsel %vm201, %v183, 0
      %vm214 = vcmask 1043456
      %vm215 = vcmask 1044480
      %v216 = vsel %vm214, 4294967295, 65535
      %v217 = vsel %vm215, %v216, 0
      %v219 = vand.u32 %v200, %v217
      %221 = vmatpush.bf16.msra.mxu0 0
      %222 = vmatpush.bf16.msra.mxu0 0
      %223 = vmatpush.bf16.msra.mxu0 0
      %224 = vmatpush.bf16.msra.mxu0 0
      %225 = vmatpush.bf16.msra.mxu0 0
      %226 = vmatpush.bf16.msra.mxu0 0
      %227 = vmatpush.bf16.msra.mxu0 %v219
      %228 = vmatpush.bf16.msra.mxu0 %v199
      %229 = vmatmul.bf16.gmra.mxu0 %v203
      %v230 = vpop.f32.mrf.mxu0
      %v231 = vadd.f32 0.0, %v230
      %v232 = vpop.f32.mrf.mxu0
      %v233 = vadd.f32 0.0, %v232
      %234 = vmatmul.bf16.gmra.mxu0 %v206
      %v235 = vpop.f32.mrf.mxu0
      %v236 = vadd.f32 0.0, %v235
      %v237 = vpop.f32.mrf.mxu0
      %v238 = vadd.f32 0.0, %v237
      %239 = vmatmul.bf16.gmra.mxu0 %v209
      %v240 = vpop.f32.mrf.mxu0
      %v241 = vadd.f32 0.0, %v240
      %v242 = vpop.f32.mrf.mxu0
      %v243 = vadd.f32 0.0, %v242
      %244 = vmatmul.bf16.gmra.mxu0 %v212
      %v245 = vpop.f32.mrf.mxu0
      %v246 = vadd.f32 0.0, %v245
      %v247 = vpop.f32.mrf.mxu0
      %v248 = vadd.f32 0.0, %v247
      %249 = vdwg.mxu0
      %v250 = vpack.c.bf16 %v233, %v231
      %v251 = vpack.c.bf16 %v238, %v236
      %v252 = vpack.c.bf16 %v243, %v241
      %v253 = vpack.c.bf16 %v248, %v246
      %vm254 = vcmask 457728
      %v256 = vsel %vm254, %v250, 0
      %v259 = vsel %vm254, %v251, 0
      %v262 = vsel %vm254, %v252, 0
      %v265 = vsel %vm254, %v253, 0
      %v268 = vsel %vm214, %v194, 0
      %270 = vmatpush.bf16.msra.mxu0 0
      %271 = vmatpush.bf16.msra.mxu0 0
      %272 = vmatpush.bf16.msra.mxu0 0
      %273 = vmatpush.bf16.msra.mxu0 0
      %274 = vmatpush.bf16.msra.mxu0 %v268
      %275 = vmatpush.bf16.msra.mxu0 %v193
      %276 = vmatpush.bf16.msra.mxu0 %v192
      %277 = vmatpush.bf16.msra.mxu0 %v191
      %278 = vmatmul.bf16.gmra.mxu0 %v256
      %v279 = vpop.f32.mrf.mxu0
      %v280 = vadd.f32 0.0, %v279
      %v281 = vpop.f32.mrf.mxu0
      %v282 = vadd.f32 0.0, %v281
      %283 = vmatmul.bf16.gmra.mxu0 %v259
      %v284 = vpop.f32.mrf.mxu0
      %v285 = vadd.f32 0.0, %v284
      %v286 = vpop.f32.mrf.mxu0
      %v287 = vadd.f32 0.0, %v286
      %288 = vmatmul.bf16.gmra.mxu0 %v262
      %v289 = vpop.f32.mrf.mxu0
      %v290 = vadd.f32 0.0, %v289
      %v291 = vpop.f32.mrf.mxu0
      %v292 = vadd.f32 0.0, %v291
      %293 = vmatmul.bf16.gmra.mxu0 %v265
      %v294 = vpop.f32.mrf.mxu0
      %v295 = vadd.f32 0.0, %v294
      %v296 = vpop.f32.mrf.mxu0
      %v297 = vadd.f32 0.0, %v296
      %298 = vdwg.mxu0
      %v299 = vpack.c.bf16 %v280, %v280
      %v300 = vpack.c.bf16 %v282, %v282
      %v301 = vpack.c.bf16 %v285, %v285
      %v302 = vpack.c.bf16 %v287, %v287
      %v303 = vpack.c.bf16 %v290, %v290
      %v304 = vpack.c.bf16 %v292, %v292
      %v305 = vpack.c.bf16 %v295, %v295
      %v306 = vpack.c.bf16 %v297, %v297
      %vm307 = vcmask 519168
      %308 = vst.msk [vmem:[%s170] sm:$0xf] %vm307, %v299
      %309 = vst.msk [vmem:[%s170 + $0x4] sm:$0xf] %vm307, %v300
      %310 = vst.msk [vmem:[%s170 + $0x8] sm:$0xf] %vm307, %v301
      %311 = vst.msk [vmem:[%s170 + $0xc] sm:$0xf] %vm307, %v302
      %312 = vst.msk [vmem:[%s170 + $0x10] sm:$0xf] %vm307, %v303
      %313 = vst.msk [vmem:[%s170 + $0x14] sm:$0xf] %vm307, %v304
      %314 = vst.msk [vmem:[%s170 + $0x18] sm:$0xf] %vm307, %v305
      %315 = vst.msk [vmem:[%s170 + $0x1c] sm:$0xf] %vm307, %v306
      %p316 = scmp.lt.s32.totalorder %s14, 9
      %s317 = scalar_select %p316, %s14, 9
      %s318 = smul.addr %s317, 8
      %s319 = smul.addr %s318, 4
      %s320 = scalar_lea.vmem %s3, %s319
      // Predicated region
      $region33: #{fwi_forward.7} parent=31 // pred_check
        %p321 = pneg %p100
      $region34: #{fwi_forward.7} parent=31 // pred_check_branch
        %323 = sbr.rel (%p321) target = $region36
      $region35: #{fwi_forward.7} parent=31 // pred_region
        _
      $region36: #{fwi_forward.7} parent=31 // pred_fallthru
        _
    $region32: #{fwi_forward.7} parent=5 // pred_fallthru
      _
    %p324 = scmp.le.s32.totalorder 2, %s9
    // Predicated region
    $region37: #{fwi_forward.7} parent=5 // pred_check
      %p325 = pneg %p324
    $region38: #{fwi_forward.7} parent=5 // pred_check_branch
      %327 = sbr.rel (%p325) target = $region40
    $region39: #{fwi_forward.7} parent=5 // pred_region
      %s328 = ssub.s32 %s9, 2
      // Predicated region
      $region41: #{fwi_forward.7} parent=39 // pred_check
        %p329 = pneg %p106
      $region42: #{fwi_forward.7} parent=39 // pred_check_branch
        %331 = sbr.rel (%p329) target = $region44
      $region43: #{fwi_forward.7} parent=39 // pred_region
        %p332 = scmp.lt.s32.totalorder %s15, 9
        %s333 = scalar_select %p332, %s15, 9
        %s334 = smul.addr %s333, 8
        %s335 = smul.addr %s334, 4
        %s336 = scalar_lea.vmem %s3, %s335
      $region44: #{fwi_forward.7} parent=39 // pred_fallthru
        _
    $region40: #{fwi_forward.7} parent=5 // pred_fallthru
      _
  $region6: #{fwi_forward.7} parent=0 // loop_footer
    %s13 = sadd.s32 1, %s9
  $region7: #{fwi_forward.7} parent=0 // loop_footer_branch
    %8 = sbr.rel target = $region3
  $region8: #{fwi_forward.7} parent=0 // loop_exit
    _

// kernel: fwi_forward.8
$region0: #{fwi_forward.8}
  #allocation0 [shape = 'u32[]', space=smem, size = 0x4, offset = 0x4, fixed_abs, tag = 'smem constant byte address 0x4 - core index']
  #allocation1 [shape = 'u32[72,128]{1,0:T(1,128)}', space=vmem, size = 0x9000, scoped, tag = 'internal scratch']
  %s0 = inlined_call_operand.vmem [shape: bf16[32,1280], index: 0, kind: input, shape index: {}]
  %s1 = inlined_call_operand.vmem [shape: bf16[1280,64], index: 1, kind: input, shape index: {}]
  %s2 = inlined_call_operand.vmem [shape: f32[1,64], index: 2, kind: input, shape index: {}]
  %s3 = inlined_call_operand.vmem [shape: bf16[32,64], index: 3, kind: output, shape index: {}]
  %s4 = sld [smem:[#allocation0]]
  $region22: #{fwi_forward.8} parent=0
    _
  %s6 = ssub.s32 1, %s4
  %s7 = scalar_select 0, %s6, %s4
  // Predicated region
  $region2: #{fwi_forward.8} parent=0 // pred_check
    _
  $region3: #{fwi_forward.8} parent=0 // pred_check_branch
    %9 = sbr.rel (0) target = $region5
  $region4: #{fwi_forward.8} parent=0 // pred_region
    _
  $region5: #{fwi_forward.8} parent=0 // pred_fallthru
    _
  // Predicated region
  $region6: #{fwi_forward.8} parent=0 // pred_check
    _
  $region7: #{fwi_forward.8} parent=0 // pred_check_branch
    %11 = sbr.rel (0) target = $region9
  $region8: #{fwi_forward.8} parent=0 // pred_region
    _
  $region9: #{fwi_forward.8} parent=0 // pred_fallthru
    _
  // Predicated region
  $region10: #{fwi_forward.8} parent=0 // pred_check
    _
  $region11: #{fwi_forward.8} parent=0 // pred_check_branch
    %13 = sbr.rel (0) target = $region13
  $region12: #{fwi_forward.8} parent=0 // pred_region
    _
  $region13: #{fwi_forward.8} parent=0 // pred_fallthru
    _
  %v14 = vld [vmem:[%s0] sm:$0xff]
  %v15 = vld [vmem:[%s0 + $0x8] sm:$0xff]
  %v16 = vld [vmem:[%s0 + $0x10] sm:$0xff]
  %v17 = vld [vmem:[%s0 + $0x18] sm:$0xff]
  %v18 = vld [vmem:[%s0 + $0x20] sm:$0xff]
  %v19 = vld [vmem:[%s0 + $0x28] sm:$0xff]
  %v20 = vld [vmem:[%s0 + $0x30] sm:$0xff]
  %v21 = vld [vmem:[%s0 + $0x38] sm:$0xff]
  %v22 = vld [vmem:[%s0 + $0x40] sm:$0xff]
  %v23 = vld [vmem:[%s0 + $0x48] sm:$0xff]
  %v24 = vld [vmem:[%s0 + $0x50] sm:$0xff]
  %v25 = vld [vmem:[%s0 + $0x58] sm:$0xff]
  %v26 = vld [vmem:[%s0 + $0x60] sm:$0xff]
  %v27 = vld [vmem:[%s0 + $0x68] sm:$0xff]
  %v28 = vld [vmem:[%s0 + $0x70] sm:$0xff]
  %v29 = vld [vmem:[%s0 + $0x78] sm:$0xff]
  %v30 = vld [vmem:[%s0 + $0x80] sm:$0xff]
  %v31 = vld [vmem:[%s0 + $0x88] sm:$0xff]
  %v32 = vld [vmem:[%s0 + $0x90] sm:$0xff]
  %v33 = vld [vmem:[%s0 + $0x98] sm:$0xff]
  %v34 = vld [vmem:[%s1] sm:$0xf]
  %v35 = vld [vmem:[%s1 + $0x4] sm:$0xf]
  %v36 = vld [vmem:[%s1 + $0x8] sm:$0xf]
  %v37 = vld [vmem:[%s1 + $0xc] sm:$0xf]
  %v38 = vld [vmem:[%s1 + $0x10] sm:$0xf]
  %v39 = vld [vmem:[%s1 + $0x14] sm:$0xf]
  %v40 = vld [vmem:[%s1 + $0x18] sm:$0xf]
  %v41 = vld [vmem:[%s1 + $0x1c] sm:$0xf]
  %v42 = vld [vmem:[%s1 + $0x20] sm:$0xf]
  %v43 = vld [vmem:[%s1 + $0x24] sm:$0xf]
  %v44 = vld [vmem:[%s1 + $0x28] sm:$0xf]
  %v45 = vld [vmem:[%s1 + $0x2c] sm:$0xf]
  %v46 = vld [vmem:[%s1 + $0x30] sm:$0xf]
  %v47 = vld [vmem:[%s1 + $0x34] sm:$0xf]
  %v48 = vld [vmem:[%s1 + $0x38] sm:$0xf]
  %v49 = vld [vmem:[%s1 + $0x3c] sm:$0xf]
  %v50 = vld [vmem:[%s1 + $0x40] sm:$0xf]
  %v51 = vld [vmem:[%s1 + $0x44] sm:$0xf]
  %v52 = vld [vmem:[%s1 + $0x48] sm:$0xf]
  %v53 = vld [vmem:[%s1 + $0x4c] sm:$0xf]
  %v54 = vld [vmem:[%s1 + $0x50] sm:$0xf]
  %v55 = vld [vmem:[%s1 + $0x54] sm:$0xf]
  %v56 = vld [vmem:[%s1 + $0x58] sm:$0xf]
  %v57 = vld [vmem:[%s1 + $0x5c] sm:$0xf]
  %v58 = vld [vmem:[%s1 + $0x60] sm:$0xf]
  %v59 = vld [vmem:[%s1 + $0x64] sm:$0xf]
  %v60 = vld [vmem:[%s1 + $0x68] sm:$0xf]
  %v61 = vld [vmem:[%s1 + $0x6c] sm:$0xf]
  %v62 = vld [vmem:[%s1 + $0x70] sm:$0xf]
  %v63 = vld [vmem:[%s1 + $0x74] sm:$0xf]
  %v64 = vld [vmem:[%s1 + $0x78] sm:$0xf]
  %v65 = vld [vmem:[%s1 + $0x7c] sm:$0xf]
  %v66 = vld [vmem:[%s1 + $0x80] sm:$0xf]
  %v67 = vld [vmem:[%s1 + $0x84] sm:$0xf]
  %v68 = vld [vmem:[%s1 + $0x88] sm:$0xf]
  %v69 = vld [vmem:[%s1 + $0x8c] sm:$0xf]
  %v70 = vld [vmem:[%s1 + $0x90] sm:$0xf]
  %v71 = vld [vmem:[%s1 + $0x94] sm:$0xf]
  %v72 = vld [vmem:[%s1 + $0x98] sm:$0xf]
  %v73 = vld [vmem:[%s1 + $0x9c] sm:$0xf]
  %v74 = vld [vmem:[%s1 + $0xa0] sm:$0xf]
  %v75 = vld [vmem:[%s1 + $0xa4] sm:$0xf]
  %v76 = vld [vmem:[%s1 + $0xa8] sm:$0xf]
  %v77 = vld [vmem:[%s1 + $0xac] sm:$0xf]
  %v78 = vld [vmem:[%s1 + $0xb0] sm:$0xf]
  %v79 = vld [vmem:[%s1 + $0xb4] sm:$0xf]
  %v80 = vld [vmem:[%s1 + $0xb8] sm:$0xf]
  %v81 = vld [vmem:[%s1 + $0xbc] sm:$0xf]
  %v82 = vld [vmem:[%s1 + $0xc0] sm:$0xf]
  %v83 = vld [vmem:[%s1 + $0xc4] sm:$0xf]
  %v84 = vld [vmem:[%s1 + $0xc8] sm:$0xf]
  %v85 = vld [vmem:[%s1 + $0xcc] sm:$0xf]
  %v86 = vld [vmem:[%s1 + $0xd0] sm:$0xf]
  %v87 = vld [vmem:[%s1 + $0xd4] sm:$0xf]
  %v88 = vld [vmem:[%s1 + $0xd8] sm:$0xf]
  %v89 = vld [vmem:[%s1 + $0xdc] sm:$0xf]
  %v90 = vld [vmem:[%s1 + $0xe0] sm:$0xf]
  %v91 = vld [vmem:[%s1 + $0xe4] sm:$0xf]
  %v92 = vld [vmem:[%s1 + $0xe8] sm:$0xf]
  %v93 = vld [vmem:[%s1 + $0xec] sm:$0xf]
  %v94 = vld [vmem:[%s1 + $0xf0] sm:$0xf]
  %v95 = vld [vmem:[%s1 + $0xf4] sm:$0xf]
  %v96 = vld [vmem:[%s1 + $0xf8] sm:$0xf]
  %v97 = vld [vmem:[%s1 + $0xfc] sm:$0xf]
  %v98 = vld [vmem:[%s1 + $0x100] sm:$0xf]
  %v99 = vld [vmem:[%s1 + $0x104] sm:$0xf]
  %v100 = vld [vmem:[%s1 + $0x108] sm:$0xf]
  %v101 = vld [vmem:[%s1 + $0x10c] sm:$0xf]
  %v102 = vld [vmem:[%s1 + $0x110] sm:$0xf]
  %v103 = vld [vmem:[%s1 + $0x114] sm:$0xf]
  %v104 = vld [vmem:[%s1 + $0x118] sm:$0xf]
  %v105 = vld [vmem:[%s1 + $0x11c] sm:$0xf]
  %v106 = vld [vmem:[%s1 + $0x120] sm:$0xf]
  %v107 = vld [vmem:[%s1 + $0x124] sm:$0xf]
  %v108 = vld [vmem:[%s1 + $0x128] sm:$0xf]
  %v109 = vld [vmem:[%s1 + $0x12c] sm:$0xf]
  %v110 = vld [vmem:[%s1 + $0x130] sm:$0xf]
  %v111 = vld [vmem:[%s1 + $0x134] sm:$0xf]
  %v112 = vld [vmem:[%s1 + $0x138] sm:$0xf]
  %v113 = vld [vmem:[%s1 + $0x13c] sm:$0xf]
  %v114 = vld [vmem:[%s1 + $0x140] sm:$0xf]
  %v115 = vld [vmem:[%s1 + $0x144] sm:$0xf]
  %v116 = vld [vmem:[%s1 + $0x148] sm:$0xf]
  %v117 = vld [vmem:[%s1 + $0x14c] sm:$0xf]
  %v118 = vld [vmem:[%s1 + $0x150] sm:$0xf]
  %v119 = vld [vmem:[%s1 + $0x154] sm:$0xf]
  %v120 = vld [vmem:[%s1 + $0x158] sm:$0xf]
  %v121 = vld [vmem:[%s1 + $0x15c] sm:$0xf]
  %v122 = vld [vmem:[%s1 + $0x160] sm:$0xf]
  %v123 = vld [vmem:[%s1 + $0x164] sm:$0xf]
  %v124 = vld [vmem:[%s1 + $0x168] sm:$0xf]
  %v125 = vld [vmem:[%s1 + $0x16c] sm:$0xf]
  %v126 = vld [vmem:[%s1 + $0x170] sm:$0xf]
  %v127 = vld [vmem:[%s1 + $0x174] sm:$0xf]
  %v128 = vld [vmem:[%s1 + $0x178] sm:$0xf]
  %v129 = vld [vmem:[%s1 + $0x17c] sm:$0xf]
  %v130 = vld [vmem:[%s1 + $0x180] sm:$0xf]
  %v131 = vld [vmem:[%s1 + $0x184] sm:$0xf]
  %v132 = vld [vmem:[%s1 + $0x188] sm:$0xf]
  %v133 = vld [vmem:[%s1 + $0x18c] sm:$0xf]
  %v134 = vld [vmem:[%s1 + $0x190] sm:$0xf]
  %v135 = vld [vmem:[%s1 + $0x194] sm:$0xf]
  %v136 = vld [vmem:[%s1 + $0x198] sm:$0xf]
  %v137 = vld [vmem:[%s1 + $0x19c] sm:$0xf]
  %v138 = vld [vmem:[%s1 + $0x1a0] sm:$0xf]
  %v139 = vld [vmem:[%s1 + $0x1a4] sm:$0xf]
  %v140 = vld [vmem:[%s1 + $0x1a8] sm:$0xf]
  %v141 = vld [vmem:[%s1 + $0x1ac] sm:$0xf]
  %v142 = vld [vmem:[%s1 + $0x1b0] sm:$0xf]
  %v143 = vld [vmem:[%s1 + $0x1b4] sm:$0xf]
  %v144 = vld [vmem:[%s1 + $0x1b8] sm:$0xf]
  %v145 = vld [vmem:[%s1 + $0x1bc] sm:$0xf]
  %v146 = vld [vmem:[%s1 + $0x1c0] sm:$0xf]
  %v147 = vld [vmem:[%s1 + $0x1c4] sm:$0xf]
  %v148 = vld [vmem:[%s1 + $0x1c8] sm:$0xf]
  %v149 = vld [vmem:[%s1 + $0x1cc] sm:$0xf]
  %v150 = vld [vmem:[%s1 + $0x1d0] sm:$0xf]
  %v151 = vld [vmem:[%s1 + $0x1d4] sm:$0xf]
  %v152 = vld [vmem:[%s1 + $0x1d8] sm:$0xf]
  %v153 = vld [vmem:[%s1 + $0x1dc] sm:$0xf]
  %v154 = vld [vmem:[%s1 + $0x1e0] sm:$0xf]
  %v155 = vld [vmem:[%s1 + $0x1e4] sm:$0xf]
  %v156 = vld [vmem:[%s1 + $0x1e8] sm:$0xf]
  %v157 = vld [vmem:[%s1 + $0x1ec] sm:$0xf]
  %v158 = vld [vmem:[%s1 + $0x1f0] sm:$0xf]
  %v159 = vld [vmem:[%s1 + $0x1f4] sm:$0xf]
  %v160 = vld [vmem:[%s1 + $0x1f8] sm:$0xf]
  %v161 = vld [vmem:[%s1 + $0x1fc] sm:$0xf]
  %v162 = vld [vmem:[%s1 + $0x200] sm:$0xf]
  %v163 = vld [vmem:[%s1 + $0x204] sm:$0xf]
  %v164 = vld [vmem:[%s1 + $0x208] sm:$0xf]
  %v165 = vld [vmem:[%s1 + $0x20c] sm:$0xf]
  %v166 = vld [vmem:[%s1 + $0x210] sm:$0xf]
  %v167 = vld [vmem:[%s1 + $0x214] sm:$0xf]
  %v168 = vld [vmem:[%s1 + $0x218] sm:$0xf]
  %v169 = vld [vmem:[%s1 + $0x21c] sm:$0xf]
  %v170 = vld [vmem:[%s1 + $0x220] sm:$0xf]
  %v171 = vld [vmem:[%s1 + $0x224] sm:$0xf]
  %v172 = vld [vmem:[%s1 + $0x228] sm:$0xf]
  %v173 = vld [vmem:[%s1 + $0x22c] sm:$0xf]
  %v174 = vld [vmem:[%s1 + $0x230] sm:$0xf]
  %v175 = vld [vmem:[%s1 + $0x234] sm:$0xf]
  %v176 = vld [vmem:[%s1 + $0x238] sm:$0xf]
  %v177 = vld [vmem:[%s1 + $0x23c] sm:$0xf]
  %v178 = vld [vmem:[%s1 + $0x240] sm:$0xf]
  %v179 = vld [vmem:[%s1 + $0x244] sm:$0xf]
  %v180 = vld [vmem:[%s1 + $0x248] sm:$0xf]
  %v181 = vld [vmem:[%s1 + $0x24c] sm:$0xf]
  %v182 = vld [vmem:[%s1 + $0x250] sm:$0xf]
  %v183 = vld [vmem:[%s1 + $0x254] sm:$0xf]
  %v184 = vld [vmem:[%s1 + $0x258] sm:$0xf]
  %v185 = vld [vmem:[%s1 + $0x25c] sm:$0xf]
  %v186 = vld [vmem:[%s1 + $0x260] sm:$0xf]
  %v187 = vld [vmem:[%s1 + $0x264] sm:$0xf]
  %v188 = vld [vmem:[%s1 + $0x268] sm:$0xf]
  %v189 = vld [vmem:[%s1 + $0x26c] sm:$0xf]
  %v190 = vld [vmem:[%s1 + $0x270] sm:$0xf]
  %v191 = vld [vmem:[%s1 + $0x274] sm:$0xf]
  %v192 = vld [vmem:[%s1 + $0x278] sm:$0xf]
  %v193 = vld [vmem:[%s1 + $0x27c] sm:$0xf]
  %v194 = vld [vmem:[%s2] sm:$0x1]
  %v196 = vperm.slane %v194, 0
  %v218 = vunpack.c.l.b16 %v14
  %v219 = vunpack.c.h.b16 %v14
  %v220 = vunpack.c.l.b16 %v15
  %v221 = vunpack.c.h.b16 %v15
  %v222 = vunpack.c.l.b16 %v16
  %v223 = vunpack.c.h.b16 %v16
  %v224 = vunpack.c.l.b16 %v17
  %v225 = vunpack.c.h.b16 %v17
  %v226 = vunpack.c.l.b16 %v18
  %v227 = vunpack.c.h.b16 %v18
  %v228 = vunpack.c.l.b16 %v19
  %v229 = vunpack.c.h.b16 %v19
  %v230 = vunpack.c.l.b16 %v20
  %v231 = vunpack.c.h.b16 %v20
  %v232 = vunpack.c.l.b16 %v21
  %v233 = vunpack.c.h.b16 %v21
  %v234 = vunpack.c.l.b16 %v22
  %v235 = vunpack.c.h.b16 %v22
  %v236 = vunpack.c.l.b16 %v23
  %v237 = vunpack.c.h.b16 %v23
  %v238 = vunpack.c.l.b16 %v24
  %v239 = vunpack.c.h.b16 %v24
  %v240 = vunpack.c.l.b16 %v25
  %v241 = vunpack.c.h.b16 %v25
  %v242 = vunpack.c.l.b16 %v26
  %v243 = vunpack.c.h.b16 %v26
  %v244 = vunpack.c.l.b16 %v27
  %v245 = vunpack.c.h.b16 %v27
  %v246 = vunpack.c.l.b16 %v28
  %v247 = vunpack.c.h.b16 %v28
  %v248 = vunpack.c.l.b16 %v29
  %v249 = vunpack.c.h.b16 %v29
  %v250 = vunpack.c.l.b16 %v30
  %v251 = vunpack.c.h.b16 %v30
  %v252 = vunpack.c.l.b16 %v31
  %v253 = vunpack.c.h.b16 %v31
  %v254 = vunpack.c.l.b16 %v32
  %v255 = vunpack.c.h.b16 %v32
  %v256 = vunpack.c.l.b16 %v33
  %v257 = vunpack.c.h.b16 %v33
  %v258 = vpack.c.b16 %v228, %v218
  %v259 = vpack.c.b16 %v229, %v219
  %v260 = vpack.c.b16 %v230, %v220
  %v261 = vpack.c.b16 %v231, %v221
  %v262 = vpack.c.b16 %v232, %v222
  %v263 = vpack.c.b16 %v233, %v223
  %v264 = vpack.c.b16 %v234, %v224
  %v265 = vpack.c.b16 %v235, %v225
  %v266 = vpack.c.b16 %v236, %v226
  %v267 = vpack.c.b16 %v237, %v227
  %v268 = vpack.c.b16 %v248, %v238
  %v269 = vpack.c.b16 %v249, %v239
  %v270 = vpack.c.b16 %v250, %v240
  %v271 = vpack.c.b16 %v251, %v241
  %v272 = vpack.c.b16 %v252, %v242
  %v273 = vpack.c.b16 %v253, %v243
  %v274 = vpack.c.b16 %v254, %v244
  %v275 = vpack.c.b16 %v255, %v245
  %v276 = vpack.c.b16 %v256, %v246
  %v277 = vpack.c.b16 %v257, %v247
  %v458 = vunpack.c.l.b16 %v34
  %v459 = vunpack.c.l.b16 %v35
  %v460 = vunpack.c.l.b16 %v36
  %v461 = vunpack.c.l.b16 %v37
  %v462 = vunpack.c.l.b16 %v38
  %v463 = vunpack.c.l.b16 %v39
  %v464 = vunpack.c.l.b16 %v40
  %v465 = vunpack.c.l.b16 %v41
  %v466 = vunpack.c.l.b16 %v42
  %v467 = vunpack.c.l.b16 %v43
  %v468 = vunpack.c.l.b16 %v44
  %v469 = vunpack.c.l.b16 %v45
  %v470 = vunpack.c.l.b16 %v46
  %v471 = vunpack.c.l.b16 %v47
  %v472 = vunpack.c.l.b16 %v48
  %v473 = vunpack.c.l.b16 %v49
  %v474 = vunpack.c.l.b16 %v50
  %v475 = vunpack.c.l.b16 %v51
  %v476 = vunpack.c.l.b16 %v52
  %v477 = vunpack.c.l.b16 %v53
  %v478 = vunpack.c.l.b16 %v54
  %v479 = vunpack.c.l.b16 %v55
  %v480 = vunpack.c.l.b16 %v56
  %v481 = vunpack.c.l.b16 %v57
  %v482 = vunpack.c.l.b16 %v58
  %v483 = vunpack.c.l.b16 %v59
  %v484 = vunpack.c.l.b16 %v60
  %v485 = vunpack.c.l.b16 %v61
  %v486 = vunpack.c.l.b16 %v62
  %v487 = vunpack.c.l.b16 %v63
  %v488 = vunpack.c.l.b16 %v64
  %v489 = vunpack.c.l.b16 %v65
  %v490 = vunpack.c.l.b16 %v66
  %v491 = vunpack.c.l.b16 %v67
  %v492 = vunpack.c.l.b16 %v68
  %v493 = vunpack.c.l.b16 %v69
  %v494 = vunpack.c.l.b16 %v70
  %v495 = vunpack.c.l.b16 %v71
  %v496 = vunpack.c.l.b16 %v72
  %v497 = vunpack.c.l.b16 %v73
  %v498 = vunpack.c.l.b16 %v74
  %v499 = vunpack.c.l.b16 %v75
  %v500 = vunpack.c.l.b16 %v76
  %v501 = vunpack.c.l.b16 %v77
  %v502 = vunpack.c.l.b16 %v78
  %v503 = vunpack.c.l.b16 %v79
  %v504 = vunpack.c.l.b16 %v80
  %v505 = vunpack.c.l.b16 %v81
  %v506 = vunpack.c.l.b16 %v82
  %v507 = vunpack.c.l.b16 %v83
  %v508 = vunpack.c.l.b16 %v84
  %v509 = vunpack.c.l.b16 %v85
  %v510 = vunpack.c.l.b16 %v86
  %v511 = vunpack.c.l.b16 %v87
  %v512 = vunpack.c.l.b16 %v88
  %v513 = vunpack.c.l.b16 %v89
  %v514 = vunpack.c.l.b16 %v90
  %v515 = vunpack.c.l.b16 %v91
  %v516 = vunpack.c.l.b16 %v92
  %v517 = vunpack.c.l.b16 %v93
  %v518 = vunpack.c.l.b16 %v94
  %v519 = vunpack.c.l.b16 %v95
  %v520 = vunpack.c.l.b16 %v96
  %v521 = vunpack.c.l.b16 %v97
  %v522 = vunpack.c.l.b16 %v98
  %v523 = vunpack.c.l.b16 %v99
  %v524 = vunpack.c.l.b16 %v100
  %v525 = vunpack.c.l.b16 %v101
  %v526 = vunpack.c.l.b16 %v102
  %v527 = vunpack.c.l.b16 %v103
  %v528 = vunpack.c.l.b16 %v104
  %v529 = vunpack.c.l.b16 %v105
  %v530 = vunpack.c.l.b16 %v106
  %v531 = vunpack.c.l.b16 %v107
  %v532 = vunpack.c.l.b16 %v108
  %v533 = vunpack.c.l.b16 %v109
  %v534 = vunpack.c.l.b16 %v110
  %v535 = vunpack.c.l.b16 %v111
  %v536 = vunpack.c.l.b16 %v112
  %v537 = vunpack.c.l.b16 %v113
  %v538 = vunpack.c.l.b16 %v114
  %v539 = vunpack.c.l.b16 %v115
  %v540 = vunpack.c.l.b16 %v116
  %v541 = vunpack.c.l.b16 %v117
  %v542 = vunpack.c.l.b16 %v118
  %v543 = vunpack.c.l.b16 %v119
  %v544 = vunpack.c.l.b16 %v120
  %v545 = vunpack.c.l.b16 %v121
  %v546 = vunpack.c.l.b16 %v122
  %v547 = vunpack.c.l.b16 %v123
  %v548 = vunpack.c.l.b16 %v124
  %v549 = vunpack.c.l.b16 %v125
  %v550 = vunpack.c.l.b16 %v126
  %v551 = vunpack.c.l.b16 %v127
  %v552 = vunpack.c.l.b16 %v128
  %v553 = vunpack.c.l.b16 %v129
  %v554 = vunpack.c.l.b16 %v130
  %v555 = vunpack.c.l.b16 %v131
  %v556 = vunpack.c.l.b16 %v132
  %v557 = vunpack.c.l.b16 %v133
  %v558 = vunpack.c.l.b16 %v134
  %v559 = vunpack.c.l.b16 %v135
  %v560 = vunpack.c.l.b16 %v136
  %v561 = vunpack.c.l.b16 %v137
  %v562 = vunpack.c.l.b16 %v138
  %v563 = vunpack.c.l.b16 %v139
  %v564 = vunpack.c.l.b16 %v140
  %v565 = vunpack.c.l.b16 %v141
  %v566 = vunpack.c.l.b16 %v142
  %v567 = vunpack.c.l.b16 %v143
  %v568 = vunpack.c.l.b16 %v144
  %v569 = vunpack.c.l.b16 %v145
  %v570 = vunpack.c.l.b16 %v146
  %v571 = vunpack.c.l.b16 %v147
  %v572 = vunpack.c.l.b16 %v148
  %v573 = vunpack.c.l.b16 %v149
  %v574 = vunpack.c.l.b16 %v150
  %v575 = vunpack.c.l.b16 %v151
  %v576 = vunpack.c.l.b16 %v152
  %v577 = vunpack.c.l.b16 %v153
  %v578 = vunpack.c.l.b16 %v154
  %v579 = vunpack.c.l.b16 %v155
  %v580 = vunpack.c.l.b16 %v156
  %v581 = vunpack.c.l.b16 %v157
  %v582 = vunpack.c.l.b16 %v158
  %v583 = vunpack.c.l.b16 %v159
  %v584 = vunpack.c.l.b16 %v160
  %v585 = vunpack.c.l.b16 %v161
  %v586 = vunpack.c.l.b16 %v162
  %v587 = vunpack.c.l.b16 %v163
  %v588 = vunpack.c.l.b16 %v164
  %v589 = vunpack.c.l.b16 %v165
  %v590 = vunpack.c.l.b16 %v166
  %v591 = vunpack.c.l.b16 %v167
  %v592 = vunpack.c.l.b16 %v168
  %v593 = vunpack.c.l.b16 %v169
  %v594 = vunpack.c.l.b16 %v170
  %v595 = vunpack.c.l.b16 %v171
  %v596 = vunpack.c.l.b16 %v172
  %v597 = vunpack.c.l.b16 %v173
  %v598 = vunpack.c.l.b16 %v174
  %v599 = vunpack.c.l.b16 %v175
  %v600 = vunpack.c.l.b16 %v176
  %v601 = vunpack.c.l.b16 %v177
  %v602 = vunpack.c.l.b16 %v178
  %v603 = vunpack.c.l.b16 %v179
  %v604 = vunpack.c.l.b16 %v180
  %v605 = vunpack.c.l.b16 %v181
  %v606 = vunpack.c.l.b16 %v182
  %v607 = vunpack.c.l.b16 %v183
  %v608 = vunpack.c.l.b16 %v184
  %v609 = vunpack.c.l.b16 %v185
  %v610 = vunpack.c.l.b16 %v186
  %v611 = vunpack.c.l.b16 %v187
  %v612 = vunpack.c.l.b16 %v188
  %v613 = vunpack.c.l.b16 %v189
  %v614 = vunpack.c.l.b16 %v190
  %v615 = vunpack.c.l.b16 %v191
  %v616 = vunpack.c.l.b16 %v192
  %v617 = vunpack.c.l.b16 %v193
  %v618 = vpack.c.b16 %v459, %v458
  %v619 = vpack.c.b16 %v461, %v460
  %v620 = vpack.c.b16 %v463, %v462
  %v621 = vpack.c.b16 %v465, %v464
  %v622 = vpack.c.b16 %v467, %v466
  %v623 = vpack.c.b16 %v469, %v468
  %v624 = vpack.c.b16 %v471, %v470
  %v625 = vpack.c.b16 %v473, %v472
  %v626 = vpack.c.b16 %v475, %v474
  %v627 = vpack.c.b16 %v477, %v476
  %v628 = vpack.c.b16 %v479, %v478
  %v629 = vpack.c.b16 %v481, %v480
  %v630 = vpack.c.b16 %v483, %v482
  %v631 = vpack.c.b16 %v485, %v484
  %v632 = vpack.c.b16 %v487, %v486
  %v633 = vpack.c.b16 %v489, %v488
  %v634 = vpack.c.b16 %v491, %v490
  %v635 = vpack.c.b16 %v493, %v492
  %v636 = vpack.c.b16 %v495, %v494
  %v637 = vpack.c.b16 %v497, %v496
  %v638 = vpack.c.b16 %v499, %v498
  %v639 = vpack.c.b16 %v501, %v500
  %v640 = vpack.c.b16 %v503, %v502
  %v641 = vpack.c.b16 %v505, %v504
  %v642 = vpack.c.b16 %v507, %v506
  %v643 = vpack.c.b16 %v509, %v508
  %v644 = vpack.c.b16 %v511, %v510
  %v645 = vpack.c.b16 %v513, %v512
  %v646 = vpack.c.b16 %v515, %v514
  %v647 = vpack.c.b16 %v517, %v516
  %v648 = vpack.c.b16 %v519, %v518
  %v649 = vpack.c.b16 %v521, %v520
  %v650 = vpack.c.b16 %v523, %v522
  %v651 = vpack.c.b16 %v525, %v524
  %v652 = vpack.c.b16 %v527, %v526
  %v653 = vpack.c.b16 %v529, %v528
  %v654 = vpack.c.b16 %v531, %v530
  %v655 = vpack.c.b16 %v533, %v532
  %v656 = vpack.c.b16 %v535, %v534
  %v657 = vpack.c.b16 %v537, %v536
  %v658 = vpack.c.b16 %v539, %v538
  %v659 = vpack.c.b16 %v541, %v540
  %v660 = vpack.c.b16 %v543, %v542
  %v661 = vpack.c.b16 %v545, %v544
  %v662 = vpack.c.b16 %v547, %v546
  %v663 = vpack.c.b16 %v549, %v548
  %v664 = vpack.c.b16 %v551, %v550
  %v665 = vpack.c.b16 %v553, %v552
  %v666 = vpack.c.b16 %v555, %v554
  %v667 = vpack.c.b16 %v557, %v556
  %v668 = vpack.c.b16 %v559, %v558
  %v669 = vpack.c.b16 %v561, %v560
  %v670 = vpack.c.b16 %v563, %v562
  %v671 = vpack.c.b16 %v565, %v564
  %v672 = vpack.c.b16 %v567, %v566
  %v673 = vpack.c.b16 %v569, %v568
  %v674 = vpack.c.b16 %v571, %v570
  %v675 = vpack.c.b16 %v573, %v572
  %v676 = vpack.c.b16 %v575, %v574
  %v677 = vpack.c.b16 %v577, %v576
  %v678 = vpack.c.b16 %v579, %v578
  %v679 = vpack.c.b16 %v581, %v580
  %v680 = vpack.c.b16 %v583, %v582
  %v681 = vpack.c.b16 %v585, %v584
  %v682 = vpack.c.b16 %v587, %v586
  %v683 = vpack.c.b16 %v589, %v588
  %v684 = vpack.c.b16 %v591, %v590
  %v685 = vpack.c.b16 %v593, %v592
  %v686 = vpack.c.b16 %v595, %v594
  %v687 = vpack.c.b16 %v597, %v596
  %v688 = vpack.c.b16 %v599, %v598
  %v689 = vpack.c.b16 %v601, %v600
  %v690 = vpack.c.b16 %v603, %v602
  %v691 = vpack.c.b16 %v605, %v604
  %v692 = vpack.c.b16 %v607, %v606
  %v693 = vpack.c.b16 %v609, %v608
  %v694 = vpack.c.b16 %v611, %v610
  %v695 = vpack.c.b16 %v613, %v612
  %v696 = vpack.c.b16 %v615, %v614
  %v697 = vpack.c.b16 %v617, %v616
  %778 = vmatpush.bf16.msra.mxu0 %v625
  %779 = vmatpush.bf16.msra.mxu0 %v624
  %780 = vmatpush.bf16.msra.mxu0 %v623
  %781 = vmatpush.bf16.msra.mxu0 %v622
  %782 = vmatpush.bf16.msra.mxu0 %v621
  %783 = vmatpush.bf16.msra.mxu0 %v620
  %784 = vmatpush.bf16.msra.mxu0 %v619
  %785 = vmatpush.bf16.msra.mxu0 %v618
  %786 = vmatmul.bf16.gmra.mxu0 %v258
  %v787 = vpop.f32.mrf.mxu0
  %v788 = vadd.f32 %v196, %v787
  %v789 = vpop.f32.mrf.mxu0
  %v790 = vadd.f32 %v196, %v789
  %791 = vmatmul.bf16.gmra.mxu0 %v268
  %v792 = vpop.f32.mrf.mxu0
  %v793 = vadd.f32 %v196, %v792
  %v794 = vpop.f32.mrf.mxu0
  %v795 = vadd.f32 %v196, %v794
  %796 = vdwg.mxu0
  %797 = vmatpush.bf16.msra.mxu0 %v633
  %798 = vmatpush.bf16.msra.mxu0 %v632
  %799 = vmatpush.bf16.msra.mxu0 %v631
  %800 = vmatpush.bf16.msra.mxu0 %v630
  %801 = vmatpush.bf16.msra.mxu0 %v629
  %802 = vmatpush.bf16.msra.mxu0 %v628
  %803 = vmatpush.bf16.msra.mxu0 %v627
  %804 = vmatpush.bf16.msra.mxu0 %v626
  %805 = vmatmul.bf16.gmra.mxu0 %v259
  %v806 = vpop.f32.mrf.mxu0
  %v807 = vadd.f32 %v788, %v806
  %v808 = vpop.f32.mrf.mxu0
  %v809 = vadd.f32 %v790, %v808
  %810 = vmatmul.bf16.gmra.mxu0 %v269
  %v811 = vpop.f32.mrf.mxu0
  %v812 = vadd.f32 %v793, %v811
  %v813 = vpop.f32.mrf.mxu0
  %v814 = vadd.f32 %v795, %v813
  %815 = vdwg.mxu0
  %816 = vmatpush.bf16.msra.mxu0 %v641
  %817 = vmatpush.bf16.msra.mxu0 %v640
  %818 = vmatpush.bf16.msra.mxu0 %v639
  %819 = vmatpush.bf16.msra.mxu0 %v638
  %820 = vmatpush.bf16.msra.mxu0 %v637
  %821 = vmatpush.bf16.msra.mxu0 %v636
  %822 = vmatpush.bf16.msra.mxu0 %v635
  %823 = vmatpush.bf16.msra.mxu0 %v634
  %824 = vmatmul.bf16.gmra.mxu0 %v260
  %v825 = vpop.f32.mrf.mxu0
  %v826 = vadd.f32 %v807, %v825
  %v827 = vpop.f32.mrf.mxu0
  %v828 = vadd.f32 %v809, %v827
  %829 = vmatmul.bf16.gmra.mxu0 %v270
  %v830 = vpop.f32.mrf.mxu0
  %v831 = vadd.f32 %v812, %v830
  %v832 = vpop.f32.mrf.mxu0
  %v833 = vadd.f32 %v814, %v832
  %834 = vdwg.mxu0
  %835 = vmatpush.bf16.msra.mxu0 %v649
  %836 = vmatpush.bf16.msra.mxu0 %v648
  %837 = vmatpush.bf16.msra.mxu0 %v647
  %838 = vmatpush.bf16.msra.mxu0 %v646
  %839 = vmatpush.bf16.msra.mxu0 %v645
  %840 = vmatpush.bf16.msra.mxu0 %v644
  %841 = vmatpush.bf16.msra.mxu0 %v643
  %842 = vmatpush.bf16.msra.mxu0 %v642
  %843 = vmatmul.bf16.gmra.mxu0 %v261
  %v844 = vpop.f32.mrf.mxu0
  %v845 = vadd.f32 %v826, %v844
  %v846 = vpop.f32.mrf.mxu0
  %v847 = vadd.f32 %v828, %v846
  %848 = vmatmul.bf16.gmra.mxu0 %v271
  %v849 = vpop.f32.mrf.mxu0
  %v850 = vadd.f32 %v831, %v849
  %v851 = vpop.f32.mrf.mxu0
  %v852 = vadd.f32 %v833, %v851
  %853 = vdwg.mxu0
  %854 = vmatpush.bf16.msra.mxu0 %v657
  %855 = vmatpush.bf16.msra.mxu0 %v656
  %856 = vmatpush.bf16.msra.mxu0 %v655
  %857 = vmatpush.bf16.msra.mxu0 %v654
  %858 = vmatpush.bf16.msra.mxu0 %v653
  %859 = vmatpush.bf16.msra.mxu0 %v652
  %860 = vmatpush.bf16.msra.mxu0 %v651
  %861 = vmatpush.bf16.msra.mxu0 %v650
  %862 = vmatmul.bf16.gmra.mxu0 %v262
  %v863 = vpop.f32.mrf.mxu0
  %v864 = vadd.f32 %v845, %v863
  %v865 = vpop.f32.mrf.mxu0
  %v866 = vadd.f32 %v847, %v865
  %867 = vmatmul.bf16.gmra.mxu0 %v272
  %v868 = vpop.f32.mrf.mxu0
  %v869 = vadd.f32 %v850, %v868
  %v870 = vpop.f32.mrf.mxu0
  %v871 = vadd.f32 %v852, %v870
  %872 = vdwg.mxu0
  %873 = vmatpush.bf16.msra.mxu0 %v665
  %874 = vmatpush.bf16.msra.mxu0 %v664
  %875 = vmatpush.bf16.msra.mxu0 %v663
  %876 = vmatpush.bf16.msra.mxu0 %v662
  %877 = vmatpush.bf16.msra.mxu0 %v661
  %878 = vmatpush.bf16.msra.mxu0 %v660
  %879 = vmatpush.bf16.msra.mxu0 %v659
  %880 = vmatpush.bf16.msra.mxu0 %v658
  %881 = vmatmul.bf16.gmra.mxu0 %v263
  %v882 = vpop.f32.mrf.mxu0
  %v883 = vadd.f32 %v864, %v882
  %v884 = vpop.f32.mrf.mxu0
  %v885 = vadd.f32 %v866, %v884
  %886 = vmatmul.bf16.gmra.mxu0 %v273
  %v887 = vpop.f32.mrf.mxu0
  %v888 = vadd.f32 %v869, %v887
  %v889 = vpop.f32.mrf.mxu0
  %v890 = vadd.f32 %v871, %v889
  %891 = vdwg.mxu0
  %892 = vmatpush.bf16.msra.mxu0 %v673
  %893 = vmatpush.bf16.msra.mxu0 %v672
  %894 = vmatpush.bf16.msra.mxu0 %v671
  %895 = vmatpush.bf16.msra.mxu0 %v670
  %896 = vmatpush.bf16.msra.mxu0 %v669
  %897 = vmatpush.bf16.msra.mxu0 %v668
  %898 = vmatpush.bf16.msra.mxu0 %v667
  %899 = vmatpush.bf16.msra.mxu0 %v666
  %900 = vmatmul.bf16.gmra.mxu0 %v264
  %v901 = vpop.f32.mrf.mxu0
  %v902 = vadd.f32 %v883, %v901
  %v903 = vpop.f32.mrf.mxu0
  %v904 = vadd.f32 %v885, %v903
  %905 = vmatmul.bf16.gmra.mxu0 %v274
  %v906 = vpop.f32.mrf.mxu0
  %v907 = vadd.f32 %v888, %v906
  %v908 = vpop.f32.mrf.mxu0
  %v909 = vadd.f32 %v890, %v908
  %910 = vdwg.mxu0
  %911 = vmatpush.bf16.msra.mxu0 %v681
  %912 = vmatpush.bf16.msra.mxu0 %v680
  %913 = vmatpush.bf16.msra.mxu0 %v679
  %914 = vmatpush.bf16.msra.mxu0 %v678
  %915 = vmatpush.bf16.msra.mxu0 %v677
  %916 = vmatpush.bf16.msra.mxu0 %v676
  %917 = vmatpush.bf16.msra.mxu0 %v675
  %918 = vmatpush.bf16.msra.mxu0 %v674
  %919 = vmatmul.bf16.gmra.mxu0 %v265
  %v920 = vpop.f32.mrf.mxu0
  %v921 = vadd.f32 %v902, %v920
  %v922 = vpop.f32.mrf.mxu0
  %v923 = vadd.f32 %v904, %v922
  %924 = vmatmul.bf16.gmra.mxu0 %v275
  %v925 = vpop.f32.mrf.mxu0
  %v926 = vadd.f32 %v907, %v925
  %v927 = vpop.f32.mrf.mxu0
  %v928 = vadd.f32 %v909, %v927
  %929 = vdwg.mxu0
  %930 = vmatpush.bf16.msra.mxu0 %v689
  %931 = vmatpush.bf16.msra.mxu0 %v688
  %932 = vmatpush.bf16.msra.mxu0 %v687
  %933 = vmatpush.bf16.msra.mxu0 %v686
  %934 = vmatpush.bf16.msra.mxu0 %v685
  %935 = vmatpush.bf16.msra.mxu0 %v684
  %936 = vmatpush.bf16.msra.mxu0 %v683
  %937 = vmatpush.bf16.msra.mxu0 %v682
  %938 = vmatmul.bf16.gmra.mxu0 %v266
  %v939 = vpop.f32.mrf.mxu0
  %v940 = vadd.f32 %v921, %v939
  %v941 = vpop.f32.mrf.mxu0
  %v942 = vadd.f32 %v923, %v941
  %943 = vmatmul.bf16.gmra.mxu0 %v276
  %v944 = vpop.f32.mrf.mxu0
  %v945 = vadd.f32 %v926, %v944
  %v946 = vpop.f32.mrf.mxu0
  %v947 = vadd.f32 %v928, %v946
  %948 = vdwg.mxu0
  %949 = vmatpush.bf16.msra.mxu0 %v697
  %950 = vmatpush.bf16.msra.mxu0 %v696
  %951 = vmatpush.bf16.msra.mxu0 %v695
  %952 = vmatpush.bf16.msra.mxu0 %v694
  %953 = vmatpush.bf16.msra.mxu0 %v693
  %954 = vmatpush.bf16.msra.mxu0 %v692
  %955 = vmatpush.bf16.msra.mxu0 %v691
  %956 = vmatpush.bf16.msra.mxu0 %v690
  %957 = vmatmul.bf16.gmra.mxu0 %v267
  %v958 = vpop.f32.mrf.mxu0
  %v959 = vadd.f32 %v940, %v958
  %v960 = vpop.f32.mrf.mxu0
  %v961 = vadd.f32 %v942, %v960
  %962 = vmatmul.bf16.gmra.mxu0 %v277
  %v963 = vpop.f32.mrf.mxu0
  %v964 = vadd.f32 %v945, %v963
  %v965 = vpop.f32.mrf.mxu0
  %v966 = vadd.f32 %v947, %v965
  %967 = vdwg.mxu0
  %v968 = vpack.c.bf16 %v959, %v959
  %v969 = vpack.c.bf16 %v961, %v961
  %v970 = vpack.c.bf16 %v964, %v964
  %v971 = vpack.c.bf16 %v966, %v966
  %vm972 = vcmask 519168
  %973 = vst.msk [vmem:[%s3] sm:$0xf] %vm972, %v968
  %974 = vst.msk [vmem:[%s3 + $0x4] sm:$0xf] %vm972, %v969
  %975 = vst.msk [vmem:[%s3 + $0x8] sm:$0xf] %vm972, %v970
  %976 = vst.msk [vmem:[%s3 + $0xc] sm:$0xf] %vm972, %v971
  // Predicated region
  $region14: #{fwi_forward.8} parent=0 // pred_check
    _
  $region15: #{fwi_forward.8} parent=0 // pred_check_branch
    %978 = sbr.rel (0) target = $region17
  $region16: #{fwi_forward.8} parent=0 // pred_region
    _
  $region17: #{fwi_forward.8} parent=0 // pred_fallthru
    _
  // Predicated region
  $region18: #{fwi_forward.8} parent=0 // pred_check
    _
  $region19: #{fwi_forward.8} parent=0 // pred_check_branch
    %980 = sbr.rel (0) target = $region21
  $region20: #{fwi_forward.8} parent=0 // pred_region
    _
  $region21: #{fwi_forward.8} parent=0 // pred_fallthru
    _

// kernel: fwi_forward.10
$region0: #{fwi_forward.10}
  #allocation0 [shape = 'u32[]', space=smem, size = 0x4, offset = 0x4, fixed_abs, tag = 'smem constant byte address 0x4 - core index']
  #allocation1 [shape = 'u32[72,128]{1,0:T(1,128)}', space=vmem, size = 0x9000, scoped, tag = 'internal scratch']
  %s0 = inlined_call_operand.vmem [shape: bf16[48,64], index: 0, kind: input, shape index: {}]
  %s1 = inlined_call_operand.vmem [shape: f32[1,64], index: 1, kind: input, shape index: {}]
  %s2 = inlined_call_operand.vmem [shape: f32[1,64], index: 2, kind: input, shape index: {}]
  %s3 = inlined_call_operand.vmem [shape: bf16[64,128], index: 3, kind: input, shape index: {}]
  %s4 = inlined_call_operand.vmem [shape: f32[1,128], index: 4, kind: input, shape index: {}]
  %s5 = inlined_call_operand.vmem [shape: bf16[128,64], index: 5, kind: input, shape index: {}]
  %s6 = inlined_call_operand.vmem [shape: f32[1,64], index: 6, kind: input, shape index: {}]
  %s7 = inlined_call_operand.vmem [shape: bf16[48,64], index: 7, kind: output, shape index: {}]
  %s8 = sld [smem:[#allocation0]]
  $region38: #{fwi_forward.10} parent=0
    _
  %s10 = ssub.s32 1, %s8
  %s11 = scalar_select 0, %s10, %s8
  // Predicated region
  $region2: #{fwi_forward.10} parent=0 // pred_check
    _
  $region3: #{fwi_forward.10} parent=0 // pred_check_branch
    %13 = sbr.rel (0) target = $region5
  $region4: #{fwi_forward.10} parent=0 // pred_region
    _
  $region5: #{fwi_forward.10} parent=0 // pred_fallthru
    _
  // Predicated region
  $region6: #{fwi_forward.10} parent=0 // pred_check
    _
  $region7: #{fwi_forward.10} parent=0 // pred_check_branch
    %15 = sbr.rel (0) target = $region9
  $region8: #{fwi_forward.10} parent=0 // pred_region
    _
  $region9: #{fwi_forward.10} parent=0 // pred_fallthru
    _
  // Predicated region
  $region10: #{fwi_forward.10} parent=0 // pred_check
    _
  $region11: #{fwi_forward.10} parent=0 // pred_check_branch
    %17 = sbr.rel (0) target = $region13
  $region12: #{fwi_forward.10} parent=0 // pred_region
    _
  $region13: #{fwi_forward.10} parent=0 // pred_fallthru
    _
  // Predicated region
  $region14: #{fwi_forward.10} parent=0 // pred_check
    _
  $region15: #{fwi_forward.10} parent=0 // pred_check_branch
    %19 = sbr.rel (0) target = $region17
  $region16: #{fwi_forward.10} parent=0 // pred_region
    _
  $region17: #{fwi_forward.10} parent=0 // pred_fallthru
    _
  // Predicated region
  $region18: #{fwi_forward.10} parent=0 // pred_check
    _
  $region19: #{fwi_forward.10} parent=0 // pred_check_branch
    %21 = sbr.rel (0) target = $region21
  $region20: #{fwi_forward.10} parent=0 // pred_region
    _
  $region21: #{fwi_forward.10} parent=0 // pred_fallthru
    _
  // Predicated region
  $region22: #{fwi_forward.10} parent=0 // pred_check
    _
  $region23: #{fwi_forward.10} parent=0 // pred_check_branch
    %23 = sbr.rel (0) target = $region25
  $region24: #{fwi_forward.10} parent=0 // pred_region
    _
  $region25: #{fwi_forward.10} parent=0 // pred_fallthru
    _
  // Predicated region
  $region26: #{fwi_forward.10} parent=0 // pred_check
    _
  $region27: #{fwi_forward.10} parent=0 // pred_check_branch
    %25 = sbr.rel (0) target = $region29
  $region28: #{fwi_forward.10} parent=0 // pred_region
    _
  $region29: #{fwi_forward.10} parent=0 // pred_fallthru
    _
  %v27 = vld [vmem:[%s0] sm:$0xf]
  %v28 = vld [vmem:[%s0 + $0x4] sm:$0xf]
  %v29 = vld [vmem:[%s0 + $0x8] sm:$0xf]
  %v30 = vld [vmem:[%s0 + $0xc] sm:$0xf]
  %v31 = vld [vmem:[%s0 + $0x10] sm:$0xf]
  %v32 = vld [vmem:[%s0 + $0x14] sm:$0xf]
  %v33 = vunpack.c.l.bf16 %v27
  %v34 = vunpack.c.l.bf16 %v28
  %v35 = vunpack.c.l.bf16 %v29
  %v36 = vunpack.c.l.bf16 %v30
  %v37 = vunpack.c.l.bf16 %v31
  %v38 = vunpack.c.l.bf16 %v32
  %vm39 = vcmask 523264
  %v40 = vsel %vm39, %v33, 0.0
  %41 = vadd.xlane.f32.xlu0 %v40
  %v42 = vpop.xlane.xlu0 %41
  %v43 = vsel %vm39, %v34, 0.0
  %44 = vadd.xlane.f32.xlu0 %v43
  %v45 = vpop.xlane.xlu0 %44
  %v46 = vsel %vm39, %v35, 0.0
  %47 = vadd.xlane.f32.xlu0 %v46
  %v48 = vpop.xlane.xlu0 %47
  %v49 = vsel %vm39, %v36, 0.0
  %50 = vadd.xlane.f32.xlu0 %v49
  %v51 = vpop.xlane.xlu0 %50
  %v52 = vsel %vm39, %v37, 0.0
  %53 = vadd.xlane.f32.xlu0 %v52
  %v54 = vpop.xlane.xlu0 %53
  %v55 = vsel %vm39, %v38, 0.0
  %56 = vadd.xlane.f32.xlu0 %v55
  %v57 = vpop.xlane.xlu0 %56
  %v58 = vrcp.pop 64.0
  %v59 = vmul.f32 64.0, %v58
  %v60 = vsub.f32 1.0, %v59
  %v61 = vmul.f32 %v58, %v60
  %v62 = vadd.f32 %v58, %v61
  %vm63 = vweird.f32 %v58
  %v64 = vsel %vm63, %v58, %v62
  %v65 = vmul.f32 %v42, %v64
  %v66 = vmul.f32 %v45, %v64
  %v67 = vmul.f32 %v48, %v64
  %v68 = vmul.f32 %v51, %v64
  %v69 = vmul.f32 %v54, %v64
  %v70 = vmul.f32 %v57, %v64
  %v71 = vsub.f32 %v33, %v65
  %v72 = vsub.f32 %v34, %v66
  %v73 = vsub.f32 %v35, %v67
  %v74 = vsub.f32 %v36, %v68
  %v75 = vsub.f32 %v37, %v69
  %v76 = vsub.f32 %v38, %v70
  %v77 = vmul.f32 %v71, %v71
  %v78 = vmul.f32 %v72, %v72
  %v79 = vmul.f32 %v73, %v73
  %v80 = vmul.f32 %v74, %v74
  %v81 = vmul.f32 %v75, %v75
  %v82 = vmul.f32 %v76, %v76
  %v83 = vsel %vm39, %v77, 0.0
  %84 = vadd.xlane.f32.xlu0 %v83
  %v85 = vpop.xlane.xlu0 %84
  %v86 = vsel %vm39, %v78, 0.0
  %87 = vadd.xlane.f32.xlu0 %v86
  %v88 = vpop.xlane.xlu0 %87
  %v89 = vsel %vm39, %v79, 0.0
  %90 = vadd.xlane.f32.xlu0 %v89
  %v91 = vpop.xlane.xlu0 %90
  %v92 = vsel %vm39, %v80, 0.0
  %93 = vadd.xlane.f32.xlu0 %v92
  %v94 = vpop.xlane.xlu0 %93
  %v95 = vsel %vm39, %v81, 0.0
  %96 = vadd.xlane.f32.xlu0 %v95
  %v97 = vpop.xlane.xlu0 %96
  %v98 = vsel %vm39, %v82, 0.0
  %99 = vadd.xlane.f32.xlu0 %v98
  %v100 = vpop.xlane.xlu0 %99
  %v101 = vmul.f32 %v85, %v64
  %v102 = vmul.f32 %v88, %v64
  %v103 = vmul.f32 %v91, %v64
  %v104 = vmul.f32 %v94, %v64
  %v105 = vmul.f32 %v97, %v64
  %v106 = vmul.f32 %v100, %v64
  %v107 = vadd.f32 %v101, 1e-06
  %v108 = vadd.f32 %v102, 1e-06
  %v109 = vadd.f32 %v103, 1e-06
  %v110 = vadd.f32 %v104, 1e-06
  %v111 = vadd.f32 %v105, 1e-06
  %v112 = vadd.f32 %v106, 1e-06
  %v113 = vrsqrt.pop %v107
  %v114 = vmul.f32 %v113, %v107
  %v115 = vmul.f32 %v114, %v113
  %v116 = vmul.f32 0.5, %v115
  %v117 = vsub.f32 1.5, %v116
  %v118 = vmul.f32 %v113, %v117
  %vm119 = vweird.f32 %v107
  %vm120 = vweird.f32 %v113
  %vm121 = vmor %vm119, %vm120
  %v122 = vsel %vm121, %v113, %v118
  %v123 = vrsqrt.pop %v108
  %v124 = vmul.f32 %v123, %v108
  %v125 = vmul.f32 %v124, %v123
  %v126 = vmul.f32 0.5, %v125
  %v127 = vsub.f32 1.5, %v126
  %v128 = vmul.f32 %v123, %v127
  %vm129 = vweird.f32 %v108
  %vm130 = vweird.f32 %v123
  %vm131 = vmor %vm129, %vm130
  %v132 = vsel %vm131, %v123, %v128
  %v133 = vrsqrt.pop %v109
  %v134 = vmul.f32 %v133, %v109
  %v135 = vmul.f32 %v134, %v133
  %v136 = vmul.f32 0.5, %v135
  %v137 = vsub.f32 1.5, %v136
  %v138 = vmul.f32 %v133, %v137
  %vm139 = vweird.f32 %v109
  %vm140 = vweird.f32 %v133
  %vm141 = vmor %vm139, %vm140
  %v142 = vsel %vm141, %v133, %v138
  %v143 = vrsqrt.pop %v110
  %v144 = vmul.f32 %v143, %v110
  %v145 = vmul.f32 %v144, %v143
  %v146 = vmul.f32 0.5, %v145
  %v147 = vsub.f32 1.5, %v146
  %v148 = vmul.f32 %v143, %v147
  %vm149 = vweird.f32 %v110
  %vm150 = vweird.f32 %v143
  %vm151 = vmor %vm149, %vm150
  %v152 = vsel %vm151, %v143, %v148
  %v153 = vrsqrt.pop %v111
  %v154 = vmul.f32 %v153, %v111
  %v155 = vmul.f32 %v154, %v153
  %v156 = vmul.f32 0.5, %v155
  %v157 = vsub.f32 1.5, %v156
  %v158 = vmul.f32 %v153, %v157
  %vm159 = vweird.f32 %v111
  %vm160 = vweird.f32 %v153
  %vm161 = vmor %vm159, %vm160
  %v162 = vsel %vm161, %v153, %v158
  %v163 = vrsqrt.pop %v112
  %v164 = vmul.f32 %v163, %v112
  %v165 = vmul.f32 %v164, %v163
  %v166 = vmul.f32 0.5, %v165
  %v167 = vsub.f32 1.5, %v166
  %v168 = vmul.f32 %v163, %v167
  %vm169 = vweird.f32 %v112
  %vm170 = vweird.f32 %v163
  %vm171 = vmor %vm169, %vm170
  %v172 = vsel %vm171, %v163, %v168
  %v173 = vmul.f32 %v71, %v122
  %v174 = vmul.f32 %v72, %v132
  %v175 = vmul.f32 %v73, %v142
  %v176 = vmul.f32 %v74, %v152
  %v177 = vmul.f32 %v75, %v162
  %v178 = vmul.f32 %v76, %v172
  %v179 = vld [vmem:[%s1] sm:$0x1]
  %v181 = vperm.slane %v179, 0
  %v183 = vmul.f32 %v173, %v181
  %v184 = vmul.f32 %v174, %v181
  %v185 = vmul.f32 %v175, %v181
  %v186 = vmul.f32 %v176, %v181
  %v187 = vmul.f32 %v177, %v181
  %v188 = vmul.f32 %v178, %v181
  %v189 = vld [vmem:[%s2] sm:$0x1]
  %v191 = vperm.slane %v189, 0
  %v193 = vadd.f32 %v183, %v191
  %v194 = vadd.f32 %v184, %v191
  %v195 = vadd.f32 %v185, %v191
  %v196 = vadd.f32 %v186, %v191
  %v197 = vadd.f32 %v187, %v191
  %v198 = vadd.f32 %v188, %v191
  %v199 = vpack.c.bf16 %v194, %v193
  %v200 = vpack.c.bf16 %v196, %v195
  %v201 = vpack.c.bf16 %v198, %v197
  %v202 = vld [vmem:[%s3] sm:$0xf]
  %v203 = vld [vmem:[%s3 + $0x4] sm:$0xf]
  %v204 = vld [vmem:[%s3 + $0x8] sm:$0xf]
  %v205 = vld [vmem:[%s3 + $0xc] sm:$0xf]
  %v206 = vld [vmem:[%s3 + $0x10] sm:$0xf]
  %v207 = vld [vmem:[%s3 + $0x14] sm:$0xf]
  %v208 = vld [vmem:[%s3 + $0x18] sm:$0xf]
  %v209 = vld [vmem:[%s3 + $0x1c] sm:$0xf]
  %v210 = vld [vmem:[%s4] sm:$0x1]
  %v212 = vperm.slane %v210, 0
  %v222 = vunpack.c.l.b16 %v202
  %v223 = vunpack.c.l.b16 %v203
  %v224 = vunpack.c.l.b16 %v204
  %v225 = vunpack.c.l.b16 %v205
  %v226 = vunpack.c.l.b16 %v206
  %v227 = vunpack.c.l.b16 %v207
  %v228 = vunpack.c.l.b16 %v208
  %v229 = vunpack.c.l.b16 %v209
  %v230 = vpack.c.b16 %v223, %v222
  %v231 = vpack.c.b16 %v225, %v224
  %v232 = vpack.c.b16 %v227, %v226
  %v233 = vpack.c.b16 %v229, %v228
  %v239 = vsel %vm39, %v199, 0
  %v242 = vsel %vm39, %v200, 0
  %v245 = vsel %vm39, %v201, 0
  %247 = vmatpush.bf16.msra.mxu0 0
  %248 = vmatpush.bf16.msra.mxu0 0
  %249 = vmatpush.bf16.msra.mxu0 0
  %250 = vmatpush.bf16.msra.mxu0 0
  %251 = vmatpush.bf16.msra.mxu0 %v233
  %252 = vmatpush.bf16.msra.mxu0 %v232
  %253 = vmatpush.bf16.msra.mxu0 %v231
  %254 = vmatpush.bf16.msra.mxu0 %v230
  %255 = vmatmul.bf16.gmra.mxu0 %v239
  %v256 = vpop.f32.mrf.mxu0
  %v257 = vadd.f32 %v212, %v256
  %v258 = vpop.f32.mrf.mxu0
  %v259 = vadd.f32 %v212, %v258
  %260 = vmatmul.bf16.gmra.mxu0 %v242
  %v261 = vpop.f32.mrf.mxu0
  %v262 = vadd.f32 %v212, %v261
  %v263 = vpop.f32.mrf.mxu0
  %v264 = vadd.f32 %v212, %v263
  %265 = vmatmul.bf16.gmra.mxu0 %v245
  %v266 = vpop.f32.mrf.mxu0
  %v267 = vadd.f32 %v212, %v266
  %v268 = vpop.f32.mrf.mxu0
  %v269 = vadd.f32 %v212, %v268
  %270 = vdwg.mxu0
  %v271 = vmul.f32 %v257, %v257
  %v272 = vmul.f32 %v259, %v259
  %v273 = vmul.f32 %v262, %v262
  %v274 = vmul.f32 %v264, %v264
  %v275 = vmul.f32 %v267, %v267
  %v276 = vmul.f32 %v269, %v269
  %v277 = vmul.f32 %v257, %v271
  %v278 = vmul.f32 %v259, %v272
  %v279 = vmul.f32 %v262, %v273
  %v280 = vmul.f32 %v264, %v274
  %v281 = vmul.f32 %v267, %v275
  %v282 = vmul.f32 %v269, %v276
  %v283 = vmul.f32 %v277, 0.044715
  %v284 = vmul.f32 %v278, 0.044715
  %v285 = vmul.f32 %v279, 0.044715
  %v286 = vmul.f32 %v280, 0.044715
  %v287 = vmul.f32 %v281, 0.044715
  %v288 = vmul.f32 %v282, 0.044715
  %v289 = vadd.f32 %v257, %v283
  %v290 = vadd.f32 %v259, %v284
  %v291 = vadd.f32 %v262, %v285
  %v292 = vadd.f32 %v264, %v286
  %v293 = vadd.f32 %v267, %v287
  %v294 = vadd.f32 %v269, %v288
  %v295 = vmul.f32 %v289, 0.7978846
  %v296 = vmul.f32 %v290, 0.7978846
  %v297 = vmul.f32 %v291, 0.7978846
  %v298 = vmul.f32 %v292, 0.7978846
  %v299 = vmul.f32 %v293, 0.7978846
  %v300 = vmul.f32 %v294, 0.7978846
  %v301 = vtanh.pop %v295
  %v302 = vtanh.pop %v296
  %v303 = vtanh.pop %v297
  %v304 = vtanh.pop %v298
  %v305 = vtanh.pop %v299
  %v306 = vtanh.pop %v300
  %v307 = vadd.f32 %v301, 1.0
  %v308 = vadd.f32 %v302, 1.0
  %v309 = vadd.f32 %v303, 1.0
  %v310 = vadd.f32 %v304, 1.0
  %v311 = vadd.f32 %v305, 1.0
  %v312 = vadd.f32 %v306, 1.0
  %v313 = vmul.f32 %v307, 0.5
  %v314 = vmul.f32 %v308, 0.5
  %v315 = vmul.f32 %v309, 0.5
  %v316 = vmul.f32 %v310, 0.5
  %v317 = vmul.f32 %v311, 0.5
  %v318 = vmul.f32 %v312, 0.5
  %v319 = vmul.f32 %v257, %v313
  %v320 = vmul.f32 %v259, %v314
  %v321 = vmul.f32 %v262, %v315
  %v322 = vmul.f32 %v264, %v316
  %v323 = vmul.f32 %v267, %v317
  %v324 = vmul.f32 %v269, %v318
  %v325 = vpack.c.bf16 %v320, %v319
  %v326 = vpack.c.bf16 %v322, %v321
  %v327 = vpack.c.bf16 %v324, %v323
  %v328 = vld [vmem:[%s5] sm:$0xf]
  %v329 = vld [vmem:[%s5 + $0x4] sm:$0xf]
  %v330 = vld [vmem:[%s5 + $0x8] sm:$0xf]
  %v331 = vld [vmem:[%s5 + $0xc] sm:$0xf]
  %v332 = vld [vmem:[%s5 + $0x10] sm:$0xf]
  %v333 = vld [vmem:[%s5 + $0x14] sm:$0xf]
  %v334 = vld [vmem:[%s5 + $0x18] sm:$0xf]
  %v335 = vld [vmem:[%s5 + $0x1c] sm:$0xf]
  %v336 = vld [vmem:[%s5 + $0x20] sm:$0xf]
  %v337 = vld [vmem:[%s5 + $0x24] sm:$0xf]
  %v338 = vld [vmem:[%s5 + $0x28] sm:$0xf]
  %v339 = vld [vmem:[%s5 + $0x2c] sm:$0xf]
  %v340 = vld [vmem:[%s5 + $0x30] sm:$0xf]
  %v341 = vld [vmem:[%s5 + $0x34] sm:$0xf]
  %v342 = vld [vmem:[%s5 + $0x38] sm:$0xf]
  %v343 = vld [vmem:[%s5 + $0x3c] sm:$0xf]
  %v344 = vld [vmem:[%s6] sm:$0x1]
  %v346 = vperm.slane %v344, 0
  %v364 = vunpack.c.l.b16 %v328
  %v365 = vunpack.c.l.b16 %v329
  %v366 = vunpack.c.l.b16 %v330
  %v367 = vunpack.c.l.b16 %v331
  %v368 = vunpack.c.l.b16 %v332
  %v369 = vunpack.c.l.b16 %v333
  %v370 = vunpack.c.l.b16 %v334
  %v371 = vunpack.c.l.b16 %v335
  %v372 = vunpack.c.l.b16 %v336
  %v373 = vunpack.c.l.b16 %v337
  %v374 = vunpack.c.l.b16 %v338
  %v375 = vunpack.c.l.b16 %v339
  %v376 = vunpack.c.l.b16 %v340
  %v377 = vunpack.c.l.b16 %v341
  %v378 = vunpack.c.l.b16 %v342
  %v379 = vunpack.c.l.b16 %v343
  %v380 = vpack.c.b16 %v365, %v364
  %v381 = vpack.c.b16 %v367, %v366
  %v382 = vpack.c.b16 %v369, %v368
  %v383 = vpack.c.b16 %v371, %v370
  %v384 = vpack.c.b16 %v373, %v372
  %v385 = vpack.c.b16 %v375, %v374
  %v386 = vpack.c.b16 %v377, %v376
  %v387 = vpack.c.b16 %v379, %v378
  %396 = vmatpush.bf16.msra.mxu0 %v387
  %397 = vmatpush.bf16.msra.mxu0 %v386
  %398 = vmatpush.bf16.msra.mxu0 %v385
  %399 = vmatpush.bf16.msra.mxu0 %v384
  %400 = vmatpush.bf16.msra.mxu0 %v383
  %401 = vmatpush.bf16.msra.mxu0 %v382
  %402 = vmatpush.bf16.msra.mxu0 %v381
  %403 = vmatpush.bf16.msra.mxu0 %v380
  %404 = vmatmul.bf16.gmra.mxu0 %v325
  %v405 = vpop.f32.mrf.mxu0
  %v406 = vadd.f32 %v346, %v405
  %v407 = vpop.f32.mrf.mxu0
  %v408 = vadd.f32 %v346, %v407
  %409 = vmatmul.bf16.gmra.mxu0 %v326
  %v410 = vpop.f32.mrf.mxu0
  %v411 = vadd.f32 %v346, %v410
  %v412 = vpop.f32.mrf.mxu0
  %v413 = vadd.f32 %v346, %v412
  %414 = vmatmul.bf16.gmra.mxu0 %v327
  %v415 = vpop.f32.mrf.mxu0
  %v416 = vadd.f32 %v346, %v415
  %v417 = vpop.f32.mrf.mxu0
  %v418 = vadd.f32 %v346, %v417
  %419 = vdwg.mxu0
  %v420 = vadd.f32 %v33, %v406
  %v421 = vadd.f32 %v34, %v408
  %v422 = vadd.f32 %v35, %v411
  %v423 = vadd.f32 %v36, %v413
  %v424 = vadd.f32 %v37, %v416
  %v425 = vadd.f32 %v38, %v418
  %v426 = vpack.c.bf16 %v420, %v420
  %v427 = vpack.c.bf16 %v421, %v421
  %v428 = vpack.c.bf16 %v422, %v422
  %v429 = vpack.c.bf16 %v423, %v423
  %v430 = vpack.c.bf16 %v424, %v424
  %v431 = vpack.c.bf16 %v425, %v425
  %vm432 = vcmask 519168
  %433 = vst.msk [vmem:[%s7] sm:$0xf] %vm432, %v426
  %434 = vst.msk [vmem:[%s7 + $0x4] sm:$0xf] %vm432, %v427
  %435 = vst.msk [vmem:[%s7 + $0x8] sm:$0xf] %vm432, %v428
  %436 = vst.msk [vmem:[%s7 + $0xc] sm:$0xf] %vm432, %v429
  %437 = vst.msk [vmem:[%s7 + $0x10] sm:$0xf] %vm432, %v430
  %438 = vst.msk [vmem:[%s7 + $0x14] sm:$0xf] %vm432, %v431
  // Predicated region
  $region30: #{fwi_forward.10} parent=0 // pred_check
    _
  $region31: #{fwi_forward.10} parent=0 // pred_check_branch
    %440 = sbr.rel (0) target = $region33
  $region32: #{fwi_forward.10} parent=0 // pred_region
    _
  $region33: #{fwi_forward.10} parent=0 // pred_fallthru
    _
  // Predicated region
  $region34: #{fwi_forward.10} parent=0 // pred_check
    _
  $region35: #{fwi_forward.10} parent=0 // pred_check_branch
    %442 = sbr.rel (0) target = $region37
  $region36: #{fwi_forward.10} parent=0 // pred_region
    _
  $region37: #{fwi_forward.10} parent=0 // pred_fallthru
    _

// kernel: fwi_forward.9
$region0: #{fwi_forward.9}
  #allocation0 [shape = 'u32[]', space=smem, size = 0x4, offset = 0x4, fixed_abs, tag = 'smem constant byte address 0x4 - core index']
  #allocation1 [shape = 'u32[72,128]{1,0:T(1,128)}', space=vmem, size = 0x9000, scoped, tag = 'internal scratch']
  %s0 = inlined_call_operand.vmem [shape: bf16[48,64], index: 0, kind: input, shape index: {}]
  %s1 = inlined_call_operand.vmem [shape: f32[1,64], index: 1, kind: input, shape index: {}]
  %s2 = inlined_call_operand.vmem [shape: f32[1,64], index: 2, kind: input, shape index: {}]
  %s3 = inlined_call_operand.vmem [shape: bf16[64,192], index: 3, kind: input, shape index: {}]
  %s4 = inlined_call_operand.vmem [shape: f32[1,192], index: 4, kind: input, shape index: {}]
  %s5 = inlined_call_operand.vmem [shape: bf16[64,64], index: 5, kind: input, shape index: {}]
  %s6 = inlined_call_operand.vmem [shape: f32[1,64], index: 6, kind: input, shape index: {}]
  %s7 = inlined_call_operand.vmem [shape: bf16[48,64], index: 7, kind: output, shape index: {}]
  %s8 = sld [smem:[#allocation0]]
  $region61: #{fwi_forward.9} parent=0
    _
  %s10 = ssub.s32 1, %s8
  %s11 = scalar_select 0, %s10, %s8
  loop: start=0, step=1, limit=4
  $region2: #{fwi_forward.9} parent=0 // loop_pre_header
    _
  $region3: #{fwi_forward.9} parent=0 // loop_header
    %s13 = sphi 0, %s17
    %p14 = scmp.ge.s32.totalorder %s13, 4
    %s23 = sphi 0, %s25
    %s26 = sphi 0, %s23
    %s27 = sphi 0, %s26
    %s43 = sphi 0, %s27
    %s47 = sphi 0, %s47
    %s49 = sphi 0, %s47
    %s50 = sphi 0, %s49
    %s64 = sphi 0, %s50
    %s68 = sphi 0, %s68
    %s70 = sphi 0, %s68
    %s71 = sphi 0, %s70
    %s85 = sphi 0, %s71
    %s89 = sphi 0, %s89
    %s91 = sphi 0, %s89
    %s92 = sphi 0, %s91
    %s106 = sphi 0, %s92
    %s110 = sphi 0, %s110
    %s112 = sphi 0, %s110
    %s113 = sphi 0, %s112
    %s127 = sphi 0, %s113
    %s131 = sphi 0, %s131
    %s133 = sphi 0, %s131
    %s134 = sphi 0, %s133
    %s148 = sphi 0, %s134
    %s152 = sphi 0, %s152
    %s154 = sphi 0, %s152
    %s155 = sphi 0, %s154
    %s169 = sphi 0, %s155
    %s175 = sphi 0, %s177
    %s178 = sphi 0, %s175
    %s179 = sphi 0, %s178
    %s195 = sphi 0, %s179
  $region4: #{fwi_forward.9} parent=0 // loop_header_branch
    %16 = sbr.rel (%p14) target = $region8
  $region5: #{fwi_forward.9} parent=0 // loop_body
    %s18 = ssub.s32 %s13, 1
    %s19 = ssub.s32 %s13, 2
    %s20 = sadd.s32 %s13, 1
    %s21 = ssub.s32 %s13, %s20
    %p22 = scmp.eq.s32.totalorder %s21, 0
    %s24 = sadd.s32 %s23, 1
    %s25 = scalar_select %p22, %s23, %s24
    %p28 = pneg %p22
    %p29 = scmp.eq.s32.totalorder %s13, 1
    %p30 = por %p28, %p29
    %p31 = scmp.ne.s32.totalorder %s23, %s26
    %p32 = scmp.eq.s32.totalorder %s13, 0
    %p33 = por %p31, %p32
    %p34 = scmp.ne.s32.totalorder %s23, %s26
    %p35 = scmp.eq.s32.totalorder %s18, 1
    %p36 = por %p34, %p35
    %p37 = scmp.ne.s32.totalorder %s26, %s27
    %p38 = scmp.eq.s32.totalorder %s18, 0
    %p39 = por %p37, %p38
    %p40 = scmp.ne.s32.totalorder %s26, %s27
    %p41 = scmp.eq.s32.totalorder %s19, 1
    %p42 = por %p40, %p41
    %p44 = scmp.ne.s32.totalorder %s27, %s43
    %p45 = scmp.eq.s32.totalorder %s19, 0
    %p46 = por %p44, %p45
    %s48 = sadd.s32 %s47, 1
    %p51 = scmp.eq.s32.totalorder %s13, 1
    %p52 = scmp.ne.s32.totalorder %s47, %s49
    %p53 = scmp.eq.s32.totalorder %s13, 0
    %p54 = por %p52, %p53
    %p55 = scmp.ne.s32.totalorder %s47, %s49
    %p56 = scmp.eq.s32.totalorder %s18, 1
    %p57 = por %p55, %p56
    %p58 = scmp.ne.s32.totalorder %s49, %s50
    %p59 = scmp.eq.s32.totalorder %s18, 0
    %p60 = por %p58, %p59
    %p61 = scmp.ne.s32.totalorder %s49, %s50
    %p62 = scmp.eq.s32.totalorder %s19, 1
    %p63 = por %p61, %p62
    %p65 = scmp.ne.s32.totalorder %s50, %s64
    %p66 = scmp.eq.s32.totalorder %s19, 0
    %p67 = por %p65, %p66
    %s69 = sadd.s32 %s68, 1
    %p72 = scmp.eq.s32.totalorder %s13, 1
    %p73 = scmp.ne.s32.totalorder %s68, %s70
    %p74 = scmp.eq.s32.totalorder %s13, 0
    %p75 = por %p73, %p74
    %p76 = scmp.ne.s32.totalorder %s68, %s70
    %p77 = scmp.eq.s32.totalorder %s18, 1
    %p78 = por %p76, %p77
    %p79 = scmp.ne.s32.totalorder %s70, %s71
    %p80 = scmp.eq.s32.totalorder %s18, 0
    %p81 = por %p79, %p80
    %p82 = scmp.ne.s32.totalorder %s70, %s71
    %p83 = scmp.eq.s32.totalorder %s19, 1
    %p84 = por %p82, %p83
    %p86 = scmp.ne.s32.totalorder %s71, %s85
    %p87 = scmp.eq.s32.totalorder %s19, 0
    %p88 = por %p86, %p87
    %s90 = sadd.s32 %s89, 1
    %p93 = scmp.eq.s32.totalorder %s13, 1
    %p94 = scmp.ne.s32.totalorder %s89, %s91
    %p95 = scmp.eq.s32.totalorder %s13, 0
    %p96 = por %p94, %p95
    %p97 = scmp.ne.s32.totalorder %s89, %s91
    %p98 = scmp.eq.s32.totalorder %s18, 1
    %p99 = por %p97, %p98
    %p100 = scmp.ne.s32.totalorder %s91, %s92
    %p101 = scmp.eq.s32.totalorder %s18, 0
    %p102 = por %p100, %p101
    %p103 = scmp.ne.s32.totalorder %s91, %s92
    %p104 = scmp.eq.s32.totalorder %s19, 1
    %p105 = por %p103, %p104
    %p107 = scmp.ne.s32.totalorder %s92, %s106
    %p108 = scmp.eq.s32.totalorder %s19, 0
    %p109 = por %p107, %p108
    %s111 = sadd.s32 %s110, 1
    %p114 = scmp.eq.s32.totalorder %s13, 1
    %p115 = scmp.ne.s32.totalorder %s110, %s112
    %p116 = scmp.eq.s32.totalorder %s13, 0
    %p117 = por %p115, %p116
    %p118 = scmp.ne.s32.totalorder %s110, %s112
    %p119 = scmp.eq.s32.totalorder %s18, 1
    %p120 = por %p118, %p119
    %p121 = scmp.ne.s32.totalorder %s112, %s113
    %p122 = scmp.eq.s32.totalorder %s18, 0
    %p123 = por %p121, %p122
    %p124 = scmp.ne.s32.totalorder %s112, %s113
    %p125 = scmp.eq.s32.totalorder %s19, 1
    %p126 = por %p124, %p125
    %p128 = scmp.ne.s32.totalorder %s113, %s127
    %p129 = scmp.eq.s32.totalorder %s19, 0
    %p130 = por %p128, %p129
    %s132 = sadd.s32 %s131, 1
    %p135 = scmp.eq.s32.totalorder %s13, 1
    %p136 = scmp.ne.s32.totalorder %s131, %s133
    %p137 = scmp.eq.s32.totalorder %s13, 0
    %p138 = por %p136, %p137
    %p139 = scmp.ne.s32.totalorder %s131, %s133
    %p140 = scmp.eq.s32.totalorder %s18, 1
    %p141 = por %p139, %p140
    %p142 = scmp.ne.s32.totalorder %s133, %s134
    %p143 = scmp.eq.s32.totalorder %s18, 0
    %p144 = por %p142, %p143
    %p145 = scmp.ne.s32.totalorder %s133, %s134
    %p146 = scmp.eq.s32.totalorder %s19, 1
    %p147 = por %p145, %p146
    %p149 = scmp.ne.s32.totalorder %s134, %s148
    %p150 = scmp.eq.s32.totalorder %s19, 0
    %p151 = por %p149, %p150
    %s153 = sadd.s32 %s152, 1
    %p156 = scmp.eq.s32.totalorder %s13, 1
    %p157 = scmp.ne.s32.totalorder %s152, %s154
    %p158 = scmp.eq.s32.totalorder %s13, 0
    %p159 = por %p157, %p158
    %p160 = scmp.ne.s32.totalorder %s152, %s154
    %p161 = scmp.eq.s32.totalorder %s18, 1
    %p162 = por %p160, %p161
    %p163 = scmp.ne.s32.totalorder %s154, %s155
    %p164 = scmp.eq.s32.totalorder %s18, 0
    %p165 = por %p163, %p164
    %p166 = scmp.ne.s32.totalorder %s154, %s155
    %p167 = scmp.eq.s32.totalorder %s19, 1
    %p168 = por %p166, %p167
    %p170 = scmp.ne.s32.totalorder %s155, %s169
    %p171 = scmp.eq.s32.totalorder %s19, 0
    %p172 = por %p170, %p171
    %s173 = ssub.s32 %s13, %s20
    %p174 = scmp.eq.s32.totalorder %s173, 0
    %s176 = sadd.s32 %s175, 1
    %s177 = scalar_select %p174, %s175, %s176
    %p180 = pneg %p174
    %p181 = scmp.eq.s32.totalorder %s13, 1
    %p182 = por %p180, %p181
    %p183 = scmp.ne.s32.totalorder %s175, %s178
    %p184 = scmp.eq.s32.totalorder %s13, 0
    %p185 = por %p183, %p184
    %p186 = scmp.ne.s32.totalorder %s175, %s178
    %p187 = scmp.eq.s32.totalorder %s18, 1
    %p188 = por %p186, %p187
    %p189 = scmp.ne.s32.totalorder %s178, %s179
    %p190 = scmp.eq.s32.totalorder %s18, 0
    %p191 = por %p189, %p190
    %p192 = scmp.ne.s32.totalorder %s178, %s179
    %p193 = scmp.eq.s32.totalorder %s19, 1
    %p194 = por %p192, %p193
    %p196 = scmp.ne.s32.totalorder %s179, %s195
    %p197 = scmp.eq.s32.totalorder %s19, 0
    %p198 = por %p196, %p197
    %p199 = scmp.le.s32.totalorder 1, %s13
    %p200 = scmp.lt.s32.totalorder %s13, 3
    %p201 = pnand %p199, %p200
    %p202 = pneg %p201
    // Predicated region
    $region9: #{fwi_forward.9} parent=5 // pred_check
      _
    $region10: #{fwi_forward.9} parent=5 // pred_check_branch
      %204 = sbr.rel (%p201) target = $region12
    $region11: #{fwi_forward.9} parent=5 // pred_region
      %s205 = ssub.s32 %s13, 1
      // Predicated region
      $region13: #{fwi_forward.9} parent=11 // pred_check
        %p206 = pneg %p60
      $region14: #{fwi_forward.9} parent=11 // pred_check_branch
        %208 = sbr.rel (%p206) target = $region16
      $region15: #{fwi_forward.9} parent=11 // pred_region
        _
      $region16: #{fwi_forward.9} parent=11 // pred_fallthru
        _
      // Predicated region
      $region17: #{fwi_forward.9} parent=11 // pred_check
        %p209 = pneg %p81
      $region18: #{fwi_forward.9} parent=11 // pred_check_branch
        %211 = sbr.rel (%p209) target = $region20
      $region19: #{fwi_forward.9} parent=11 // pred_region
        _
      $region20: #{fwi_forward.9} parent=11 // pred_fallthru
        _
      // Predicated region
      $region21: #{fwi_forward.9} parent=11 // pred_check
        %p212 = pneg %p102
      $region22: #{fwi_forward.9} parent=11 // pred_check_branch
        %214 = sbr.rel (%p212) target = $region24
      $region23: #{fwi_forward.9} parent=11 // pred_region
        _
      $region24: #{fwi_forward.9} parent=11 // pred_fallthru
        _
      // Predicated region
      $region25: #{fwi_forward.9} parent=11 // pred_check
        %p215 = pneg %p123
      $region26: #{fwi_forward.9} parent=11 // pred_check_branch
        %217 = sbr.rel (%p215) target = $region28
      $region27: #{fwi_forward.9} parent=11 // pred_region
        _
      $region28: #{fwi_forward.9} parent=11 // pred_fallthru
        _
      // Predicated region
      $region29: #{fwi_forward.9} parent=11 // pred_check
        %p218 = pneg %p144
      $region30: #{fwi_forward.9} parent=11 // pred_check_branch
        %220 = sbr.rel (%p218) target = $region32
      $region31: #{fwi_forward.9} parent=11 // pred_region
        _
      $region32: #{fwi_forward.9} parent=11 // pred_fallthru
        _
      // Predicated region
      $region33: #{fwi_forward.9} parent=11 // pred_check
        %p221 = pneg %p165
      $region34: #{fwi_forward.9} parent=11 // pred_check_branch
        %223 = sbr.rel (%p221) target = $region36
      $region35: #{fwi_forward.9} parent=11 // pred_region
        _
      $region36: #{fwi_forward.9} parent=11 // pred_fallthru
        _
    $region12: #{fwi_forward.9} parent=5 // pred_fallthru
      _
    %p224 = scmp.lt.s32.totalorder %s13, 2
    // Predicated region
    $region37: #{fwi_forward.9} parent=5 // pred_check
      %p225 = pneg %p224
    $region38: #{fwi_forward.9} parent=5 // pred_check_branch
      %227 = sbr.rel (%p225) target = $region40
    $region39: #{fwi_forward.9} parent=5 // pred_region
      // Predicated region
      $region41: #{fwi_forward.9} parent=39 // pred_check
        %p228 = pneg %p33
      $region42: #{fwi_forward.9} parent=39 // pred_check_branch
        %230 = sbr.rel (%p228) target = $region44
      $region43: #{fwi_forward.9} parent=39 // pred_region
        %s231 = smul.u32 3, %s13
        %p232 = scmp.lt.s32.totalorder %s231, 5
        %s233 = scalar_select %p232, %s231, 5
        %s234 = smul.addr %s233, 4
        %s235 = scalar_lea.vmem %s0, %s234
        %s236 = smul.u32 3, %s13
      $region44: #{fwi_forward.9} parent=39 // pred_fallthru
        _
    $region40: #{fwi_forward.9} parent=5 // pred_fallthru
      _
    %p237 = scmp.le.s32.totalorder 1, %s13
    %p238 = scmp.lt.s32.totalorder %s13, 3
    %p239 = pnand %p237, %p238
    %p240 = pneg %p239
    // Predicated region
    $region45: #{fwi_forward.9} parent=5 // pred_check
      _
    $region46: #{fwi_forward.9} parent=5 // pred_check_branch
      %242 = sbr.rel (%p239) target = $region48
    $region47: #{fwi_forward.9} parent=5 // pred_region
      %s243 = ssub.s32 %s13, 1
      %s244 = smul.u32 3, %s18
      %p245 = scmp.lt.s32.totalorder %s244, 5
      %s246 = scalar_select %p245, %s244, 5
      %s247 = smul.addr %s246, 4
      %s248 = scalar_lea.vmem %s0, %s247
      %p249 = pneg %p39
      %p250 = pneg %p36
      %p251 = pneg %p60
      %p252 = pneg %p57
      %p253 = pneg %p81
      %p254 = pneg %p78
      %p255 = pneg %p102
      %p256 = pneg %p99
      %p257 = pneg %p123
      %p258 = pneg %p120
      %p259 = pneg %p144
      %p260 = pneg %p141
      %p261 = pneg %p165
      %p262 = pneg %p162
      %p263 = pneg %p191
      %p264 = pneg %p188
      %s265 = smul.u32 3, %s18
      %p266 = scmp.lt.s32.totalorder %s265, 5
      %s267 = scalar_select %p266, %s265, 5
      %s268 = smul.addr %s267, 4
      %s269 = scalar_lea.vmem %s7, %s268
      %s270 = smul.u32 3, %s18
      %p271 = scmp.lt.s32.totalorder %s270, 5
      %s272 = scalar_select %p271, %s270, 5
      %s273 = smul.addr %s272, 4
      %s274 = scalar_lea.vmem %s0, %s273
      %s275 = smul.u32 3, %s18
      %s276 = smul.u32 3, %s18
      %p277 = scmp.lt.s32.totalorder %s276, 5
      %s278 = scalar_select %p277, %s276, 5
      %s279 = smul.addr %s278, 4
      %s280 = scalar_lea.vmem %s7, %s279
      %s281 = smul.u32 3, %s18
      %v283 = vld [vmem:[%s274] sm:$0xf]
      %v284 = vld [vmem:[%s274 + $0x4] sm:$0xf]
      %v285 = vld [vmem:[%s274 + $0x8] sm:$0xf]
      %v286 = vunpack.c.l.bf16 %v283
      %v287 = vunpack.c.l.bf16 %v284
      %v288 = vunpack.c.l.bf16 %v285
      %vm289 = vcmask 523264
      %v290 = vsel %vm289, %v286, 0.0
      %291 = vadd.xlane.f32.xlu0 %v290
      %v292 = vpop.xlane.xlu0 %291
      %v293 = vsel %vm289, %v287, 0.0
      %294 = vadd.xlane.f32.xlu0 %v293
      %v295 = vpop.xlane.xlu0 %294
      %v296 = vsel %vm289, %v288, 0.0
      %297 = vadd.xlane.f32.xlu0 %v296
      %v298 = vpop.xlane.xlu0 %297
      %v299 = vrcp.pop 64.0
      %v300 = vmul.f32 64.0, %v299
      %v301 = vsub.f32 1.0, %v300
      %v302 = vmul.f32 %v299, %v301
      %v303 = vadd.f32 %v299, %v302
      %vm304 = vweird.f32 %v299
      %v305 = vsel %vm304, %v299, %v303
      %v306 = vmul.f32 %v292, %v305
      %v307 = vmul.f32 %v295, %v305
      %v308 = vmul.f32 %v298, %v305
      %v309 = vsub.f32 %v286, %v306
      %v310 = vsub.f32 %v287, %v307
      %v311 = vsub.f32 %v288, %v308
      %v312 = vmul.f32 %v309, %v309
      %v313 = vmul.f32 %v310, %v310
      %v314 = vmul.f32 %v311, %v311
      %v315 = vsel %vm289, %v312, 0.0
      %316 = vadd.xlane.f32.xlu0 %v315
      %v317 = vpop.xlane.xlu0 %316
      %v318 = vsel %vm289, %v313, 0.0
      %319 = vadd.xlane.f32.xlu0 %v318
      %v320 = vpop.xlane.xlu0 %319
      %v321 = vsel %vm289, %v314, 0.0
      %322 = vadd.xlane.f32.xlu0 %v321
      %v323 = vpop.xlane.xlu0 %322
      %v324 = vmul.f32 %v317, %v305
      %v325 = vmul.f32 %v320, %v305
      %v326 = vmul.f32 %v323, %v305
      %v327 = vadd.f32 %v324, 1e-06
      %v328 = vadd.f32 %v325, 1e-06
      %v329 = vadd.f32 %v326, 1e-06
      %v330 = vrsqrt.pop %v327
      %v331 = vmul.f32 %v330, %v327
      %v332 = vmul.f32 %v331, %v330
      %v333 = vmul.f32 0.5, %v332
      %v334 = vsub.f32 1.5, %v333
      %v335 = vmul.f32 %v330, %v334
      %vm336 = vweird.f32 %v327
      %vm337 = vweird.f32 %v330
      %vm338 = vmor %vm336, %vm337
      %v339 = vsel %vm338, %v330, %v335
      %v340 = vrsqrt.pop %v328
      %v341 = vmul.f32 %v340, %v328
      %v342 = vmul.f32 %v341, %v340
      %v343 = vmul.f32 0.5, %v342
      %v344 = vsub.f32 1.5, %v343
      %v345 = vmul.f32 %v340, %v344
      %vm346 = vweird.f32 %v328
      %vm347 = vweird.f32 %v340
      %vm348 = vmor %vm346, %vm347
      %v349 = vsel %vm348, %v340, %v345
      %v350 = vrsqrt.pop %v329
      %v351 = vmul.f32 %v350, %v329
      %v352 = vmul.f32 %v351, %v350
      %v353 = vmul.f32 0.5, %v352
      %v354 = vsub.f32 1.5, %v353
      %v355 = vmul.f32 %v350, %v354
      %vm356 = vweird.f32 %v329
      %vm357 = vweird.f32 %v350
      %vm358 = vmor %vm356, %vm357
      %v359 = vsel %vm358, %v350, %v355
      %v360 = vmul.f32 %v309, %v339
      %v361 = vmul.f32 %v310, %v349
      %v362 = vmul.f32 %v311, %v359
      %v363 = vld [vmem:[%s1] sm:$0x1]
      %v365 = vperm.slane %v363, 0
      %v367 = vmul.f32 %v360, %v365
      %v368 = vmul.f32 %v361, %v365
      %v369 = vmul.f32 %v362, %v365
      %v370 = vld [vmem:[%s2] sm:$0x1]
      %v372 = vperm.slane %v370, 0
      %v374 = vadd.f32 %v367, %v372
      %v375 = vadd.f32 %v368, %v372
      %v376 = vadd.f32 %v369, %v372
      %v377 = vpack.c.bf16 %v375, %v374
      %v378 = vpack.c.bf16 %v376, %v376
      %v379 = vld [vmem:[%s3] sm:$0xff]
      %v380 = vld [vmem:[%s3 + $0x8] sm:$0xff]
      %v381 = vld [vmem:[%s3 + $0x10] sm:$0xff]
      %v382 = vld [vmem:[%s3 + $0x18] sm:$0xff]
      %v383 = vld [vmem:[%s3 + $0x20] sm:$0xff]
      %v384 = vld [vmem:[%s3 + $0x28] sm:$0xff]
      %v385 = vld [vmem:[%s3 + $0x30] sm:$0xff]
      %v386 = vld [vmem:[%s3 + $0x38] sm:$0xff]
      %v387 = vld [vmem:[%s4] sm:$0x3]
      %v389 = vperm.slane %v387, 0
      %v390 = vperm.slane %v387, 1
      %v401 = vunpack.c.l.b16 %v379
      %v402 = vunpack.c.h.b16 %v379
      %v403 = vunpack.c.l.b16 %v380
      %v404 = vunpack.c.h.b16 %v380
      %v405 = vunpack.c.l.b16 %v381
      %v406 = vunpack.c.h.b16 %v381
      %v407 = vunpack.c.l.b16 %v382
      %v408 = vunpack.c.h.b16 %v382
      %v409 = vunpack.c.l.b16 %v383
      %v410 = vunpack.c.h.b16 %v383
      %v411 = vunpack.c.l.b16 %v384
      %v412 = vunpack.c.h.b16 %v384
      %v413 = vunpack.c.l.b16 %v385
      %v414 = vunpack.c.h.b16 %v385
      %v415 = vunpack.c.l.b16 %v386
      %v416 = vunpack.c.h.b16 %v386
      %v417 = vpack.c.b16 %v403, %v401
      %v418 = vpack.c.b16 %v404, %v402
      %v419 = vpack.c.b16 %v407, %v405
      %v420 = vpack.c.b16 %v408, %v406
      %v421 = vpack.c.b16 %v411, %v409
      %v422 = vpack.c.b16 %v412, %v410
      %v423 = vpack.c.b16 %v415, %v413
      %v424 = vpack.c.b16 %v416, %v414
      %v434 = vsel %vm289, %v377, 0
      %v437 = vsel %vm289, %v378, 0
      %439 = vmatpush.bf16.msra.mxu0 0
      %440 = vmatpush.bf16.msra.mxu0 0
      %441 = vmatpush.bf16.msra.mxu0 0
      %442 = vmatpush.bf16.msra.mxu0 0
      %443 = vmatpush.bf16.msra.mxu0 %v423
      %444 = vmatpush.bf16.msra.mxu0 %v421
      %445 = vmatpush.bf16.msra.mxu0 %v419
      %446 = vmatpush.bf16.msra.mxu0 %v417
      %447 = vmatmul.bf16.gmra.mxu0 %v434
      %v448 = vpop.f32.mrf.mxu0
      %v449 = vadd.f32 %v389, %v448
      %v450 = vpop.f32.mrf.mxu0
      %v451 = vadd.f32 %v389, %v450
      %452 = vmatmul.bf16.gmra.mxu0 %v437
      %v453 = vpop.f32.mrf.mxu0
      %v454 = vadd.f32 %v389, %v453
      %v455 = vpop.f32.mrf.mxu0
      %456 = vdwg.mxu0
      %457 = vmatpush.bf16.msra.mxu0 0
      %458 = vmatpush.bf16.msra.mxu0 0
      %459 = vmatpush.bf16.msra.mxu0 0
      %460 = vmatpush.bf16.msra.mxu0 0
      %461 = vmatpush.bf16.msra.mxu0 %v424
      %462 = vmatpush.bf16.msra.mxu0 %v422
      %463 = vmatpush.bf16.msra.mxu0 %v420
      %464 = vmatpush.bf16.msra.mxu0 %v418
      %465 = vmatmul.bf16.gmra.mxu0 %v434
      %v466 = vpop.f32.mrf.mxu0
      %v467 = vadd.f32 %v390, %v466
      %v468 = vpop.f32.mrf.mxu0
      %v469 = vadd.f32 %v390, %v468
      %470 = vmatmul.bf16.gmra.mxu0 %v437
      %v471 = vpop.f32.mrf.mxu0
      %v472 = vadd.f32 %v390, %v471
      %v473 = vpop.f32.mrf.mxu0
      %474 = vdwg.mxu0
      %v475 = vlaneseq
      %v476 = vand.u32 %v475, 127
      %vm477 = vcmp.lt.s32.totalorder %v476, 17
      %v478 = vsel %vm477, 0.0, -1e+30
      %v479 = vld [vmem:[%s6] sm:$0x1]
      %v481 = vperm.slane %v479, 0
      %v483 = vadd.f32 %v286, %v481
      %v484 = vadd.f32 %v287, %v481
      %v485 = vadd.f32 %v288, %v481
      %v486 = vmul.f32 %v449, 0.25
      %v487 = vmul.f32 %v451, 0.25
      %v488 = vmul.f32 %v454, 0.25
      %v489 = vpack.c.bf16 %v487, %v486
      %v490 = vpack.c.bf16 %v488, %v488
      %v491 = vpack.c.bf16 %v451, %v449
      %v492 = vpack.c.bf16 %v454, %v454
      %v493 = vpack.c.bf16 %v469, %v467
      %v494 = vpack.c.bf16 %v472, %v472
      %497 = vrot.lane.b32.xlu0 %v491, 64
      %v498 = vpop.permute.xlu0 %497
      %499 = vrot.lane.b32.xlu0 %v492, 64
      %v500 = vpop.permute.xlu0 %499
      %vm501 = vcmask 130048
      %v503 = vsel %vm501, %v489, 0
      %v506 = vsel %vm501, %v490, 0
      %v509 = vsel %vm501, %v498, 0
      %v512 = vsel %vm501, %v500, 0
      %514 = vmatpush.bf16.xpose.msra.mxu0 0
      %515 = vmatpush.bf16.xpose.msra.mxu0 0
      %516 = vmatpush.bf16.xpose.msra.mxu0 0
      %517 = vmatpush.bf16.xpose.msra.mxu0 0
      %518 = vmatpush.bf16.xpose.msra.mxu0 0
      %519 = vmatpush.bf16.xpose.msra.mxu0 0
      %520 = vmatpush.bf16.xpose.msra.mxu0 %v512
      %521 = vmatpush.bf16.xpose.msra.mxu0 %v509
      %522 = vmatmul.bf16.gmra.mxu0 %v503
      %v523 = vpop.f32.mrf.mxu0
      %v524 = vadd.f32 %v478, %v523
      %v525 = vpop.f32.mrf.mxu0
      %v526 = vadd.f32 %v478, %v525
      %527 = vmatmul.bf16.gmra.mxu0 %v506
      %v528 = vpop.f32.mrf.mxu0
      %v529 = vadd.f32 %v478, %v528
      %v530 = vpop.f32.mrf.mxu0
      %531 = vdwg.mxu0
      %vm532 = vcmask 195584
      %v533 = vsel %vm532, %v524, -inf
      %534 = vmax.xlane.f32.xlu0 %v533
      %v535 = vpop.xlane.xlu0 %534
      %v536 = vsel %vm532, %v526, -inf
      %537 = vmax.xlane.f32.xlu0 %v536
      %v538 = vpop.xlane.xlu0 %537
      %v539 = vsel %vm532, %v529, -inf
      %540 = vmax.xlane.f32.xlu0 %v539
      %v541 = vpop.xlane.xlu0 %540
      %v542 = vsub.f32 %v524, %v535
      %v543 = vsub.f32 %v526, %v538
      %v544 = vsub.f32 %v529, %v541
      %v545 = vmul.f32 %v542, 1.442695
      %v546 = vpow.pop %v545
      %v547 = vmul.f32 %v543, 1.442695
      %v548 = vpow.pop %v547
      %v549 = vmul.f32 %v544, 1.442695
      %v550 = vpow.pop %v549
      %v551 = vsel %vm532, %v546, 0.0
      %552 = vadd.xlane.f32.xlu0 %v551
      %v553 = vpop.xlane.xlu0 %552
      %v554 = vsel %vm532, %v548, 0.0
      %555 = vadd.xlane.f32.xlu0 %v554
      %v556 = vpop.xlane.xlu0 %555
      %v557 = vsel %vm532, %v550, 0.0
      %558 = vadd.xlane.f32.xlu0 %v557
      %v559 = vpop.xlane.xlu0 %558
      %v560 = vrcp.pop %v553
      %v561 = vrcp.pop %v556
      %v562 = vrcp.pop %v559
      %v563 = vmul.f32 %v553, %v560
      %v564 = vmul.f32 %v556, %v561
      %v565 = vmul.f32 %v559, %v562
      %v566 = vsub.f32 2.0, %v563
      %v567 = vsub.f32 2.0, %v564
      %v568 = vsub.f32 2.0, %v565
      %v569 = vmul.f32 %v560, %v566
      %v570 = vmul.f32 %v561, %v567
      %v571 = vmul.f32 %v562, %v568
      %v572 = vmul.f32 %v546, %v569
      %v573 = vmul.f32 %v548, %v570
      %v574 = vmul.f32 %v550, %v571
      %v575 = vpack.c.bf16 %v573, %v572
      %v576 = vpack.c.bf16 %v574, %v574
      %v578 = vsel %vm532, %v575, 0
      %v581 = vsel %vm532, %v576, 0
      %vm583 = vcmask 1043456
      %v585 = vsel %vm583, %v494, 0
      %587 = vmatpush.bf16.msra.mxu0 0
      %588 = vmatpush.bf16.msra.mxu0 0
      %589 = vmatpush.bf16.msra.mxu0 0
      %590 = vmatpush.bf16.msra.mxu0 0
      %591 = vmatpush.bf16.msra.mxu0 0
      %592 = vmatpush.bf16.msra.mxu0 0
      %593 = vmatpush.bf16.msra.mxu0 %v585
      %594 = vmatpush.bf16.msra.mxu0 %v493
      %595 = vmatmul.bf16.gmra.mxu0 %v578
      %v596 = vpop.f32.mrf.mxu0
      %v597 = vadd.f32 0.0, %v596
      %v598 = vpop.f32.mrf.mxu0
      %v599 = vadd.f32 0.0, %v598
      %600 = vmatmul.bf16.gmra.mxu0 %v581
      %v601 = vpop.f32.mrf.mxu0
      %v602 = vadd.f32 0.0, %v601
      %v603 = vpop.f32.mrf.mxu0
      %604 = vdwg.mxu0
      %v605 = vpack.c.bf16 %v599, %v597
      %v606 = vpack.c.bf16 %v602, %v602
      %v607 = vld [vmem:[%s5] sm:$0xf]
      %v608 = vld [vmem:[%s5 + $0x4] sm:$0xf]
      %v611 = vunpack.c.l.b16 %v607
      %v612 = vunpack.c.l.b16 %v608
      %v613 = vpack.c.b16 %v612, %v611
      %v616 = vsel %vm501, %v605, 0
      %v619 = vsel %vm501, %v606, 0
      %621 = vmatpush.bf16.msra.mxu0 0
      %622 = vmatpush.bf16.msra.mxu0 0
      %623 = vmatpush.bf16.msra.mxu0 0
      %624 = vmatpush.bf16.msra.mxu0 0
      %625 = vmatpush.bf16.msra.mxu0 0
      %626 = vmatpush.bf16.msra.mxu0 0
      %627 = vmatpush.bf16.msra.mxu0 0
      %628 = vmatpush.bf16.msra.mxu0 %v613
      %629 = vmatmul.bf16.gmra.mxu0 %v616
      %v630 = vpop.f32.mrf.mxu0
      %v631 = vadd.f32 0.0, %v630
      %v632 = vpop.f32.mrf.mxu0
      %v633 = vadd.f32 0.0, %v632
      %634 = vmatmul.bf16.gmra.mxu0 %v619
      %v635 = vpop.f32.mrf.mxu0
      %v636 = vadd.f32 0.0, %v635
      %v637 = vpop.f32.mrf.mxu0
      %638 = vdwg.mxu0
      %v639 = vadd.f32 %v483, %v631
      %v640 = vadd.f32 %v484, %v633
      %v641 = vadd.f32 %v485, %v636
      %644 = vrot.lane.b32.xlu0 %v489, 112
      %v645 = vpop.permute.xlu0 %644
      %646 = vrot.lane.b32.xlu0 %v490, 112
      %v647 = vpop.permute.xlu0 %646
      %648 = vrot.lane.b32.xlu0 %v491, 48
      %v649 = vpop.permute.xlu0 %648
      %650 = vrot.lane.b32.xlu0 %v492, 48
      %v651 = vpop.permute.xlu0 %650
      %v653 = vsel %vm501, %v645, 0
      %v656 = vsel %vm501, %v647, 0
      %v659 = vsel %vm501, %v649, 0
      %v662 = vsel %vm501, %v651, 0
      %664 = vmatpush.bf16.xpose.msra.mxu0 0
      %665 = vmatpush.bf16.xpose.msra.mxu0 0
      %666 = vmatpush.bf16.xpose.msra.mxu0 0
      %667 = vmatpush.bf16.xpose.msra.mxu0 0
      %668 = vmatpush.bf16.xpose.msra.mxu0 0
      %669 = vmatpush.bf16.xpose.msra.mxu0 0
      %670 = vmatpush.bf16.xpose.msra.mxu0 %v662
      %671 = vmatpush.bf16.xpose.msra.mxu0 %v659
      %672 = vmatmul.bf16.gmra.mxu0 %v653
      %v673 = vpop.f32.mrf.mxu0
      %v674 = vadd.f32 %v478, %v673
      %v675 = vpop.f32.mrf.mxu0
      %v676 = vadd.f32 %v478, %v675
      %677 = vmatmul.bf16.gmra.mxu0 %v656
      %v678 = vpop.f32.mrf.mxu0
      %v679 = vadd.f32 %v478, %v678
      %v680 = vpop.f32.mrf.mxu0
      %681 = vdwg.mxu0
      %v682 = vsel %vm532, %v674, -inf
      %683 = vmax.xlane.f32.xlu0 %v682
      %v684 = vpop.xlane.xlu0 %683
      %v685 = vsel %vm532, %v676, -inf
      %686 = vmax.xlane.f32.xlu0 %v685
      %v687 = vpop.xlane.xlu0 %686
      %v688 = vsel %vm532, %v679, -inf
      %689 = vmax.xlane.f32.xlu0 %v688
      %v690 = vpop.xlane.xlu0 %689
      %v691 = vsub.f32 %v674, %v684
      %v692 = vsub.f32 %v676, %v687
      %v693 = vsub.f32 %v679, %v690
      %v694 = vmul.f32 %v691, 1.442695
      %v695 = vpow.pop %v694
      %v696 = vmul.f32 %v692, 1.442695
      %v697 = vpow.pop %v696
      %v698 = vmul.f32 %v693, 1.442695
      %v699 = vpow.pop %v698
      %v700 = vsel %vm532, %v695, 0.0
      %701 = vadd.xlane.f32.xlu0 %v700
      %v702 = vpop.xlane.xlu0 %701
      %v703 = vsel %vm532, %v697, 0.0
      %704 = vadd.xlane.f32.xlu0 %v703
      %v705 = vpop.xlane.xlu0 %704
      %v706 = vsel %vm532, %v699, 0.0
      %707 = vadd.xlane.f32.xlu0 %v706
      %v708 = vpop.xlane.xlu0 %707
      %v709 = vrcp.pop %v702
      %v710 = vrcp.pop %v705
      %v711 = vrcp.pop %v708
      %v712 = vmul.f32 %v702, %v709
      %v713 = vmul.f32 %v705, %v710
      %v714 = vmul.f32 %v708, %v711
      %v715 = vsub.f32 2.0, %v712
      %v716 = vsub.f32 2.0, %v713
      %v717 = vsub.f32 2.0, %v714
      %v718 = vmul.f32 %v709, %v715
      %v719 = vmul.f32 %v710, %v716
      %v720 = vmul.f32 %v711, %v717
      %v721 = vmul.f32 %v695, %v718
      %v722 = vmul.f32 %v697, %v719
      %v723 = vmul.f32 %v699, %v720
      %v724 = vpack.c.bf16 %v722, %v721
      %v725 = vpack.c.bf16 %v723, %v723
      %728 = vrot.lane.b32.xlu0 %v493, 112
      %v729 = vpop.permute.xlu0 %728
      %730 = vrot.lane.b32.xlu0 %v494, 112
      %v731 = vpop.permute.xlu0 %730
      %v734 = vsel %vm532, %v724, 0
      %v737 = vsel %vm532, %v725, 0
      %v740 = vsel %vm583, %v731, 0
      %742 = vmatpush.bf16.msra.mxu0 0
      %743 = vmatpush.bf16.msra.mxu0 0
      %744 = vmatpush.bf16.msra.mxu0 0
      %745 = vmatpush.bf16.msra.mxu0 0
      %746 = vmatpush.bf16.msra.mxu0 0
      %747 = vmatpush.bf16.msra.mxu0 0
      %748 = vmatpush.bf16.msra.mxu0 %v740
      %749 = vmatpush.bf16.msra.mxu0 %v729
      %750 = vmatmul.bf16.gmra.mxu0 %v734
      %v751 = vpop.f32.mrf.mxu0
      %v752 = vadd.f32 0.0, %v751
      %v753 = vpop.f32.mrf.mxu0
      %v754 = vadd.f32 0.0, %v753
      %755 = vmatmul.bf16.gmra.mxu0 %v737
      %v756 = vpop.f32.mrf.mxu0
      %v757 = vadd.f32 0.0, %v756
      %v758 = vpop.f32.mrf.mxu0
      %759 = vdwg.mxu0
      %v760 = vpack.c.bf16 %v754, %v752
      %v761 = vpack.c.bf16 %v757, %v757
      %v762 = vld [vmem:[%s5 + $0x8] sm:$0xf]
      %v763 = vld [vmem:[%s5 + $0xc] sm:$0xf]
      %v766 = vunpack.c.l.b16 %v762
      %v767 = vunpack.c.l.b16 %v763
      %v768 = vpack.c.b16 %v767, %v766
      %v771 = vsel %vm501, %v760, 0
      %v774 = vsel %vm501, %v761, 0
      %776 = vmatpush.bf16.msra.mxu0 0
      %777 = vmatpush.bf16.msra.mxu0 0
      %778 = vmatpush.bf16.msra.mxu0 0
      %779 = vmatpush.bf16.msra.mxu0 0
      %780 = vmatpush.bf16.msra.mxu0 0
      %781 = vmatpush.bf16.msra.mxu0 0
      %782 = vmatpush.bf16.msra.mxu0 0
      %783 = vmatpush.bf16.msra.mxu0 %v768
      %784 = vmatmul.bf16.gmra.mxu0 %v771
      %v785 = vpop.f32.mrf.mxu0
      %v786 = vadd.f32 0.0, %v785
      %v787 = vpop.f32.mrf.mxu0
      %v788 = vadd.f32 0.0, %v787
      %789 = vmatmul.bf16.gmra.mxu0 %v774
      %v790 = vpop.f32.mrf.mxu0
      %v791 = vadd.f32 0.0, %v790
      %v792 = vpop.f32.mrf.mxu0
      %793 = vdwg.mxu0
      %v794 = vadd.f32 %v639, %v786
      %v795 = vadd.f32 %v640, %v788
      %v796 = vadd.f32 %v641, %v791
      %797 = vrot.lane.b32.xlu0 %v489, 96
      %v798 = vpop.permute.xlu0 %797
      %799 = vrot.lane.b32.xlu0 %v490, 96
      %v800 = vpop.permute.xlu0 %799
      %801 = vrot.lane.b32.xlu0 %v491, 32
      %v802 = vpop.permute.xlu0 %801
      %803 = vrot.lane.b32.xlu0 %v492, 32
      %v804 = vpop.permute.xlu0 %803
      %v806 = vsel %vm501, %v798, 0
      %v809 = vsel %vm501, %v800, 0
      %v812 = vsel %vm501, %v802, 0
      %v815 = vsel %vm501, %v804, 0
      %817 = vmatpush.bf16.xpose.msra.mxu0 0
      %818 = vmatpush.bf16.xpose.msra.mxu0 0
      %819 = vmatpush.bf16.xpose.msra.mxu0 0
      %820 = vmatpush.bf16.xpose.msra.mxu0 0
      %821 = vmatpush.bf16.xpose.msra.mxu0 0
      %822 = vmatpush.bf16.xpose.msra.mxu0 0
      %823 = vmatpush.bf16.xpose.msra.mxu0 %v815
      %824 = vmatpush.bf16.xpose.msra.mxu0 %v812
      %825 = vmatmul.bf16.gmra.mxu0 %v806
      %v826 = vpop.f32.mrf.mxu0
      %v827 = vadd.f32 %v478, %v826
      %v828 = vpop.f32.mrf.mxu0
      %v829 = vadd.f32 %v478, %v828
      %830 = vmatmul.bf16.gmra.mxu0 %v809
      %v831 = vpop.f32.mrf.mxu0
      %v832 = vadd.f32 %v478, %v831
      %v833 = vpop.f32.mrf.mxu0
      %834 = vdwg.mxu0
      %v835 = vsel %vm532, %v827, -inf
      %836 = vmax.xlane.f32.xlu0 %v835
      %v837 = vpop.xlane.xlu0 %836
      %v838 = vsel %vm532, %v829, -inf
      %839 = vmax.xlane.f32.xlu0 %v838
      %v840 = vpop.xlane.xlu0 %839
      %v841 = vsel %vm532, %v832, -inf
      %842 = vmax.xlane.f32.xlu0 %v841
      %v843 = vpop.xlane.xlu0 %842
      %v844 = vsub.f32 %v827, %v837
      %v845 = vsub.f32 %v829, %v840
      %v846 = vsub.f32 %v832, %v843
      %v847 = vmul.f32 %v844, 1.442695
      %v848 = vpow.pop %v847
      %v849 = vmul.f32 %v845, 1.442695
      %v850 = vpow.pop %v849
      %v851 = vmul.f32 %v846, 1.442695
      %v852 = vpow.pop %v851
      %v853 = vsel %vm532, %v848, 0.0
      %854 = vadd.xlane.f32.xlu0 %v853
      %v855 = vpop.xlane.xlu0 %854
      %v856 = vsel %vm532, %v850, 0.0
      %857 = vadd.xlane.f32.xlu0 %v856
      %v858 = vpop.xlane.xlu0 %857
      %v859 = vsel %vm532, %v852, 0.0
      %860 = vadd.xlane.f32.xlu0 %v859
      %v861 = vpop.xlane.xlu0 %860
      %v862 = vrcp.pop %v855
      %v863 = vrcp.pop %v858
      %v864 = vrcp.pop %v861
      %v865 = vmul.f32 %v855, %v862
      %v866 = vmul.f32 %v858, %v863
      %v867 = vmul.f32 %v861, %v864
      %v868 = vsub.f32 2.0, %v865
      %v869 = vsub.f32 2.0, %v866
      %v870 = vsub.f32 2.0, %v867
      %v871 = vmul.f32 %v862, %v868
      %v872 = vmul.f32 %v863, %v869
      %v873 = vmul.f32 %v864, %v870
      %v874 = vmul.f32 %v848, %v871
      %v875 = vmul.f32 %v850, %v872
      %v876 = vmul.f32 %v852, %v873
      %v877 = vpack.c.bf16 %v875, %v874
      %v878 = vpack.c.bf16 %v876, %v876
      %879 = vrot.lane.b32.xlu0 %v493, 96
      %v880 = vpop.permute.xlu0 %879
      %881 = vrot.lane.b32.xlu0 %v494, 96
      %v882 = vpop.permute.xlu0 %881
      %v885 = vsel %vm532, %v877, 0
      %v888 = vsel %vm532, %v878, 0
      %v891 = vsel %vm583, %v882, 0
      %893 = vmatpush.bf16.msra.mxu0 0
      %894 = vmatpush.bf16.msra.mxu0 0
      %895 = vmatpush.bf16.msra.mxu0 0
      %896 = vmatpush.bf16.msra.mxu0 0
      %897 = vmatpush.bf16.msra.mxu0 0
      %898 = vmatpush.bf16.msra.mxu0 0
      %899 = vmatpush.bf16.msra.mxu0 %v891
      %900 = vmatpush.bf16.msra.mxu0 %v880
      %901 = vmatmul.bf16.gmra.mxu0 %v885
      %v902 = vpop.f32.mrf.mxu0
      %v903 = vadd.f32 0.0, %v902
      %v904 = vpop.f32.mrf.mxu0
      %v905 = vadd.f32 0.0, %v904
      %906 = vmatmul.bf16.gmra.mxu0 %v888
      %v907 = vpop.f32.mrf.mxu0
      %v908 = vadd.f32 0.0, %v907
      %v909 = vpop.f32.mrf.mxu0
      %910 = vdwg.mxu0
      %v911 = vpack.c.bf16 %v905, %v903
      %v912 = vpack.c.bf16 %v908, %v908
      %v913 = vld [vmem:[%s5 + $0x10] sm:$0xf]
      %v914 = vld [vmem:[%s5 + $0x14] sm:$0xf]
      %v917 = vunpack.c.l.b16 %v913
      %v918 = vunpack.c.l.b16 %v914
      %v919 = vpack.c.b16 %v918, %v917
      %v922 = vsel %vm501, %v911, 0
      %v925 = vsel %vm501, %v912, 0
      %927 = vmatpush.bf16.msra.mxu0 0
      %928 = vmatpush.bf16.msra.mxu0 0
      %929 = vmatpush.bf16.msra.mxu0 0
      %930 = vmatpush.bf16.msra.mxu0 0
      %931 = vmatpush.bf16.msra.mxu0 0
      %932 = vmatpush.bf16.msra.mxu0 0
      %933 = vmatpush.bf16.msra.mxu0 0
      %934 = vmatpush.bf16.msra.mxu0 %v919
      %935 = vmatmul.bf16.gmra.mxu0 %v922
      %v936 = vpop.f32.mrf.mxu0
      %v937 = vadd.f32 0.0, %v936
      %v938 = vpop.f32.mrf.mxu0
      %v939 = vadd.f32 0.0, %v938
      %940 = vmatmul.bf16.gmra.mxu0 %v925
      %v941 = vpop.f32.mrf.mxu0
      %v942 = vadd.f32 0.0, %v941
      %v943 = vpop.f32.mrf.mxu0
      %944 = vdwg.mxu0
      %v945 = vadd.f32 %v794, %v937
      %v946 = vadd.f32 %v795, %v939
      %v947 = vadd.f32 %v796, %v942
      %948 = vrot.lane.b32.xlu0 %v489, 80
      %v949 = vpop.permute.xlu0 %948
      %950 = vrot.lane.b32.xlu0 %v490, 80
      %v951 = vpop.permute.xlu0 %950
      %952 = vrot.lane.b32.xlu0 %v491, 16
      %v953 = vpop.permute.xlu0 %952
      %954 = vrot.lane.b32.xlu0 %v492, 16
      %v955 = vpop.permute.xlu0 %954
      %v957 = vsel %vm501, %v949, 0
      %v960 = vsel %vm501, %v951, 0
      %v963 = vsel %vm501, %v953, 0
      %v966 = vsel %vm501, %v955, 0
      %968 = vmatpush.bf16.xpose.msra.mxu0 0
      %969 = vmatpush.bf16.xpose.msra.mxu0 0
      %970 = vmatpush.bf16.xpose.msra.mxu0 0
      %971 = vmatpush.bf16.xpose.msra.mxu0 0
      %972 = vmatpush.bf16.xpose.msra.mxu0 0
      %973 = vmatpush.bf16.xpose.msra.mxu0 0
      %974 = vmatpush.bf16.xpose.msra.mxu0 %v966
      %975 = vmatpush.bf16.xpose.msra.mxu0 %v963
      %976 = vmatmul.bf16.gmra.mxu0 %v957
      %v977 = vpop.f32.mrf.mxu0
      %v978 = vadd.f32 %v478, %v977
      %v979 = vpop.f32.mrf.mxu0
      %v980 = vadd.f32 %v478, %v979
      %981 = vmatmul.bf16.gmra.mxu0 %v960
      %v982 = vpop.f32.mrf.mxu0
      %v983 = vadd.f32 %v478, %v982
      %v984 = vpop.f32.mrf.mxu0
      %985 = vdwg.mxu0
      %v986 = vsel %vm532, %v978, -inf
      %987 = vmax.xlane.f32.xlu0 %v986
      %v988 = vpop.xlane.xlu0 %987
      %v989 = vsel %vm532, %v980, -inf
      %990 = vmax.xlane.f32.xlu0 %v989
      %v991 = vpop.xlane.xlu0 %990
      %v992 = vsel %vm532, %v983, -inf
      %993 = vmax.xlane.f32.xlu0 %v992
      %v994 = vpop.xlane.xlu0 %993
      %v995 = vsub.f32 %v978, %v988
      %v996 = vsub.f32 %v980, %v991
      %v997 = vsub.f32 %v983, %v994
      %v998 = vmul.f32 %v995, 1.442695
      %v999 = vpow.pop %v998
      %v1000 = vmul.f32 %v996, 1.442695
      %v1001 = vpow.pop %v1000
      %v1002 = vmul.f32 %v997, 1.442695
      %v1003 = vpow.pop %v1002
      %v1004 = vsel %vm532, %v999, 0.0
      %1005 = vadd.xlane.f32.xlu0 %v1004
      %v1006 = vpop.xlane.xlu0 %1005
      %v1007 = vsel %vm532, %v1001, 0.0
      %1008 = vadd.xlane.f32.xlu0 %v1007
      %v1009 = vpop.xlane.xlu0 %1008
      %v1010 = vsel %vm532, %v1003, 0.0
      %1011 = vadd.xlane.f32.xlu0 %v1010
      %v1012 = vpop.xlane.xlu0 %1011
      %v1013 = vrcp.pop %v1006
      %v1014 = vrcp.pop %v1009
      %v1015 = vrcp.pop %v1012
      %v1016 = vmul.f32 %v1006, %v1013
      %v1017 = vmul.f32 %v1009, %v1014
      %v1018 = vmul.f32 %v1012, %v1015
      %v1019 = vsub.f32 2.0, %v1016
      %v1020 = vsub.f32 2.0, %v1017
      %v1021 = vsub.f32 2.0, %v1018
      %v1022 = vmul.f32 %v1013, %v1019
      %v1023 = vmul.f32 %v1014, %v1020
      %v1024 = vmul.f32 %v1015, %v1021
      %v1025 = vmul.f32 %v999, %v1022
      %v1026 = vmul.f32 %v1001, %v1023
      %v1027 = vmul.f32 %v1003, %v1024
      %v1028 = vpack.c.bf16 %v1026, %v1025
      %v1029 = vpack.c.bf16 %v1027, %v1027
      %1030 = vrot.lane.b32.xlu0 %v493, 80
      %v1031 = vpop.permute.xlu0 %1030
      %1032 = vrot.lane.b32.xlu0 %v494, 80
      %v1033 = vpop.permute.xlu0 %1032
      %v1036 = vsel %vm532, %v1028, 0
      %v1039 = vsel %vm532, %v1029, 0
      %v1042 = vsel %vm583, %v1033, 0
      %1044 = vmatpush.bf16.msra.mxu0 0
      %1045 = vmatpush.bf16.msra.mxu0 0
      %1046 = vmatpush.bf16.msra.mxu0 0
      %1047 = vmatpush.bf16.msra.mxu0 0
      %1048 = vmatpush.bf16.msra.mxu0 0
      %1049 = vmatpush.bf16.msra.mxu0 0
      %1050 = vmatpush.bf16.msra.mxu0 %v1042
      %1051 = vmatpush.bf16.msra.mxu0 %v1031
      %1052 = vmatmul.bf16.gmra.mxu0 %v1036
      %v1053 = vpop.f32.mrf.mxu0
      %v1054 = vadd.f32 0.0, %v1053
      %v1055 = vpop.f32.mrf.mxu0
      %v1056 = vadd.f32 0.0, %v1055
      %1057 = vmatmul.bf16.gmra.mxu0 %v1039
      %v1058 = vpop.f32.mrf.mxu0
      %v1059 = vadd.f32 0.0, %v1058
      %v1060 = vpop.f32.mrf.mxu0
      %1061 = vdwg.mxu0
      %v1062 = vpack.c.bf16 %v1056, %v1054
      %v1063 = vpack.c.bf16 %v1059, %v1059
      %v1064 = vld [vmem:[%s5 + $0x18] sm:$0xf]
      %v1065 = vld [vmem:[%s5 + $0x1c] sm:$0xf]
      %v1068 = vunpack.c.l.b16 %v1064
      %v1069 = vunpack.c.l.b16 %v1065
      %v1070 = vpack.c.b16 %v1069, %v1068
      %v1073 = vsel %vm501, %v1062, 0
      %v1076 = vsel %vm501, %v1063, 0
      %1078 = vmatpush.bf16.msra.mxu0 0
      %1079 = vmatpush.bf16.msra.mxu0 0
      %1080 = vmatpush.bf16.msra.mxu0 0
      %1081 = vmatpush.bf16.msra.mxu0 0
      %1082 = vmatpush.bf16.msra.mxu0 0
      %1083 = vmatpush.bf16.msra.mxu0 0
      %1084 = vmatpush.bf16.msra.mxu0 0
      %1085 = vmatpush.bf16.msra.mxu0 %v1070
      %1086 = vmatmul.bf16.gmra.mxu0 %v1073
      %v1087 = vpop.f32.mrf.mxu0
      %v1088 = vadd.f32 0.0, %v1087
      %v1089 = vpop.f32.mrf.mxu0
      %v1090 = vadd.f32 0.0, %v1089
      %1091 = vmatmul.bf16.gmra.mxu0 %v1076
      %v1092 = vpop.f32.mrf.mxu0
      %v1093 = vadd.f32 0.0, %v1092
      %v1094 = vpop.f32.mrf.mxu0
      %1095 = vdwg.mxu0
      %v1096 = vadd.f32 %v945, %v1088
      %v1097 = vadd.f32 %v946, %v1090
      %v1098 = vadd.f32 %v947, %v1093
      %v1099 = vpack.c.bf16 %v1096, %v1096
      %v1100 = vpack.c.bf16 %v1097, %v1097
      %v1101 = vpack.c.bf16 %v1098, %v1098
      %vm1102 = vcmask 519168
      %1103 = vst.msk [vmem:[%s280] sm:$0xf] %vm1102, %v1099
      %1104 = vst.msk [vmem:[%s280 + $0x4] sm:$0xf] %vm1102, %v1100
      %1105 = vst.msk [vmem:[%s280 + $0x8] sm:$0xf] %vm1102, %v1101
      %s1106 = smul.u32 3, %s18
      %p1107 = scmp.lt.s32.totalorder %s1106, 5
      %s1108 = scalar_select %p1107, %s1106, 5
      %s1109 = smul.addr %s1108, 4
      %s1110 = scalar_lea.vmem %s7, %s1109
      // Predicated region
      $region49: #{fwi_forward.9} parent=47 // pred_check
        %p1111 = pneg %p188
      $region50: #{fwi_forward.9} parent=47 // pred_check_branch
        %1113 = sbr.rel (%p1111) target = $region52
      $region51: #{fwi_forward.9} parent=47 // pred_region
        %s1114 = smul.u32 3, %s18
      $region52: #{fwi_forward.9} parent=47 // pred_fallthru
        _
    $region48: #{fwi_forward.9} parent=5 // pred_fallthru
      _
    %p1115 = scmp.le.s32.totalorder 2, %s13
    // Predicated region
    $region53: #{fwi_forward.9} parent=5 // pred_check
      %p1116 = pneg %p1115
    $region54: #{fwi_forward.9} parent=5 // pred_check_branch
      %1118 = sbr.rel (%p1116) target = $region56
    $region55: #{fwi_forward.9} parent=5 // pred_region
      %s1119 = ssub.s32 %s13, 2
      // Predicated region
      $region57: #{fwi_forward.9} parent=55 // pred_check
        %p1120 = pneg %p194
      $region58: #{fwi_forward.9} parent=55 // pred_check_branch
        %1122 = sbr.rel (%p1120) target = $region60
      $region59: #{fwi_forward.9} parent=55 // pred_region
        %s1123 = smul.u32 3, %s19
        %p1124 = scmp.lt.s32.totalorder %s1123, 5
        %s1125 = scalar_select %p1124, %s1123, 5
        %s1126 = smul.addr %s1125, 4
        %s1127 = scalar_lea.vmem %s7, %s1126
      $region60: #{fwi_forward.9} parent=55 // pred_fallthru
        _
    $region56: #{fwi_forward.9} parent=5 // pred_fallthru
      _
  $region6: #{fwi_forward.9} parent=0 // loop_footer
    %s17 = sadd.s32 1, %s13
  $region7: #{fwi_forward.9} parent=0 // loop_footer_branch
    %12 = sbr.rel target = $region3
  $region8: #{fwi_forward.9} parent=0 // loop_exit
    _

// kernel: fwi_forward.13
$region0: #{fwi_forward.13}
  #allocation0 [shape = 'u32[]', space=smem, size = 0x4, offset = 0x4, fixed_abs, tag = 'smem constant byte address 0x4 - core index']
  #allocation1 [shape = 'u32[72,128]{1,0:T(1,128)}', space=vmem, size = 0x9000, scoped, tag = 'internal scratch']
  %s0 = inlined_call_operand.vmem [shape: bf16[48,64], index: 0, kind: input, shape index: {}]
  %s1 = inlined_call_operand.vmem [shape: f32[1,64], index: 1, kind: input, shape index: {}]
  %s2 = inlined_call_operand.vmem [shape: f32[1,64], index: 2, kind: input, shape index: {}]
  %s3 = inlined_call_operand.vmem [shape: bf16[64,128], index: 3, kind: input, shape index: {}]
  %s4 = inlined_call_operand.vmem [shape: f32[1,128], index: 4, kind: input, shape index: {}]
  %s5 = inlined_call_operand.vmem [shape: f32[48,128], index: 5, kind: output, shape index: {}]
  %s6 = sld [smem:[#allocation0]]
  $region30: #{fwi_forward.13} parent=0
    _
  %s8 = ssub.s32 1, %s6
  %s9 = scalar_select 0, %s8, %s6
  // Predicated region
  $region2: #{fwi_forward.13} parent=0 // pred_check
    _
  $region3: #{fwi_forward.13} parent=0 // pred_check_branch
    %11 = sbr.rel (0) target = $region5
  $region4: #{fwi_forward.13} parent=0 // pred_region
    _
  $region5: #{fwi_forward.13} parent=0 // pred_fallthru
    _
  // Predicated region
  $region6: #{fwi_forward.13} parent=0 // pred_check
    _
  $region7: #{fwi_forward.13} parent=0 // pred_check_branch
    %13 = sbr.rel (0) target = $region9
  $region8: #{fwi_forward.13} parent=0 // pred_region
    _
  $region9: #{fwi_forward.13} parent=0 // pred_fallthru
    _
  // Predicated region
  $region10: #{fwi_forward.13} parent=0 // pred_check
    _
  $region11: #{fwi_forward.13} parent=0 // pred_check_branch
    %15 = sbr.rel (0) target = $region13
  $region12: #{fwi_forward.13} parent=0 // pred_region
    _
  $region13: #{fwi_forward.13} parent=0 // pred_fallthru
    _
  // Predicated region
  $region14: #{fwi_forward.13} parent=0 // pred_check
    _
  $region15: #{fwi_forward.13} parent=0 // pred_check_branch
    %17 = sbr.rel (0) target = $region17
  $region16: #{fwi_forward.13} parent=0 // pred_region
    _
  $region17: #{fwi_forward.13} parent=0 // pred_fallthru
    _
  // Predicated region
  $region18: #{fwi_forward.13} parent=0 // pred_check
    _
  $region19: #{fwi_forward.13} parent=0 // pred_check_branch
    %19 = sbr.rel (0) target = $region21
  $region20: #{fwi_forward.13} parent=0 // pred_region
    _
  $region21: #{fwi_forward.13} parent=0 // pred_fallthru
    _
  %v21 = vld [vmem:[%s0] sm:$0xf]
  %v22 = vld [vmem:[%s0 + $0x4] sm:$0xf]
  %v23 = vld [vmem:[%s0 + $0x8] sm:$0xf]
  %v24 = vld [vmem:[%s0 + $0xc] sm:$0xf]
  %v25 = vld [vmem:[%s0 + $0x10] sm:$0xf]
  %v26 = vld [vmem:[%s0 + $0x14] sm:$0xf]
  %v27 = vunpack.c.l.bf16 %v21
  %v28 = vunpack.c.l.bf16 %v22
  %v29 = vunpack.c.l.bf16 %v23
  %v30 = vunpack.c.l.bf16 %v24
  %v31 = vunpack.c.l.bf16 %v25
  %v32 = vunpack.c.l.bf16 %v26
  %vm33 = vcmask 523264
  %v34 = vsel %vm33, %v27, 0.0
  %35 = vadd.xlane.f32.xlu0 %v34
  %v36 = vpop.xlane.xlu0 %35
  %v37 = vsel %vm33, %v28, 0.0
  %38 = vadd.xlane.f32.xlu0 %v37
  %v39 = vpop.xlane.xlu0 %38
  %v40 = vsel %vm33, %v29, 0.0
  %41 = vadd.xlane.f32.xlu0 %v40
  %v42 = vpop.xlane.xlu0 %41
  %v43 = vsel %vm33, %v30, 0.0
  %44 = vadd.xlane.f32.xlu0 %v43
  %v45 = vpop.xlane.xlu0 %44
  %v46 = vsel %vm33, %v31, 0.0
  %47 = vadd.xlane.f32.xlu0 %v46
  %v48 = vpop.xlane.xlu0 %47
  %v49 = vsel %vm33, %v32, 0.0
  %50 = vadd.xlane.f32.xlu0 %v49
  %v51 = vpop.xlane.xlu0 %50
  %v52 = vrcp.pop 64.0
  %v53 = vmul.f32 64.0, %v52
  %v54 = vsub.f32 1.0, %v53
  %v55 = vmul.f32 %v52, %v54
  %v56 = vadd.f32 %v52, %v55
  %vm57 = vweird.f32 %v52
  %v58 = vsel %vm57, %v52, %v56
  %v59 = vmul.f32 %v36, %v58
  %v60 = vmul.f32 %v39, %v58
  %v61 = vmul.f32 %v42, %v58
  %v62 = vmul.f32 %v45, %v58
  %v63 = vmul.f32 %v48, %v58
  %v64 = vmul.f32 %v51, %v58
  %v65 = vsub.f32 %v27, %v59
  %v66 = vsub.f32 %v28, %v60
  %v67 = vsub.f32 %v29, %v61
  %v68 = vsub.f32 %v30, %v62
  %v69 = vsub.f32 %v31, %v63
  %v70 = vsub.f32 %v32, %v64
  %v71 = vmul.f32 %v65, %v65
  %v72 = vmul.f32 %v66, %v66
  %v73 = vmul.f32 %v67, %v67
  %v74 = vmul.f32 %v68, %v68
  %v75 = vmul.f32 %v69, %v69
  %v76 = vmul.f32 %v70, %v70
  %v77 = vsel %vm33, %v71, 0.0
  %78 = vadd.xlane.f32.xlu0 %v77
  %v79 = vpop.xlane.xlu0 %78
  %v80 = vsel %vm33, %v72, 0.0
  %81 = vadd.xlane.f32.xlu0 %v80
  %v82 = vpop.xlane.xlu0 %81
  %v83 = vsel %vm33, %v73, 0.0
  %84 = vadd.xlane.f32.xlu0 %v83
  %v85 = vpop.xlane.xlu0 %84
  %v86 = vsel %vm33, %v74, 0.0
  %87 = vadd.xlane.f32.xlu0 %v86
  %v88 = vpop.xlane.xlu0 %87
  %v89 = vsel %vm33, %v75, 0.0
  %90 = vadd.xlane.f32.xlu0 %v89
  %v91 = vpop.xlane.xlu0 %90
  %v92 = vsel %vm33, %v76, 0.0
  %93 = vadd.xlane.f32.xlu0 %v92
  %v94 = vpop.xlane.xlu0 %93
  %v95 = vmul.f32 %v79, %v58
  %v96 = vmul.f32 %v82, %v58
  %v97 = vmul.f32 %v85, %v58
  %v98 = vmul.f32 %v88, %v58
  %v99 = vmul.f32 %v91, %v58
  %v100 = vmul.f32 %v94, %v58
  %v101 = vadd.f32 %v95, 1e-06
  %v102 = vadd.f32 %v96, 1e-06
  %v103 = vadd.f32 %v97, 1e-06
  %v104 = vadd.f32 %v98, 1e-06
  %v105 = vadd.f32 %v99, 1e-06
  %v106 = vadd.f32 %v100, 1e-06
  %v107 = vrsqrt.pop %v101
  %v108 = vmul.f32 %v107, %v101
  %v109 = vmul.f32 %v108, %v107
  %v110 = vmul.f32 0.5, %v109
  %v111 = vsub.f32 1.5, %v110
  %v112 = vmul.f32 %v107, %v111
  %vm113 = vweird.f32 %v101
  %vm114 = vweird.f32 %v107
  %vm115 = vmor %vm113, %vm114
  %v116 = vsel %vm115, %v107, %v112
  %v117 = vrsqrt.pop %v102
  %v118 = vmul.f32 %v117, %v102
  %v119 = vmul.f32 %v118, %v117
  %v120 = vmul.f32 0.5, %v119
  %v121 = vsub.f32 1.5, %v120
  %v122 = vmul.f32 %v117, %v121
  %vm123 = vweird.f32 %v102
  %vm124 = vweird.f32 %v117
  %vm125 = vmor %vm123, %vm124
  %v126 = vsel %vm125, %v117, %v122
  %v127 = vrsqrt.pop %v103
  %v128 = vmul.f32 %v127, %v103
  %v129 = vmul.f32 %v128, %v127
  %v130 = vmul.f32 0.5, %v129
  %v131 = vsub.f32 1.5, %v130
  %v132 = vmul.f32 %v127, %v131
  %vm133 = vweird.f32 %v103
  %vm134 = vweird.f32 %v127
  %vm135 = vmor %vm133, %vm134
  %v136 = vsel %vm135, %v127, %v132
  %v137 = vrsqrt.pop %v104
  %v138 = vmul.f32 %v137, %v104
  %v139 = vmul.f32 %v138, %v137
  %v140 = vmul.f32 0.5, %v139
  %v141 = vsub.f32 1.5, %v140
  %v142 = vmul.f32 %v137, %v141
  %vm143 = vweird.f32 %v104
  %vm144 = vweird.f32 %v137
  %vm145 = vmor %vm143, %vm144
  %v146 = vsel %vm145, %v137, %v142
  %v147 = vrsqrt.pop %v105
  %v148 = vmul.f32 %v147, %v105
  %v149 = vmul.f32 %v148, %v147
  %v150 = vmul.f32 0.5, %v149
  %v151 = vsub.f32 1.5, %v150
  %v152 = vmul.f32 %v147, %v151
  %vm153 = vweird.f32 %v105
  %vm154 = vweird.f32 %v147
  %vm155 = vmor %vm153, %vm154
  %v156 = vsel %vm155, %v147, %v152
  %v157 = vrsqrt.pop %v106
  %v158 = vmul.f32 %v157, %v106
  %v159 = vmul.f32 %v158, %v157
  %v160 = vmul.f32 0.5, %v159
  %v161 = vsub.f32 1.5, %v160
  %v162 = vmul.f32 %v157, %v161
  %vm163 = vweird.f32 %v106
  %vm164 = vweird.f32 %v157
  %vm165 = vmor %vm163, %vm164
  %v166 = vsel %vm165, %v157, %v162
  %v167 = vmul.f32 %v65, %v116
  %v168 = vmul.f32 %v66, %v126
  %v169 = vmul.f32 %v67, %v136
  %v170 = vmul.f32 %v68, %v146
  %v171 = vmul.f32 %v69, %v156
  %v172 = vmul.f32 %v70, %v166
  %v173 = vld [vmem:[%s1] sm:$0x1]
  %v175 = vperm.slane %v173, 0
  %v177 = vmul.f32 %v167, %v175
  %v178 = vmul.f32 %v168, %v175
  %v179 = vmul.f32 %v169, %v175
  %v180 = vmul.f32 %v170, %v175
  %v181 = vmul.f32 %v171, %v175
  %v182 = vmul.f32 %v172, %v175
  %v183 = vld [vmem:[%s2] sm:$0x1]
  %v185 = vperm.slane %v183, 0
  %v187 = vadd.f32 %v177, %v185
  %v188 = vadd.f32 %v178, %v185
  %v189 = vadd.f32 %v179, %v185
  %v190 = vadd.f32 %v180, %v185
  %v191 = vadd.f32 %v181, %v185
  %v192 = vadd.f32 %v182, %v185
  %v193 = vpack.c.bf16 %v188, %v187
  %v194 = vpack.c.bf16 %v190, %v189
  %v195 = vpack.c.bf16 %v192, %v191
  %v196 = vld [vmem:[%s3] sm:$0xf]
  %v197 = vld [vmem:[%s3 + $0x4] sm:$0xf]
  %v198 = vld [vmem:[%s3 + $0x8] sm:$0xf]
  %v199 = vld [vmem:[%s3 + $0xc] sm:$0xf]
  %v200 = vld [vmem:[%s3 + $0x10] sm:$0xf]
  %v201 = vld [vmem:[%s3 + $0x14] sm:$0xf]
  %v202 = vld [vmem:[%s3 + $0x18] sm:$0xf]
  %v203 = vld [vmem:[%s3 + $0x1c] sm:$0xf]
  %v204 = vld [vmem:[%s4] sm:$0x1]
  %v206 = vperm.slane %v204, 0
  %v216 = vunpack.c.l.b16 %v196
  %v217 = vunpack.c.l.b16 %v197
  %v218 = vunpack.c.l.b16 %v198
  %v219 = vunpack.c.l.b16 %v199
  %v220 = vunpack.c.l.b16 %v200
  %v221 = vunpack.c.l.b16 %v201
  %v222 = vunpack.c.l.b16 %v202
  %v223 = vunpack.c.l.b16 %v203
  %v224 = vpack.c.b16 %v217, %v216
  %v225 = vpack.c.b16 %v219, %v218
  %v226 = vpack.c.b16 %v221, %v220
  %v227 = vpack.c.b16 %v223, %v222
  %v233 = vsel %vm33, %v193, 0
  %v236 = vsel %vm33, %v194, 0
  %v239 = vsel %vm33, %v195, 0
  %241 = vmatpush.bf16.msra.mxu0 0
  %242 = vmatpush.bf16.msra.mxu0 0
  %243 = vmatpush.bf16.msra.mxu0 0
  %244 = vmatpush.bf16.msra.mxu0 0
  %245 = vmatpush.bf16.msra.mxu0 %v227
  %246 = vmatpush.bf16.msra.mxu0 %v226
  %247 = vmatpush.bf16.msra.mxu0 %v225
  %248 = vmatpush.bf16.msra.mxu0 %v224
  %249 = vmatmul.bf16.gmra.mxu0 %v233
  %v250 = vpop.f32.mrf.mxu0
  %v251 = vadd.f32 %v206, %v250
  %v252 = vpop.f32.mrf.mxu0
  %v253 = vadd.f32 %v206, %v252
  %254 = vmatmul.bf16.gmra.mxu0 %v236
  %v255 = vpop.f32.mrf.mxu0
  %v256 = vadd.f32 %v206, %v255
  %v257 = vpop.f32.mrf.mxu0
  %v258 = vadd.f32 %v206, %v257
  %259 = vmatmul.bf16.gmra.mxu0 %v239
  %v260 = vpop.f32.mrf.mxu0
  %v261 = vadd.f32 %v206, %v260
  %v262 = vpop.f32.mrf.mxu0
  %v263 = vadd.f32 %v206, %v262
  %264 = vdwg.mxu0
  %v265 = vxor.u32 %v251, 2147483648
  %v266 = vxor.u32 %v253, 2147483648
  %v267 = vxor.u32 %v256, 2147483648
  %v268 = vxor.u32 %v258, 2147483648
  %v269 = vxor.u32 %v261, 2147483648
  %v270 = vxor.u32 %v263, 2147483648
  %v271 = vmul.f32 %v265, 1.442695
  %v272 = vpow.pop %v271
  %v273 = vmul.f32 %v266, 1.442695
  %v274 = vpow.pop %v273
  %v275 = vmul.f32 %v267, 1.442695
  %v276 = vpow.pop %v275
  %v277 = vmul.f32 %v268, 1.442695
  %v278 = vpow.pop %v277
  %v279 = vmul.f32 %v269, 1.442695
  %v280 = vpow.pop %v279
  %v281 = vmul.f32 %v270, 1.442695
  %v282 = vpow.pop %v281
  %v283 = vadd.f32 %v272, 1.0
  %v284 = vadd.f32 %v274, 1.0
  %v285 = vadd.f32 %v276, 1.0
  %v286 = vadd.f32 %v278, 1.0
  %v287 = vadd.f32 %v280, 1.0
  %v288 = vadd.f32 %v282, 1.0
  %v289 = vrcp.pop %v283
  %v290 = vmul.f32 %v283, %v289
  %v291 = vsub.f32 1.0, %v290
  %v292 = vmul.f32 %v289, %v291
  %v293 = vadd.f32 %v289, %v292
  %vm294 = vweird.f32 %v283
  %vm295 = vweird.f32 %v289
  %vm296 = vmor %vm294, %vm295
  %v297 = vsel %vm296, %v289, %v293
  %v298 = vand.u32 2147483647, %v283
  %vm299 = vcmp.eq.f32.partialorder %v298, 8.507059e+37
  %v300 = vand.u32 %v283, 2147483648
  %v301 = vor.u32 1.1754944e-38, %v300
  %v302 = vsel %vm299, %v301, %v297
  %v303 = vmul.f32 1.0, %v302
  %v304 = vrcp.pop %v284
  %v305 = vmul.f32 %v284, %v304
  %v306 = vsub.f32 1.0, %v305
  %v307 = vmul.f32 %v304, %v306
  %v308 = vadd.f32 %v304, %v307
  %vm309 = vweird.f32 %v284
  %vm310 = vweird.f32 %v304
  %vm311 = vmor %vm309, %vm310
  %v312 = vsel %vm311, %v304, %v308
  %v313 = vand.u32 2147483647, %v284
  %vm314 = vcmp.eq.f32.partialorder %v313, 8.507059e+37
  %v315 = vand.u32 %v284, 2147483648
  %v316 = vor.u32 1.1754944e-38, %v315
  %v317 = vsel %vm314, %v316, %v312
  %v318 = vmul.f32 1.0, %v317
  %v319 = vrcp.pop %v285
  %v320 = vmul.f32 %v285, %v319
  %v321 = vsub.f32 1.0, %v320
  %v322 = vmul.f32 %v319, %v321
  %v323 = vadd.f32 %v319, %v322
  %vm324 = vweird.f32 %v285
  %vm325 = vweird.f32 %v319
  %vm326 = vmor %vm324, %vm325
  %v327 = vsel %vm326, %v319, %v323
  %v328 = vand.u32 2147483647, %v285
  %vm329 = vcmp.eq.f32.partialorder %v328, 8.507059e+37
  %v330 = vand.u32 %v285, 2147483648
  %v331 = vor.u32 1.1754944e-38, %v330
  %v332 = vsel %vm329, %v331, %v327
  %v333 = vmul.f32 1.0, %v332
  %v334 = vrcp.pop %v286
  %v335 = vmul.f32 %v286, %v334
  %v336 = vsub.f32 1.0, %v335
  %v337 = vmul.f32 %v334, %v336
  %v338 = vadd.f32 %v334, %v337
  %vm339 = vweird.f32 %v286
  %vm340 = vweird.f32 %v334
  %vm341 = vmor %vm339, %vm340
  %v342 = vsel %vm341, %v334, %v338
  %v343 = vand.u32 2147483647, %v286
  %vm344 = vcmp.eq.f32.partialorder %v343, 8.507059e+37
  %v345 = vand.u32 %v286, 2147483648
  %v346 = vor.u32 1.1754944e-38, %v345
  %v347 = vsel %vm344, %v346, %v342
  %v348 = vmul.f32 1.0, %v347
  %v349 = vrcp.pop %v287
  %v350 = vmul.f32 %v287, %v349
  %v351 = vsub.f32 1.0, %v350
  %v352 = vmul.f32 %v349, %v351
  %v353 = vadd.f32 %v349, %v352
  %vm354 = vweird.f32 %v287
  %vm355 = vweird.f32 %v349
  %vm356 = vmor %vm354, %vm355
  %v357 = vsel %vm356, %v349, %v353
  %v358 = vand.u32 2147483647, %v287
  %vm359 = vcmp.eq.f32.partialorder %v358, 8.507059e+37
  %v360 = vand.u32 %v287, 2147483648
  %v361 = vor.u32 1.1754944e-38, %v360
  %v362 = vsel %vm359, %v361, %v357
  %v363 = vmul.f32 1.0, %v362
  %v364 = vrcp.pop %v288
  %v365 = vmul.f32 %v288, %v364
  %v366 = vsub.f32 1.0, %v365
  %v367 = vmul.f32 %v364, %v366
  %v368 = vadd.f32 %v364, %v367
  %vm369 = vweird.f32 %v288
  %vm370 = vweird.f32 %v364
  %vm371 = vmor %vm369, %vm370
  %v372 = vsel %vm371, %v364, %v368
  %v373 = vand.u32 2147483647, %v288
  %vm374 = vcmp.eq.f32.partialorder %v373, 8.507059e+37
  %v375 = vand.u32 %v288, 2147483648
  %v376 = vor.u32 1.1754944e-38, %v375
  %v377 = vsel %vm374, %v376, %v372
  %v378 = vmul.f32 1.0, %v377
  %v379 = vmul.f32 %v303, 6000.0
  %v380 = vmul.f32 %v318, 6000.0
  %v381 = vmul.f32 %v333, 6000.0
  %v382 = vmul.f32 %v348, 6000.0
  %v383 = vmul.f32 %v363, 6000.0
  %v384 = vmul.f32 %v378, 6000.0
  %385 = vst [vmem:[%s5] sm:$0xff] %v379
  %386 = vst [vmem:[%s5 + $0x8] sm:$0xff] %v380
  %387 = vst [vmem:[%s5 + $0x10] sm:$0xff] %v381
  %388 = vst [vmem:[%s5 + $0x18] sm:$0xff] %v382
  %389 = vst [vmem:[%s5 + $0x20] sm:$0xff] %v383
  %390 = vst [vmem:[%s5 + $0x28] sm:$0xff] %v384
  // Predicated region
  $region22: #{fwi_forward.13} parent=0 // pred_check
    _
  $region23: #{fwi_forward.13} parent=0 // pred_check_branch
    %392 = sbr.rel (0) target = $region25
  $region24: #{fwi_forward.13} parent=0 // pred_region
    _
  $region25: #{fwi_forward.13} parent=0 // pred_fallthru
    _
  // Predicated region
  $region26: #{fwi_forward.13} parent=0 // pred_check
    _
  $region27: #{fwi_forward.13} parent=0 // pred_check_branch
    %394 = sbr.rel (0) target = $region29
  $region28: #{fwi_forward.13} parent=0 // pred_region
    _
  $region29: #{fwi_forward.13} parent=0 // pred_fallthru
    _

</llo_original>
